<compile_context>
chip_gen: v7x
topology: tpu7x:2x2x1
jax: 0.10.0
libtpu: 0.0.40
codegen_flags: <defaults>
</compile_context>

<pallas_src>
import functools

import jax
import jax.numpy as jnp
import numpy as np
from jax import lax
from jax.experimental import pallas as pl
from jax.experimental.pallas import tpu as pltpu


# ---------------------------------------------------------------------------
# Banded-weight construction (plain JAX, traced once per forward call).
#
# For a stride-1 conv with "same" padding p = K//2 acting on a padded slab
# X[row, wi*Cin + ci] (row = padded height index), the dy-th band B[dy] of
# shape (Wp*Cin, u*Wout*Cout) satisfies
#     y_up[h, (u*w + r)*Cout + co] = sum_dy (X[h + dy, :] @ B[dy])[...]
# i.e. the dx and ci contractions AND the nearest-2x width duplication (u=2)
# are folded into one MXU contraction per dy.
# ---------------------------------------------------------------------------
def _banded_weight(weight_oihw, *, win, pad, upsample=1, cmajor=False):
    cout, cin, kh, kw = weight_oihw.shape
    wp = win + 2 * pad
    w_t = jnp.transpose(weight_oihw, (2, 3, 1, 0)).astype(jnp.float32)  # KH,KW,Cin,Cout
    wcols = jnp.arange(win)
    bands = []
    for dy in range(kh):
        base = jnp.zeros((win, wp, cin, cout), jnp.float32)   # [w, wi, ci, co]
        for dx in range(kw):
            base = base.at[wcols, wcols + dx].set(w_t[dy, dx])
        if cmajor:
            assert upsample == 1
            band = jnp.transpose(base, (1, 2, 3, 0)).reshape(wp * cin, cout * win)
        else:
            b = jnp.broadcast_to(base[:, :, :, None, :],
                                 (win, wp, cin, upsample, cout))
            band = jnp.transpose(b, (1, 2, 0, 3, 4)).reshape(
                wp * cin, win * upsample * cout)
        bands.append(band)
    return jnp.stack(bands, axis=0)


# ---------------------------------------------------------------------------
# Fused decoder kernel: one image per grid step, everything resident in VMEM.
# ---------------------------------------------------------------------------
def _decoder_kernel(x_ref, wb1_ref, bt1_ref, wb2_ref, bt2_ref, wb3_ref, bt3_ref,
                    o_ref, x1_ref, x2_ref, x3_ref,
                    *, H, W, hidden, in_chan, k1, k2, k3):
    f32 = jnp.float32
    p1, p2, p3 = k1 // 2, k2 // 2, k3 // 2

    # ---- stage 1: conv1 (k1 x k1, pad p1), ReLU, width-2x folded into weights
    x1_ref[...] = jnp.zeros_like(x1_ref)                       # zero padding
    x1_ref[p1:p1 + H, p1:p1 + W] = x_ref[0, 0, :, :].astype(f32)
    w1_out = 2 * W * hidden                                    # lanes of stage-1 out
    acc1 = jnp.zeros((H, w1_out), f32)
    for dy in range(k1):                                       # static unroll
        acc1 = acc1 + jnp.dot(x1_ref[dy:dy + H, :], wb1_ref[dy, :, :],
                              preferred_element_type=f32)
    h1 = jnp.maximum(acc1 + bt1_ref[...], 0.0)                 # (H, 2W*hidden)

    # ---- height-2x: write each row twice into conv2's padded slab ----------
    x2_ref[...] = jnp.zeros_like(x2_ref)
    for a in range(H):
        row = h1[a:a + 1, :]
        x2_ref[p2 + 2 * a:p2 + 2 * a + 1, p2 * hidden:p2 * hidden + w1_out] = row
        x2_ref[p2 + 2 * a + 1:p2 + 2 * a + 2, p2 * hidden:p2 * hidden + w1_out] = row

    # ---- stage 2: conv2 (k2 x k2, pad p2), ReLU, width-2x folded ------------
    H2 = 2 * H
    w2_out = 4 * W * hidden
    acc2 = jnp.zeros((H2, w2_out), f32)
    for dy in range(k2):
        acc2 = acc2 + jnp.dot(x2_ref[dy:dy + H2, :], wb2_ref[dy, :, :],
                              preferred_element_type=f32)
    h2 = jnp.maximum(acc2 + bt2_ref[...], 0.0)                 # (2H, 4W*hidden)

    # ---- height-2x into conv3's padded slab ---------------------------------
    x3_ref[...] = jnp.zeros_like(x3_ref)
    for a in range(H2):
        row = h2[a:a + 1, :]
        x3_ref[p3 + 2 * a:p3 + 2 * a + 1, p3 * hidden:p3 * hidden + w2_out] = row
        x3_ref[p3 + 2 * a + 1:p3 + 2 * a + 2, p3 * hidden:p3 * hidden + w2_out] = row

    # ---- stage 3: conv3 (k3 x k3, pad p3), ReLU, channel-major columns ------
    H3, W3 = 4 * H, 4 * W
    acc3 = jnp.zeros((H3, in_chan * W3), f32)
    for dy in range(k3):
        acc3 = acc3 + jnp.dot(x3_ref[dy:dy + H3, :], wb3_ref[dy, :, :],
                              preferred_element_type=f32)
    y3 = jnp.maximum(acc3 + bt3_ref[...], 0.0)                 # (4H, in_chan*4W)

    # Direct NCHW store: channel plane c is the contiguous column block c*W3.
    for c in range(in_chan):
        o_ref[0, c, :, :] = y3[:, c * W3:(c + 1) * W3].astype(o_ref.dtype)


# ---------------------------------------------------------------------------
# Wrapper: builds banded weights + tiled biases, launches the fused kernel.
# ---------------------------------------------------------------------------
@jax.jit
def decoder_forward(x_nchw, params):
    N, cin1, H, W = x_nchw.shape
    assert cin1 == 1, "Decoder.conv1 takes a single input channel"
    hidden = params["w1"].shape[0]
    in_chan = params["w3"].shape[0]
    k1, k2, k3 = (params["w1"].shape[2], params["w2"].shape[2],
                  params["w3"].shape[2])
    assert k1 % 2 == 1 and k2 % 2 == 1 and k3 % 2 == 1
    p1, p2, p3 = k1 // 2, k2 // 2, k3 // 2

    wb1 = _banded_weight(params["w1"], win=W, pad=p1, upsample=2)
    bt1 = jnp.tile(params["b1"].astype(jnp.float32), 2 * W)[None, :]
    wb2 = _banded_weight(params["w2"], win=2 * W, pad=p2, upsample=2)
    bt2 = jnp.tile(params["b2"].astype(jnp.float32), 4 * W)[None, :]
    wb3 = _banded_weight(params["w3"], win=4 * W, pad=p3, upsample=1, cmajor=True)
    bt3 = jnp.repeat(params["b3"].astype(jnp.float32), 4 * W)[None, :]

    kernel = functools.partial(_decoder_kernel, H=H, W=W, hidden=hidden,
                               in_chan=in_chan, k1=k1, k2=k2, k3=k3)

    out = pl.pallas_call(
        kernel,
        out_shape=jax.ShapeDtypeStruct((N, in_chan, 4 * H, 4 * W), jnp.float32),
        grid=(N,),
        in_specs=[
            pl.BlockSpec((1, 1, H, W), lambda n: (n, 0, 0, 0)),     # one image
            pl.BlockSpec(wb1.shape, lambda n: (0, 0, 0)),           # resident
            pl.BlockSpec(bt1.shape, lambda n: (0, 0)),
            pl.BlockSpec(wb2.shape, lambda n: (0, 0, 0)),
            pl.BlockSpec(bt2.shape, lambda n: (0, 0)),
            pl.BlockSpec(wb3.shape, lambda n: (0, 0, 0)),
            pl.BlockSpec(bt3.shape, lambda n: (0, 0)),
        ],
        out_specs=pl.BlockSpec((1, in_chan, 4 * H, 4 * W),
                               lambda n: (n, 0, 0, 0)),
        scratch_shapes=[
            pltpu.VMEM((H + 2 * p1, W + 2 * p1), jnp.float32),               # X1
            pltpu.VMEM((2 * H + 2 * p2, (2 * W + 2 * p2) * hidden),          # X2
                       jnp.float32),
            pltpu.VMEM((4 * H + 2 * p3, (4 * W + 2 * p3) * hidden),          # X3
                       jnp.float32),
        ],
        compiler_params=pltpu.CompilerParams(
            dimension_semantics=("parallel",)),                    # batch -> TCs
    )(x_nchw.astype(jnp.float32), wb1, bt1, wb2, bt2, wb3, bt3)
    return out


def init_params(key, in_chan, hidden_ch):
    ks = jax.random.split(key, 6)

    def conv_init(kw, kb, cout, cin, k):
        fan_in = cin * k * k
        bound = 1.0 / np.sqrt(fan_in)
        w = jax.random.uniform(kw, (cout, cin, k, k), jnp.float32, -bound, bound)
        b = jax.random.uniform(kb, (cout,), jnp.float32, -bound, bound)
        return w, b

    w1, b1 = conv_init(ks[0], ks[1], hidden_ch, 1, 5)
    w2, b2 = conv_init(ks[2], ks[3], hidden_ch, hidden_ch, 3)
    w3, b3 = conv_init(ks[4], ks[5], in_chan, hidden_ch, 3)
    return {"w1": w1, "b1": b1, "w2": w2, "b2": b2, "w3": w3, "b3": b3}


# ---------------------------------------------------------------------------
# Pure-JAX reference (mirrors the PyTorch module exactly, f32).
# ---------------------------------------------------------------------------
def decoder_reference(x_nchw, params):
    def conv(x, w, b, p):
        y = lax.conv_general_dilated(
            x, w, window_strides=(1, 1), padding=[(p, p), (p, p)],
            dimension_numbers=("NCHW", "OIHW", "NCHW"),
            precision=lax.Precision.HIGHEST)
        return y + b[None, :, None, None]

    up = lambda t: jnp.repeat(jnp.repeat(t, 2, axis=2), 2, axis=3)
    relu = lambda t: jnp.maximum(t, 0.0)
    h = relu(up(conv(x_nchw, params["w1"], params["b1"], 2)))
    h = relu(up(conv(h, params["w2"], params["b2"], 1)))
    return relu(conv(h, params["w3"], params["b3"], 1))


if __name__ == "__main__":
    key = jax.random.PRNGKey(0)
    k_in, k_p = jax.random.split(key)

    in_chan, hidden_ch = 3, 16
    N, H, W = 2, 8, 8
    x = jax.random.normal(k_in, (N, 1, H, W), jnp.float32)   # conv1 takes 1 channel
    params = init_params(k_p, in_chan, hidden_ch)

    out = jax.block_until_ready(decoder_forward(x, params))
    assert out.shape == (N, in_chan, 4 * H, 4 * W), out.shape

    ref = jax.block_until_ready(decoder_reference(x, params))
    np.testing.assert_allclose(np.asarray(out), np.asarray(ref),
                               rtol=2e-3, atol=2e-3)

    print("KERNEL_OK")
</pallas_src>

<mosaic_0001>
module attributes {stable_mosaic.version = 11 : i64} {
  func.func @_decoder_kernel(%arg0: i32, %arg1: memref<1x1x8x8xf32, #tpu.memory_space<vmem>>, %arg2: memref<5x12x256xf32, #tpu.memory_space<vmem>>, %arg3: memref<1x256xf32, #tpu.memory_space<vmem>>, %arg4: memref<3x288x512xf32, #tpu.memory_space<vmem>>, %arg5: memref<1x512xf32, #tpu.memory_space<vmem>>, %arg6: memref<3x544x96xf32, #tpu.memory_space<vmem>>, %arg7: memref<1x96xf32, #tpu.memory_space<vmem>>, %arg8: memref<1x3x32x32xf32, #tpu.memory_space<vmem>>, %arg9: memref<12x12xf32, #tpu.memory_space<vmem>>, %arg10: memref<18x288xf32, #tpu.memory_space<vmem>>, %arg11: memref<34x544xf32, #tpu.memory_space<vmem>>) attributes {dimension_semantics = [#tpu.dimension_semantics<parallel>], iteration_bounds = array<i64: 2>, scalar_prefetch = 0 : i64, scratch_operands = 3 : i64, tpu.core_type = #tpu.core_type<tc>, window_params = [{transform_indices = @transform_0, window_bounds = array<i64: 1, 1, 8, 8>}, {pipeline_mode = #tpu.pipeline_mode<synchronous>, transform_indices = @transform_1, window_bounds = array<i64: 5, 12, 256>}, {pipeline_mode = #tpu.pipeline_mode<synchronous>, transform_indices = @transform_2, window_bounds = array<i64: 1, 256>}, {pipeline_mode = #tpu.pipeline_mode<synchronous>, transform_indices = @transform_3, window_bounds = array<i64: 3, 288, 512>}, {pipeline_mode = #tpu.pipeline_mode<synchronous>, transform_indices = @transform_4, window_bounds = array<i64: 1, 512>}, {pipeline_mode = #tpu.pipeline_mode<synchronous>, transform_indices = @transform_5, window_bounds = array<i64: 3, 544, 96>}, {pipeline_mode = #tpu.pipeline_mode<synchronous>, transform_indices = @transform_6, window_bounds = array<i64: 1, 96>}, {transform_indices = @transform_7, window_bounds = array<i64: 1, 3, 32, 32>}]} {
    %cst = arith.constant 0.000000e+00 : f32
    %0 = vector.broadcast %cst : f32 to vector<12x12xf32>
    %c0 = arith.constant 0 : index
    %c0_0 = arith.constant 0 : index
    %1 = vector.load %arg9[%c0, %c0_0] : memref<12x12xf32, #tpu.memory_space<vmem>>, vector<12x12xf32>
    tpu.vector_store %arg9[%c0, %c0_0], %0 {strides = array<i32>} : memref<12x12xf32, #tpu.memory_space<vmem>>, vector<12x12xf32>,
    %c0_1 = arith.constant 0 : index
    %c0_2 = arith.constant 0 : index
    %c0_3 = arith.constant 0 : index
    %c0_4 = arith.constant 0 : index
    %2 = vector.load %arg1[%c0_1, %c0_2, %c0_3, %c0_4] : memref<1x1x8x8xf32, #tpu.memory_space<vmem>>, vector<1x1x8x8xf32>
    %3 = vector.shape_cast %2 : vector<1x1x8x8xf32> to vector<8x8xf32>
    %c2 = arith.constant 2 : index
    %c2_5 = arith.constant 2 : index
    %4 = vector.load %arg9[%c2, %c2_5] : memref<12x12xf32, #tpu.memory_space<vmem>>, vector<8x8xf32>
    tpu.vector_store %arg9[%c2, %c2_5], %3 {strides = array<i32>} : memref<12x12xf32, #tpu.memory_space<vmem>>, vector<8x8xf32>,
    %cst_6 = arith.constant 0.000000e+00 : f32
    %5 = vector.broadcast %cst_6 : f32 to vector<8x256xf32>
    %c0_7 = arith.constant 0 : index
    %c0_8 = arith.constant 0 : index
    %6 = vector.load %arg9[%c0_7, %c0_8] : memref<12x12xf32, #tpu.memory_space<vmem>>, vector<8x12xf32>
    %c0_9 = arith.constant 0 : index
    %c0_10 = arith.constant 0 : index
    %c0_11 = arith.constant 0 : index
    %7 = vector.load %arg2[%c0_9, %c0_10, %c0_11] : memref<5x12x256xf32, #tpu.memory_space<vmem>>, vector<1x12x256xf32>
    %8 = vector.shape_cast %7 : vector<1x12x256xf32> to vector<12x256xf32>
    %cst_12 = arith.constant dense<0.000000e+00> : vector<8x256xf32>
    %9 = tpu.matmul %6, %8, %cst_12 {dimension_numbers = #tpu.dot_dimension_numbers<[1], [0], [0], [1], [0, 0, 1, 1], [], []>} : vector<8x12xf32>, vector<12x256xf32>, vector<8x256xf32> -> vector<8x256xf32>
    %10 = arith.addf %5, %9 : vector<8x256xf32>
    %c1 = arith.constant 1 : index
    %c0_13 = arith.constant 0 : index
    %11 = vector.load %arg9[%c1, %c0_13] : memref<12x12xf32, #tpu.memory_space<vmem>>, vector<8x12xf32>
    %c1_14 = arith.constant 1 : index
    %c0_15 = arith.constant 0 : index
    %c0_16 = arith.constant 0 : index
    %12 = vector.load %arg2[%c1_14, %c0_15, %c0_16] : memref<5x12x256xf32, #tpu.memory_space<vmem>>, vector<1x12x256xf32>
    %13 = vector.shape_cast %12 : vector<1x12x256xf32> to vector<12x256xf32>
    %cst_17 = arith.constant dense<0.000000e+00> : vector<8x256xf32>
    %14 = tpu.matmul %11, %13, %cst_17 {dimension_numbers = #tpu.dot_dimension_numbers<[1], [0], [0], [1], [0, 0, 1, 1], [], []>} : vector<8x12xf32>, vector<12x256xf32>, vector<8x256xf32> -> vector<8x256xf32>
    %15 = arith.addf %10, %14 : vector<8x256xf32>
    %c2_18 = arith.constant 2 : index
    %c0_19 = arith.constant 0 : index
    %16 = vector.load %arg9[%c2_18, %c0_19] : memref<12x12xf32, #tpu.memory_space<vmem>>, vector<8x12xf32>
    %c2_20 = arith.constant 2 : index
    %c0_21 = arith.constant 0 : index
    %c0_22 = arith.constant 0 : index
    %17 = vector.load %arg2[%c2_20, %c0_21, %c0_22] : memref<5x12x256xf32, #tpu.memory_space<vmem>>, vector<1x12x256xf32>
    %18 = vector.shape_cast %17 : vector<1x12x256xf32> to vector<12x256xf32>
    %cst_23 = arith.constant dense<0.000000e+00> : vector<8x256xf32>
    %19 = tpu.matmul %16, %18, %cst_23 {dimension_numbers = #tpu.dot_dimension_numbers<[1], [0], [0], [1], [0, 0, 1, 1], [], []>} : vector<8x12xf32>, vector<12x256xf32>, vector<8x256xf32> -> vector<8x256xf32>
    %20 = arith.addf %15, %19 : vector<8x256xf32>
    %c3 = arith.constant 3 : index
    %c0_24 = arith.constant 0 : index
    %21 = vector.load %arg9[%c3, %c0_24] : memref<12x12xf32, #tpu.memory_space<vmem>>, vector<8x12xf32>
    %c3_25 = arith.constant 3 : index
    %c0_26 = arith.constant 0 : index
    %c0_27 = arith.constant 0 : index
    %22 = vector.load %arg2[%c3_25, %c0_26, %c0_27] : memref<5x12x256xf32, #tpu.memory_space<vmem>>, vector<1x12x256xf32>
    %23 = vector.shape_cast %22 : vector<1x12x256xf32> to vector<12x256xf32>
    %cst_28 = arith.constant dense<0.000000e+00> : vector<8x256xf32>
    %24 = tpu.matmul %21, %23, %cst_28 {dimension_numbers = #tpu.dot_dimension_numbers<[1], [0], [0], [1], [0, 0, 1, 1], [], []>} : vector<8x12xf32>, vector<12x256xf32>, vector<8x256xf32> -> vector<8x256xf32>
    %25 = arith.addf %20, %24 : vector<8x256xf32>
    %c4 = arith.constant 4 : index
    %c0_29 = arith.constant 0 : index
    %26 = vector.load %arg9[%c4, %c0_29] : memref<12x12xf32, #tpu.memory_space<vmem>>, vector<8x12xf32>
    %c4_30 = arith.constant 4 : index
    %c0_31 = arith.constant 0 : index
    %c0_32 = arith.constant 0 : index
    %27 = vector.load %arg2[%c4_30, %c0_31, %c0_32] : memref<5x12x256xf32, #tpu.memory_space<vmem>>, vector<1x12x256xf32>
    %28 = vector.shape_cast %27 : vector<1x12x256xf32> to vector<12x256xf32>
    %cst_33 = arith.constant dense<0.000000e+00> : vector<8x256xf32>
    %29 = tpu.matmul %26, %28, %cst_33 {dimension_numbers = #tpu.dot_dimension_numbers<[1], [0], [0], [1], [0, 0, 1, 1], [], []>} : vector<8x12xf32>, vector<12x256xf32>, vector<8x256xf32> -> vector<8x256xf32>
    %30 = arith.addf %25, %29 : vector<8x256xf32>
    %c0_34 = arith.constant 0 : index
    %c0_35 = arith.constant 0 : index
    %31 = vector.load %arg3[%c0_34, %c0_35] : memref<1x256xf32, #tpu.memory_space<vmem>>, vector<1x256xf32>
    %32 = vector.broadcast %31 : vector<1x256xf32> to vector<8x256xf32>
    %33 = arith.addf %30, %32 : vector<8x256xf32>
    %cst_36 = arith.constant 0.000000e+00 : f32
    %34 = vector.broadcast %cst_36 : f32 to vector<8x256xf32>
    %35 = arith.maximumf %33, %34 : vector<8x256xf32>
    %cst_37 = arith.constant 0.000000e+00 : f32
    %36 = vector.broadcast %cst_37 : f32 to vector<18x288xf32>
    %c0_38 = arith.constant 0 : index
    %c0_39 = arith.constant 0 : index
    %37 = vector.load %arg10[%c0_38, %c0_39] : memref<18x288xf32, #tpu.memory_space<vmem>>, vector<18x288xf32>
    tpu.vector_store %arg10[%c0_38, %c0_39], %36 {strides = array<i32>} : memref<18x288xf32, #tpu.memory_space<vmem>>, vector<18x288xf32>,
    %38 = vector.extract_strided_slice %35 {offsets = [0, 0], sizes = [1, 256], strides = [1, 1]} : vector<8x256xf32> to vector<1x256xf32>
    %c1_40 = arith.constant 1 : index
    %c16 = arith.constant 16 : index
    %39 = vector.load %arg10[%c1_40, %c16] : memref<18x288xf32, #tpu.memory_space<vmem>>, vector<1x256xf32>
    tpu.vector_store %arg10[%c1_40, %c16], %38 {strides = array<i32>} : memref<18x288xf32, #tpu.memory_space<vmem>>, vector<1x256xf32>,
    %c2_41 = arith.constant 2 : index
    %c16_42 = arith.constant 16 : index
    %40 = vector.load %arg10[%c2_41, %c16_42] : memref<18x288xf32, #tpu.memory_space<vmem>>, vector<1x256xf32>
    tpu.vector_store %arg10[%c2_41, %c16_42], %38 {strides = array<i32>} : memref<18x288xf32, #tpu.memory_space<vmem>>, vector<1x256xf32>,
    %41 = vector.extract_strided_slice %35 {offsets = [1, 0], sizes = [1, 256], strides = [1, 1]} : vector<8x256xf32> to vector<1x256xf32>
    %c3_43 = arith.constant 3 : index
    %c16_44 = arith.constant 16 : index
    %42 = vector.load %arg10[%c3_43, %c16_44] : memref<18x288xf32, #tpu.memory_space<vmem>>, vector<1x256xf32>
    tpu.vector_store %arg10[%c3_43, %c16_44], %41 {strides = array<i32>} : memref<18x288xf32, #tpu.memory_space<vmem>>, vector<1x256xf32>,
    %c4_45 = arith.constant 4 : index
    %c16_46 = arith.constant 16 : index
    %43 = vector.load %arg10[%c4_45, %c16_46] : memref<18x288xf32, #tpu.memory_space<vmem>>, vector<1x256xf32>
    tpu.vector_store %arg10[%c4_45, %c16_46], %41 {strides = array<i32>} : memref<18x288xf32, #tpu.memory_space<vmem>>, vector<1x256xf32>,
    %44 = vector.extract_strided_slice %35 {offsets = [2, 0], sizes = [1, 256], strides = [1, 1]} : vector<8x256xf32> to vector<1x256xf32>
    %c5 = arith.constant 5 : index
    %c16_47 = arith.constant 16 : index
    %45 = vector.load %arg10[%c5, %c16_47] : memref<18x288xf32, #tpu.memory_space<vmem>>, vector<1x256xf32>
    tpu.vector_store %arg10[%c5, %c16_47], %44 {strides = array<i32>} : memref<18x288xf32, #tpu.memory_space<vmem>>, vector<1x256xf32>,
    %c6 = arith.constant 6 : index
    %c16_48 = arith.constant 16 : index
    %46 = vector.load %arg10[%c6, %c16_48] : memref<18x288xf32, #tpu.memory_space<vmem>>, vector<1x256xf32>
    tpu.vector_store %arg10[%c6, %c16_48], %44 {strides = array<i32>} : memref<18x288xf32, #tpu.memory_space<vmem>>, vector<1x256xf32>,
    %47 = vector.extract_strided_slice %35 {offsets = [3, 0], sizes = [1, 256], strides = [1, 1]} : vector<8x256xf32> to vector<1x256xf32>
    %c7 = arith.constant 7 : index
    %c16_49 = arith.constant 16 : index
    %48 = vector.load %arg10[%c7, %c16_49] : memref<18x288xf32, #tpu.memory_space<vmem>>, vector<1x256xf32>
    tpu.vector_store %arg10[%c7, %c16_49], %47 {strides = array<i32>} : memref<18x288xf32, #tpu.memory_space<vmem>>, vector<1x256xf32>,
    %c8 = arith.constant 8 : index
    %c16_50 = arith.constant 16 : index
    %49 = vector.load %arg10[%c8, %c16_50] : memref<18x288xf32, #tpu.memory_space<vmem>>, vector<1x256xf32>
    tpu.vector_store %arg10[%c8, %c16_50], %47 {strides = array<i32>} : memref<18x288xf32, #tpu.memory_space<vmem>>, vector<1x256xf32>,
    %50 = vector.extract_strided_slice %35 {offsets = [4, 0], sizes = [1, 256], strides = [1, 1]} : vector<8x256xf32> to vector<1x256xf32>
    %c9 = arith.constant 9 : index
    %c16_51 = arith.constant 16 : index
    %51 = vector.load %arg10[%c9, %c16_51] : memref<18x288xf32, #tpu.memory_space<vmem>>, vector<1x256xf32>
    tpu.vector_store %arg10[%c9, %c16_51], %50 {strides = array<i32>} : memref<18x288xf32, #tpu.memory_space<vmem>>, vector<1x256xf32>,
    %c10 = arith.constant 10 : index
    %c16_52 = arith.constant 16 : index
    %52 = vector.load %arg10[%c10, %c16_52] : memref<18x288xf32, #tpu.memory_space<vmem>>, vector<1x256xf32>
    tpu.vector_store %arg10[%c10, %c16_52], %50 {strides = array<i32>} : memref<18x288xf32, #tpu.memory_space<vmem>>, vector<1x256xf32>,
    %53 = vector.extract_strided_slice %35 {offsets = [5, 0], sizes = [1, 256], strides = [1, 1]} : vector<8x256xf32> to vector<1x256xf32>
    %c11 = arith.constant 11 : index
    %c16_53 = arith.constant 16 : index
    %54 = vector.load %arg10[%c11, %c16_53] : memref<18x288xf32, #tpu.memory_space<vmem>>, vector<1x256xf32>
    tpu.vector_store %arg10[%c11, %c16_53], %53 {strides = array<i32>} : memref<18x288xf32, #tpu.memory_space<vmem>>, vector<1x256xf32>,
    %c12 = arith.constant 12 : index
    %c16_54 = arith.constant 16 : index
    %55 = vector.load %arg10[%c12, %c16_54] : memref<18x288xf32, #tpu.memory_space<vmem>>, vector<1x256xf32>
    tpu.vector_store %arg10[%c12, %c16_54], %53 {strides = array<i32>} : memref<18x288xf32, #tpu.memory_space<vmem>>, vector<1x256xf32>,
    %56 = vector.extract_strided_slice %35 {offsets = [6, 0], sizes = [1, 256], strides = [1, 1]} : vector<8x256xf32> to vector<1x256xf32>
    %c13 = arith.constant 13 : index
    %c16_55 = arith.constant 16 : index
    %57 = vector.load %arg10[%c13, %c16_55] : memref<18x288xf32, #tpu.memory_space<vmem>>, vector<1x256xf32>
    tpu.vector_store %arg10[%c13, %c16_55], %56 {strides = array<i32>} : memref<18x288xf32, #tpu.memory_space<vmem>>, vector<1x256xf32>,
    %c14 = arith.constant 14 : index
    %c16_56 = arith.constant 16 : index
    %58 = vector.load %arg10[%c14, %c16_56] : memref<18x288xf32, #tpu.memory_space<vmem>>, vector<1x256xf32>
    tpu.vector_store %arg10[%c14, %c16_56], %56 {strides = array<i32>} : memref<18x288xf32, #tpu.memory_space<vmem>>, vector<1x256xf32>,
    %59 = vector.extract_strided_slice %35 {offsets = [7, 0], sizes = [1, 256], strides = [1, 1]} : vector<8x256xf32> to vector<1x256xf32>
    %c15 = arith.constant 15 : index
    %c16_57 = arith.constant 16 : index
    %60 = vector.load %arg10[%c15, %c16_57] : memref<18x288xf32, #tpu.memory_space<vmem>>, vector<1x256xf32>
    tpu.vector_store %arg10[%c15, %c16_57], %59 {strides = array<i32>} : memref<18x288xf32, #tpu.memory_space<vmem>>, vector<1x256xf32>,
    %c16_58 = arith.constant 16 : index
    %c16_59 = arith.constant 16 : index
    %61 = vector.load %arg10[%c16_58, %c16_59] : memref<18x288xf32, #tpu.memory_space<vmem>>, vector<1x256xf32>
    tpu.vector_store %arg10[%c16_58, %c16_59], %59 {strides = array<i32>} : memref<18x288xf32, #tpu.memory_space<vmem>>, vector<1x256xf32>,
    %cst_60 = arith.constant 0.000000e+00 : f32
    %62 = vector.broadcast %cst_60 : f32 to vector<16x512xf32>
    %c0_61 = arith.constant 0 : index
    %c0_62 = arith.constant 0 : index
    %63 = vector.load %arg10[%c0_61, %c0_62] : memref<18x288xf32, #tpu.memory_space<vmem>>, vector<16x288xf32>
    %c0_63 = arith.constant 0 : index
    %c0_64 = arith.constant 0 : index
    %c0_65 = arith.constant 0 : index
    %64 = vector.load %arg4[%c0_63, %c0_64, %c0_65] : memref<3x288x512xf32, #tpu.memory_space<vmem>>, vector<1x288x512xf32>
    %65 = vector.shape_cast %64 : vector<1x288x512xf32> to vector<288x512xf32>
    %cst_66 = arith.constant dense<0.000000e+00> : vector<16x512xf32>
    %66 = tpu.matmul %63, %65, %cst_66 {dimension_numbers = #tpu.dot_dimension_numbers<[1], [0], [0], [1], [0, 0, 1, 1], [], []>} : vector<16x288xf32>, vector<288x512xf32>, vector<16x512xf32> -> vector<16x512xf32>
    %67 = arith.addf %62, %66 : vector<16x512xf32>
    %c1_67 = arith.constant 1 : index
    %c0_68 = arith.constant 0 : index
    %68 = vector.load %arg10[%c1_67, %c0_68] : memref<18x288xf32, #tpu.memory_space<vmem>>, vector<16x288xf32>
    %c1_69 = arith.constant 1 : index
    %c0_70 = arith.constant 0 : index
    %c0_71 = arith.constant 0 : index
    %69 = vector.load %arg4[%c1_69, %c0_70, %c0_71] : memref<3x288x512xf32, #tpu.memory_space<vmem>>, vector<1x288x512xf32>
    %70 = vector.shape_cast %69 : vector<1x288x512xf32> to vector<288x512xf32>
    %cst_72 = arith.constant dense<0.000000e+00> : vector<16x512xf32>
    %71 = tpu.matmul %68, %70, %cst_72 {dimension_numbers = #tpu.dot_dimension_numbers<[1], [0], [0], [1], [0, 0, 1, 1], [], []>} : vector<16x288xf32>, vector<288x512xf32>, vector<16x512xf32> -> vector<16x512xf32>
    %72 = arith.addf %67, %71 : vector<16x512xf32>
    %c2_73 = arith.constant 2 : index
    %c0_74 = arith.constant 0 : index
    %73 = vector.load %arg10[%c2_73, %c0_74] : memref<18x288xf32, #tpu.memory_space<vmem>>, vector<16x288xf32>
    %c2_75 = arith.constant 2 : index
    %c0_76 = arith.constant 0 : index
    %c0_77 = arith.constant 0 : index
    %74 = vector.load %arg4[%c2_75, %c0_76, %c0_77] : memref<3x288x512xf32, #tpu.memory_space<vmem>>, vector<1x288x512xf32>
    %75 = vector.shape_cast %74 : vector<1x288x512xf32> to vector<288x512xf32>
    %cst_78 = arith.constant dense<0.000000e+00> : vector<16x512xf32>
    %76 = tpu.matmul %73, %75, %cst_78 {dimension_numbers = #tpu.dot_dimension_numbers<[1], [0], [0], [1], [0, 0, 1, 1], [], []>} : vector<16x288xf32>, vector<288x512xf32>, vector<16x512xf32> -> vector<16x512xf32>
    %77 = arith.addf %72, %76 : vector<16x512xf32>
    %c0_79 = arith.constant 0 : index
    %c0_80 = arith.constant 0 : index
    %78 = vector.load %arg5[%c0_79, %c0_80] : memref<1x512xf32, #tpu.memory_space<vmem>>, vector<1x512xf32>
    %79 = vector.broadcast %78 : vector<1x512xf32> to vector<16x512xf32>
    %80 = arith.addf %77, %79 : vector<16x512xf32>
    %cst_81 = arith.constant 0.000000e+00 : f32
    %81 = vector.broadcast %cst_81 : f32 to vector<16x512xf32>
    %82 = arith.maximumf %80, %81 : vector<16x512xf32>
    %cst_82 = arith.constant 0.000000e+00 : f32
    %83 = vector.broadcast %cst_82 : f32 to vector<34x544xf32>
    %c0_83 = arith.constant 0 : index
    %c0_84 = arith.constant 0 : index
    %84 = vector.load %arg11[%c0_83, %c0_84] : memref<34x544xf32, #tpu.memory_space<vmem>>, vector<34x544xf32>
    tpu.vector_store %arg11[%c0_83, %c0_84], %83 {strides = array<i32>} : memref<34x544xf32, #tpu.memory_space<vmem>>, vector<34x544xf32>,
    %85 = vector.extract_strided_slice %82 {offsets = [0, 0], sizes = [1, 512], strides = [1, 1]} : vector<16x512xf32> to vector<1x512xf32>
    %c1_85 = arith.constant 1 : index
    %c16_86 = arith.constant 16 : index
    %86 = vector.load %arg11[%c1_85, %c16_86] : memref<34x544xf32, #tpu.memory_space<vmem>>, vector<1x512xf32>
    tpu.vector_store %arg11[%c1_85, %c16_86], %85 {strides = array<i32>} : memref<34x544xf32, #tpu.memory_space<vmem>>, vector<1x512xf32>,
    %c2_87 = arith.constant 2 : index
    %c16_88 = arith.constant 16 : index
    %87 = vector.load %arg11[%c2_87, %c16_88] : memref<34x544xf32, #tpu.memory_space<vmem>>, vector<1x512xf32>
    tpu.vector_store %arg11[%c2_87, %c16_88], %85 {strides = array<i32>} : memref<34x544xf32, #tpu.memory_space<vmem>>, vector<1x512xf32>,
    %88 = vector.extract_strided_slice %82 {offsets = [1, 0], sizes = [1, 512], strides = [1, 1]} : vector<16x512xf32> to vector<1x512xf32>
    %c3_89 = arith.constant 3 : index
    %c16_90 = arith.constant 16 : index
    %89 = vector.load %arg11[%c3_89, %c16_90] : memref<34x544xf32, #tpu.memory_space<vmem>>, vector<1x512xf32>
    tpu.vector_store %arg11[%c3_89, %c16_90], %88 {strides = array<i32>} : memref<34x544xf32, #tpu.memory_space<vmem>>, vector<1x512xf32>,
    %c4_91 = arith.constant 4 : index
    %c16_92 = arith.constant 16 : index
    %90 = vector.load %arg11[%c4_91, %c16_92] : memref<34x544xf32, #tpu.memory_space<vmem>>, vector<1x512xf32>
    tpu.vector_store %arg11[%c4_91, %c16_92], %88 {strides = array<i32>} : memref<34x544xf32, #tpu.memory_space<vmem>>, vector<1x512xf32>,
    %91 = vector.extract_strided_slice %82 {offsets = [2, 0], sizes = [1, 512], strides = [1, 1]} : vector<16x512xf32> to vector<1x512xf32>
    %c5_93 = arith.constant 5 : index
    %c16_94 = arith.constant 16 : index
    %92 = vector.load %arg11[%c5_93, %c16_94] : memref<34x544xf32, #tpu.memory_space<vmem>>, vector<1x512xf32>
    tpu.vector_store %arg11[%c5_93, %c16_94], %91 {strides = array<i32>} : memref<34x544xf32, #tpu.memory_space<vmem>>, vector<1x512xf32>,
    %c6_95 = arith.constant 6 : index
    %c16_96 = arith.constant 16 : index
    %93 = vector.load %arg11[%c6_95, %c16_96] : memref<34x544xf32, #tpu.memory_space<vmem>>, vector<1x512xf32>
    tpu.vector_store %arg11[%c6_95, %c16_96], %91 {strides = array<i32>} : memref<34x544xf32, #tpu.memory_space<vmem>>, vector<1x512xf32>,
    %94 = vector.extract_strided_slice %82 {offsets = [3, 0], sizes = [1, 512], strides = [1, 1]} : vector<16x512xf32> to vector<1x512xf32>
    %c7_97 = arith.constant 7 : index
    %c16_98 = arith.constant 16 : index
    %95 = vector.load %arg11[%c7_97, %c16_98] : memref<34x544xf32, #tpu.memory_space<vmem>>, vector<1x512xf32>
    tpu.vector_store %arg11[%c7_97, %c16_98], %94 {strides = array<i32>} : memref<34x544xf32, #tpu.memory_space<vmem>>, vector<1x512xf32>,
    %c8_99 = arith.constant 8 : index
    %c16_100 = arith.constant 16 : index
    %96 = vector.load %arg11[%c8_99, %c16_100] : memref<34x544xf32, #tpu.memory_space<vmem>>, vector<1x512xf32>
    tpu.vector_store %arg11[%c8_99, %c16_100], %94 {strides = array<i32>} : memref<34x544xf32, #tpu.memory_space<vmem>>, vector<1x512xf32>,
    %97 = vector.extract_strided_slice %82 {offsets = [4, 0], sizes = [1, 512], strides = [1, 1]} : vector<16x512xf32> to vector<1x512xf32>
    %c9_101 = arith.constant 9 : index
    %c16_102 = arith.constant 16 : index
    %98 = vector.load %arg11[%c9_101, %c16_102] : memref<34x544xf32, #tpu.memory_space<vmem>>, vector<1x512xf32>
    tpu.vector_store %arg11[%c9_101, %c16_102], %97 {strides = array<i32>} : memref<34x544xf32, #tpu.memory_space<vmem>>, vector<1x512xf32>,
    %c10_103 = arith.constant 10 : index
    %c16_104 = arith.constant 16 : index
    %99 = vector.load %arg11[%c10_103, %c16_104] : memref<34x544xf32, #tpu.memory_space<vmem>>, vector<1x512xf32>
    tpu.vector_store %arg11[%c10_103, %c16_104], %97 {strides = array<i32>} : memref<34x544xf32, #tpu.memory_space<vmem>>, vector<1x512xf32>,
    %100 = vector.extract_strided_slice %82 {offsets = [5, 0], sizes = [1, 512], strides = [1, 1]} : vector<16x512xf32> to vector<1x512xf32>
    %c11_105 = arith.constant 11 : index
    %c16_106 = arith.constant 16 : index
    %101 = vector.load %arg11[%c11_105, %c16_106] : memref<34x544xf32, #tpu.memory_space<vmem>>, vector<1x512xf32>
    tpu.vector_store %arg11[%c11_105, %c16_106], %100 {strides = array<i32>} : memref<34x544xf32, #tpu.memory_space<vmem>>, vector<1x512xf32>,
    %c12_107 = arith.constant 12 : index
    %c16_108 = arith.constant 16 : index
    %102 = vector.load %arg11[%c12_107, %c16_108] : memref<34x544xf32, #tpu.memory_space<vmem>>, vector<1x512xf32>
    tpu.vector_store %arg11[%c12_107, %c16_108], %100 {strides = array<i32>} : memref<34x544xf32, #tpu.memory_space<vmem>>, vector<1x512xf32>,
    %103 = vector.extract_strided_slice %82 {offsets = [6, 0], sizes = [1, 512], strides = [1, 1]} : vector<16x512xf32> to vector<1x512xf32>
    %c13_109 = arith.constant 13 : index
    %c16_110 = arith.constant 16 : index
    %104 = vector.load %arg11[%c13_109, %c16_110] : memref<34x544xf32, #tpu.memory_space<vmem>>, vector<1x512xf32>
    tpu.vector_store %arg11[%c13_109, %c16_110], %103 {strides = array<i32>} : memref<34x544xf32, #tpu.memory_space<vmem>>, vector<1x512xf32>,
    %c14_111 = arith.constant 14 : index
    %c16_112 = arith.constant 16 : index
    %105 = vector.load %arg11[%c14_111, %c16_112] : memref<34x544xf32, #tpu.memory_space<vmem>>, vector<1x512xf32>
    tpu.vector_store %arg11[%c14_111, %c16_112], %103 {strides = array<i32>} : memref<34x544xf32, #tpu.memory_space<vmem>>, vector<1x512xf32>,
    %106 = vector.extract_strided_slice %82 {offsets = [7, 0], sizes = [1, 512], strides = [1, 1]} : vector<16x512xf32> to vector<1x512xf32>
    %c15_113 = arith.constant 15 : index
    %c16_114 = arith.constant 16 : index
    %107 = vector.load %arg11[%c15_113, %c16_114] : memref<34x544xf32, #tpu.memory_space<vmem>>, vector<1x512xf32>
    tpu.vector_store %arg11[%c15_113, %c16_114], %106 {strides = array<i32>} : memref<34x544xf32, #tpu.memory_space<vmem>>, vector<1x512xf32>,
    %c16_115 = arith.constant 16 : index
    %c16_116 = arith.constant 16 : index
    %108 = vector.load %arg11[%c16_115, %c16_116] : memref<34x544xf32, #tpu.memory_space<vmem>>, vector<1x512xf32>
    tpu.vector_store %arg11[%c16_115, %c16_116], %106 {strides = array<i32>} : memref<34x544xf32, #tpu.memory_space<vmem>>, vector<1x512xf32>,
    %109 = vector.extract_strided_slice %82 {offsets = [8, 0], sizes = [1, 512], strides = [1, 1]} : vector<16x512xf32> to vector<1x512xf32>
    %c17 = arith.constant 17 : index
    %c16_117 = arith.constant 16 : index
    %110 = vector.load %arg11[%c17, %c16_117] : memref<34x544xf32, #tpu.memory_space<vmem>>, vector<1x512xf32>
    tpu.vector_store %arg11[%c17, %c16_117], %109 {strides = array<i32>} : memref<34x544xf32, #tpu.memory_space<vmem>>, vector<1x512xf32>,
    %c18 = arith.constant 18 : index
    %c16_118 = arith.constant 16 : index
    %111 = vector.load %arg11[%c18, %c16_118] : memref<34x544xf32, #tpu.memory_space<vmem>>, vector<1x512xf32>
    tpu.vector_store %arg11[%c18, %c16_118], %109 {strides = array<i32>} : memref<34x544xf32, #tpu.memory_space<vmem>>, vector<1x512xf32>,
    %112 = vector.extract_strided_slice %82 {offsets = [9, 0], sizes = [1, 512], strides = [1, 1]} : vector<16x512xf32> to vector<1x512xf32>
    %c19 = arith.constant 19 : index
    %c16_119 = arith.constant 16 : index
    %113 = vector.load %arg11[%c19, %c16_119] : memref<34x544xf32, #tpu.memory_space<vmem>>, vector<1x512xf32>
    tpu.vector_store %arg11[%c19, %c16_119], %112 {strides = array<i32>} : memref<34x544xf32, #tpu.memory_space<vmem>>, vector<1x512xf32>,
    %c20 = arith.constant 20 : index
    %c16_120 = arith.constant 16 : index
    %114 = vector.load %arg11[%c20, %c16_120] : memref<34x544xf32, #tpu.memory_space<vmem>>, vector<1x512xf32>
    tpu.vector_store %arg11[%c20, %c16_120], %112 {strides = array<i32>} : memref<34x544xf32, #tpu.memory_space<vmem>>, vector<1x512xf32>,
    %115 = vector.extract_strided_slice %82 {offsets = [10, 0], sizes = [1, 512], strides = [1, 1]} : vector<16x512xf32> to vector<1x512xf32>
    %c21 = arith.constant 21 : index
    %c16_121 = arith.constant 16 : index
    %116 = vector.load %arg11[%c21, %c16_121] : memref<34x544xf32, #tpu.memory_space<vmem>>, vector<1x512xf32>
    tpu.vector_store %arg11[%c21, %c16_121], %115 {strides = array<i32>} : memref<34x544xf32, #tpu.memory_space<vmem>>, vector<1x512xf32>,
    %c22 = arith.constant 22 : index
    %c16_122 = arith.constant 16 : index
    %117 = vector.load %arg11[%c22, %c16_122] : memref<34x544xf32, #tpu.memory_space<vmem>>, vector<1x512xf32>
    tpu.vector_store %arg11[%c22, %c16_122], %115 {strides = array<i32>} : memref<34x544xf32, #tpu.memory_space<vmem>>, vector<1x512xf32>,
    %118 = vector.extract_strided_slice %82 {offsets = [11, 0], sizes = [1, 512], strides = [1, 1]} : vector<16x512xf32> to vector<1x512xf32>
    %c23 = arith.constant 23 : index
    %c16_123 = arith.constant 16 : index
    %119 = vector.load %arg11[%c23, %c16_123] : memref<34x544xf32, #tpu.memory_space<vmem>>, vector<1x512xf32>
    tpu.vector_store %arg11[%c23, %c16_123], %118 {strides = array<i32>} : memref<34x544xf32, #tpu.memory_space<vmem>>, vector<1x512xf32>,
    %c24 = arith.constant 24 : index
    %c16_124 = arith.constant 16 : index
    %120 = vector.load %arg11[%c24, %c16_124] : memref<34x544xf32, #tpu.memory_space<vmem>>, vector<1x512xf32>
    tpu.vector_store %arg11[%c24, %c16_124], %118 {strides = array<i32>} : memref<34x544xf32, #tpu.memory_space<vmem>>, vector<1x512xf32>,
    %121 = vector.extract_strided_slice %82 {offsets = [12, 0], sizes = [1, 512], strides = [1, 1]} : vector<16x512xf32> to vector<1x512xf32>
    %c25 = arith.constant 25 : index
    %c16_125 = arith.constant 16 : index
    %122 = vector.load %arg11[%c25, %c16_125] : memref<34x544xf32, #tpu.memory_space<vmem>>, vector<1x512xf32>
    tpu.vector_store %arg11[%c25, %c16_125], %121 {strides = array<i32>} : memref<34x544xf32, #tpu.memory_space<vmem>>, vector<1x512xf32>,
    %c26 = arith.constant 26 : index
    %c16_126 = arith.constant 16 : index
    %123 = vector.load %arg11[%c26, %c16_126] : memref<34x544xf32, #tpu.memory_space<vmem>>, vector<1x512xf32>
    tpu.vector_store %arg11[%c26, %c16_126], %121 {strides = array<i32>} : memref<34x544xf32, #tpu.memory_space<vmem>>, vector<1x512xf32>,
    %124 = vector.extract_strided_slice %82 {offsets = [13, 0], sizes = [1, 512], strides = [1, 1]} : vector<16x512xf32> to vector<1x512xf32>
    %c27 = arith.constant 27 : index
    %c16_127 = arith.constant 16 : index
    %125 = vector.load %arg11[%c27, %c16_127] : memref<34x544xf32, #tpu.memory_space<vmem>>, vector<1x512xf32>
    tpu.vector_store %arg11[%c27, %c16_127], %124 {strides = array<i32>} : memref<34x544xf32, #tpu.memory_space<vmem>>, vector<1x512xf32>,
    %c28 = arith.constant 28 : index
    %c16_128 = arith.constant 16 : index
    %126 = vector.load %arg11[%c28, %c16_128] : memref<34x544xf32, #tpu.memory_space<vmem>>, vector<1x512xf32>
    tpu.vector_store %arg11[%c28, %c16_128], %124 {strides = array<i32>} : memref<34x544xf32, #tpu.memory_space<vmem>>, vector<1x512xf32>,
    %127 = vector.extract_strided_slice %82 {offsets = [14, 0], sizes = [1, 512], strides = [1, 1]} : vector<16x512xf32> to vector<1x512xf32>
    %c29 = arith.constant 29 : index
    %c16_129 = arith.constant 16 : index
    %128 = vector.load %arg11[%c29, %c16_129] : memref<34x544xf32, #tpu.memory_space<vmem>>, vector<1x512xf32>
    tpu.vector_store %arg11[%c29, %c16_129], %127 {strides = array<i32>} : memref<34x544xf32, #tpu.memory_space<vmem>>, vector<1x512xf32>,
    %c30 = arith.constant 30 : index
    %c16_130 = arith.constant 16 : index
    %129 = vector.load %arg11[%c30, %c16_130] : memref<34x544xf32, #tpu.memory_space<vmem>>, vector<1x512xf32>
    tpu.vector_store %arg11[%c30, %c16_130], %127 {strides = array<i32>} : memref<34x544xf32, #tpu.memory_space<vmem>>, vector<1x512xf32>,
    %130 = vector.extract_strided_slice %82 {offsets = [15, 0], sizes = [1, 512], strides = [1, 1]} : vector<16x512xf32> to vector<1x512xf32>
    %c31 = arith.constant 31 : index
    %c16_131 = arith.constant 16 : index
    %131 = vector.load %arg11[%c31, %c16_131] : memref<34x544xf32, #tpu.memory_space<vmem>>, vector<1x512xf32>
    tpu.vector_store %arg11[%c31, %c16_131], %130 {strides = array<i32>} : memref<34x544xf32, #tpu.memory_space<vmem>>, vector<1x512xf32>,
    %c32 = arith.constant 32 : index
    %c16_132 = arith.constant 16 : index
    %132 = vector.load %arg11[%c32, %c16_132] : memref<34x544xf32, #tpu.memory_space<vmem>>, vector<1x512xf32>
    tpu.vector_store %arg11[%c32, %c16_132], %130 {strides = array<i32>} : memref<34x544xf32, #tpu.memory_space<vmem>>, vector<1x512xf32>,
    %cst_133 = arith.constant 0.000000e+00 : f32
    %133 = vector.broadcast %cst_133 : f32 to vector<32x96xf32>
    %c0_134 = arith.constant 0 : index
    %c0_135 = arith.constant 0 : index
    %134 = vector.load %arg11[%c0_134, %c0_135] : memref<34x544xf32, #tpu.memory_space<vmem>>, vector<32x544xf32>
    %c0_136 = arith.constant 0 : index
    %c0_137 = arith.constant 0 : index
    %c0_138 = arith.constant 0 : index
    %135 = vector.load %arg6[%c0_136, %c0_137, %c0_138] : memref<3x544x96xf32, #tpu.memory_space<vmem>>, vector<1x544x96xf32>
    %136 = vector.shape_cast %135 : vector<1x544x96xf32> to vector<544x96xf32>
    %cst_139 = arith.constant dense<0.000000e+00> : vector<32x96xf32>
    %137 = tpu.matmul %134, %136, %cst_139 {dimension_numbers = #tpu.dot_dimension_numbers<[1], [0], [0], [1], [0, 0, 1, 1], [], []>} : vector<32x544xf32>, vector<544x96xf32>, vector<32x96xf32> -> vector<32x96xf32>
    %138 = arith.addf %133, %137 : vector<32x96xf32>
    %c1_140 = arith.constant 1 : index
    %c0_141 = arith.constant 0 : index
    %139 = vector.load %arg11[%c1_140, %c0_141] : memref<34x544xf32, #tpu.memory_space<vmem>>, vector<32x544xf32>
    %c1_142 = arith.constant 1 : index
    %c0_143 = arith.constant 0 : index
    %c0_144 = arith.constant 0 : index
    %140 = vector.load %arg6[%c1_142, %c0_143, %c0_144] : memref<3x544x96xf32, #tpu.memory_space<vmem>>, vector<1x544x96xf32>
    %141 = vector.shape_cast %140 : vector<1x544x96xf32> to vector<544x96xf32>
    %cst_145 = arith.constant dense<0.000000e+00> : vector<32x96xf32>
    %142 = tpu.matmul %139, %141, %cst_145 {dimension_numbers = #tpu.dot_dimension_numbers<[1], [0], [0], [1], [0, 0, 1, 1], [], []>} : vector<32x544xf32>, vector<544x96xf32>, vector<32x96xf32> -> vector<32x96xf32>
    %143 = arith.addf %138, %142 : vector<32x96xf32>
    %c2_146 = arith.constant 2 : index
    %c0_147 = arith.constant 0 : index
    %144 = vector.load %arg11[%c2_146, %c0_147] : memref<34x544xf32, #tpu.memory_space<vmem>>, vector<32x544xf32>
    %c2_148 = arith.constant 2 : index
    %c0_149 = arith.constant 0 : index
    %c0_150 = arith.constant 0 : index
    %145 = vector.load %arg6[%c2_148, %c0_149, %c0_150] : memref<3x544x96xf32, #tpu.memory_space<vmem>>, vector<1x544x96xf32>
    %146 = vector.shape_cast %145 : vector<1x544x96xf32> to vector<544x96xf32>
    %cst_151 = arith.constant dense<0.000000e+00> : vector<32x96xf32>
    %147 = tpu.matmul %144, %146, %cst_151 {dimension_numbers = #tpu.dot_dimension_numbers<[1], [0], [0], [1], [0, 0, 1, 1], [], []>} : vector<32x544xf32>, vector<544x96xf32>, vector<32x96xf32> -> vector<32x96xf32>
    %148 = arith.addf %143, %147 : vector<32x96xf32>
    %c0_152 = arith.constant 0 : index
    %c0_153 = arith.constant 0 : index
    %149 = vector.load %arg7[%c0_152, %c0_153] : memref<1x96xf32, #tpu.memory_space<vmem>>, vector<1x96xf32>
    %150 = vector.broadcast %149 : vector<1x96xf32> to vector<32x96xf32>
    %151 = arith.addf %148, %150 : vector<32x96xf32>
    %cst_154 = arith.constant 0.000000e+00 : f32
    %152 = vector.broadcast %cst_154 : f32 to vector<32x96xf32>
    %153 = arith.maximumf %151, %152 : vector<32x96xf32>
    %154 = vector.extract_strided_slice %153 {offsets = [0, 0], sizes = [32, 32], strides = [1, 1]} : vector<32x96xf32> to vector<32x32xf32>
    %c0_155 = arith.constant 0 : index
    %c0_156 = arith.constant 0 : index
    %c0_157 = arith.constant 0 : index
    %c0_158 = arith.constant 0 : index
    %155 = vector.load %arg8[%c0_155, %c0_156, %c0_157, %c0_158] : memref<1x3x32x32xf32, #tpu.memory_space<vmem>>, vector<1x1x32x32xf32>
    %156 = vector.shape_cast %155 : vector<1x1x32x32xf32> to vector<32x32xf32>
    %157 = vector.shape_cast %154 : vector<32x32xf32> to vector<1x1x32x32xf32>
    tpu.vector_store %arg8[%c0_155, %c0_156, %c0_157, %c0_158], %157 {strides = array<i32>} : memref<1x3x32x32xf32, #tpu.memory_space<vmem>>, vector<1x1x32x32xf32>,
    %158 = vector.extract_strided_slice %153 {offsets = [0, 32], sizes = [32, 32], strides = [1, 1]} : vector<32x96xf32> to vector<32x32xf32>
    %c0_159 = arith.constant 0 : index
    %c1_160 = arith.constant 1 : index
    %c0_161 = arith.constant 0 : index
    %c0_162 = arith.constant 0 : index
    %159 = vector.load %arg8[%c0_159, %c1_160, %c0_161, %c0_162] : memref<1x3x32x32xf32, #tpu.memory_space<vmem>>, vector<1x1x32x32xf32>
    %160 = vector.shape_cast %159 : vector<1x1x32x32xf32> to vector<32x32xf32>
    %161 = vector.shape_cast %158 : vector<32x32xf32> to vector<1x1x32x32xf32>
    tpu.vector_store %arg8[%c0_159, %c1_160, %c0_161, %c0_162], %161 {strides = array<i32>} : memref<1x3x32x32xf32, #tpu.memory_space<vmem>>, vector<1x1x32x32xf32>,
    %162 = vector.extract_strided_slice %153 {offsets = [0, 64], sizes = [32, 32], strides = [1, 1]} : vector<32x96xf32> to vector<32x32xf32>
    %c0_163 = arith.constant 0 : index
    %c2_164 = arith.constant 2 : index
    %c0_165 = arith.constant 0 : index
    %c0_166 = arith.constant 0 : index
    %163 = vector.load %arg8[%c0_163, %c2_164, %c0_165, %c0_166] : memref<1x3x32x32xf32, #tpu.memory_space<vmem>>, vector<1x1x32x32xf32>
    %164 = vector.shape_cast %163 : vector<1x1x32x32xf32> to vector<32x32xf32>
    %165 = vector.shape_cast %162 : vector<32x32xf32> to vector<1x1x32x32xf32>
    tpu.vector_store %arg8[%c0_163, %c2_164, %c0_165, %c0_166], %165 {strides = array<i32>} : memref<1x3x32x32xf32, #tpu.memory_space<vmem>>, vector<1x1x32x32xf32>,
    return
  }
  func.func @transform_0(%arg0: i32) -> (i32, i32, i32, i32) {
    %c0_i32 = arith.constant 0 : i32
    %c0_i32_0 = arith.constant 0 : i32
    %c0_i32_1 = arith.constant 0 : i32
    %c0_i32_2 = arith.constant 0 : i32
    return %arg0, %c0_i32, %c0_i32_0, %c0_i32_1 : i32, i32, i32, i32
  }
  func.func @transform_1(%arg0: i32) -> (i32, i32, i32) {
    %c0_i32 = arith.constant 0 : i32
    %c0_i32_0 = arith.constant 0 : i32
    %c0_i32_1 = arith.constant 0 : i32
    %c0_i32_2 = arith.constant 0 : i32
    return %c0_i32, %c0_i32_0, %c0_i32_1 : i32, i32, i32
  }
  func.func @transform_2(%arg0: i32) -> (i32, i32) {
    %c0_i32 = arith.constant 0 : i32
    %c0_i32_0 = arith.constant 0 : i32
    %c0_i32_1 = arith.constant 0 : i32
    return %c0_i32, %c0_i32_0 : i32, i32
  }
  func.func @transform_3(%arg0: i32) -> (i32, i32, i32) {
    %c0_i32 = arith.constant 0 : i32
    %c0_i32_0 = arith.constant 0 : i32
    %c0_i32_1 = arith.constant 0 : i32
    %c0_i32_2 = arith.constant 0 : i32
    return %c0_i32, %c0_i32_0, %c0_i32_1 : i32, i32, i32
  }
  func.func @transform_4(%arg0: i32) -> (i32, i32) {
    %c0_i32 = arith.constant 0 : i32
    %c0_i32_0 = arith.constant 0 : i32
    %c0_i32_1 = arith.constant 0 : i32
    return %c0_i32, %c0_i32_0 : i32, i32
  }
  func.func @transform_5(%arg0: i32) -> (i32, i32, i32) {
    %c0_i32 = arith.constant 0 : i32
    %c0_i32_0 = arith.constant 0 : i32
    %c0_i32_1 = arith.constant 0 : i32
    %c0_i32_2 = arith.constant 0 : i32
    return %c0_i32, %c0_i32_0, %c0_i32_1 : i32, i32, i32
  }
  func.func @transform_6(%arg0: i32) -> (i32, i32) {
    %c0_i32 = arith.constant 0 : i32
    %c0_i32_0 = arith.constant 0 : i32
    %c0_i32_1 = arith.constant 0 : i32
    return %c0_i32, %c0_i32_0 : i32, i32
  }
  func.func @transform_7(%arg0: i32) -> (i32, i32, i32, i32) {
    %c0_i32 = arith.constant 0 : i32
    %c0_i32_0 = arith.constant 0 : i32
    %c0_i32_1 = arith.constant 0 : i32
    %c0_i32_2 = arith.constant 0 : i32
    return %arg0, %c0_i32, %c0_i32_0, %c0_i32_1 : i32, i32, i32, i32
  }
}

</mosaic_0001>

<llo_original>
// kernel: tile.13
$region0: #{tile.13}
  #allocation0 [shape = 's32[1]{0}', space=sflag, size = 0x4, scoped, tag = 'scoped memory for tile.13']
  %s0 = inlined_call_operand.vmem [shape: f32[16], index: 0, kind: input, shape index: {}]
  %s1 = inlined_call_operand.vmem [shape: f32[16,16], index: 1, kind: output, shape index: {}]
  // Predicated region
  $region2: #{tile.13} parent=0 // pred_check
    _
  $region3: #{tile.13} parent=0 // pred_check_branch
    %3 = sbr.rel (0) target = $region5
  $region4: #{tile.13} parent=0 // pred_region
    _
  $region5: #{tile.13} parent=0 // pred_fallthru
    _
  %v4 = vld [vmem:[%s0] ss:$0 sm:$0xff]
  %5 = vst [vmem:[%s1] sm:$0xff] %v4
  %s6 = scalar_lea.vmem %s1, 8
  %7 = vst [vmem:[%s6] sm:$0xff] %v4

// kernel: tile.14
$region0: #{tile.14}
  %s0 = inlined_call_operand.vmem [shape: f32[16,16], index: 0, kind: input, shape index: {}]
  %s1 = inlined_call_operand.vmem [shape: f32[1,256], index: 1, kind: output, shape index: {}]
  $region1: #{tile.14} parent=0
    #allocation0 [shape = 'u8[8192]{0}', space=vmem, size = 0x2000, scoped, tag = 'scoped mem for output reshape']
    %s2 = smov 3
    %v3 = vld [vmem:[%s0] ss:$8 sm:%s2]
    %vm4 = vcmask 130048
    %5 = vst.msk [vmem:[#allocation0] ss:$8 sm:$0x3] %vm4, %v3
    %s6 = scalar_lea.vmem %s0, 7
    %s7 = smov 3
    %v8 = vld [vmem:[%s6] ss:$8 sm:%s7]
    %9 = vrot.lane.b32.xlu0 %v8, 112
    %v10 = vpop.permute.xlu0 %9
    %vm11 = vcmask 1048448
    %12 = vst.msk [vmem:[#allocation0] ss:$8 sm:$0x3] %vm11, %v10
    %s13 = scalar_lea.vmem %s0, 6
    %s14 = smov 3
    %v15 = vld [vmem:[%s13] ss:$8 sm:%s14]
    %16 = vrot.lane.b32.xlu0 %v15, 96
    %v17 = vpop.permute.xlu0 %16
    %vm18 = vcmask 917248
    %19 = vst.msk [vmem:[#allocation0] ss:$8 sm:$0x3] %vm18, %v17
    %s20 = scalar_lea.vmem %s0, 5
    %s21 = smov 3
    %v22 = vld [vmem:[%s20] ss:$8 sm:%s21]
    %23 = vrot.lane.b32.xlu0 %v22, 80
    %v24 = vpop.permute.xlu0 %23
    %vm25 = vcmask 786048
    %26 = vst.msk [vmem:[#allocation0] ss:$8 sm:$0x3] %vm25, %v24
    %s27 = scalar_lea.vmem %s0, 4
    %s28 = smov 3
    %v29 = vld [vmem:[%s27] ss:$8 sm:%s28]
    %30 = vrot.lane.b32.xlu0 %v29, 64
    %v31 = vpop.permute.xlu0 %30
    %vm32 = vcmask 654848
    %33 = vst.msk [vmem:[#allocation0] ss:$8 sm:$0x3] %vm32, %v31
    %s34 = scalar_lea.vmem %s0, 3
    %s35 = smov 3
    %v36 = vld [vmem:[%s34] ss:$8 sm:%s35]
    %37 = vrot.lane.b32.xlu0 %v36, 48
    %v38 = vpop.permute.xlu0 %37
    %vm39 = vcmask 523648
    %40 = vst.msk [vmem:[#allocation0] ss:$8 sm:$0x3] %vm39, %v38
    %s41 = scalar_lea.vmem %s0, 2
    %s42 = smov 3
    %v43 = vld [vmem:[%s41] ss:$8 sm:%s42]
    %44 = vrot.lane.b32.xlu0 %v43, 32
    %v45 = vpop.permute.xlu0 %44
    %vm46 = vcmask 392448
    %47 = vst.msk [vmem:[#allocation0] ss:$8 sm:$0x3] %vm46, %v45
    %s48 = scalar_lea.vmem %s0, 1
    %s49 = smov 3
    %v50 = vld [vmem:[%s48] ss:$8 sm:%s49]
    %51 = vrot.lane.b32.xlu0 %v50, 16
    %v52 = vpop.permute.xlu0 %51
    %vm53 = vcmask 261248
    %54 = vst.msk [vmem:[#allocation0] ss:$8 sm:$0x3] %vm53, %v52
    %s56 = sshllo.u32 0, 1
    %v58 = vld [vmem:[#allocation0] sm:%s56]
    %s59 = sshllo.u32 0, 1
    %60 = vst [vmem:[%s1] sm:%s59] %v58
    %s61 = scalar_lea.vmem [#allocation0], 8
    %v62 = vld [vmem:[%s61] sm:%s56]
    %s63 = sshllo.u32 0, 1
    %s64 = scalar_lea.vmem %s1, 1
    %65 = vst [vmem:[%s64] sm:%s63] %v62

// kernel: tile.18
$region0: #{tile.18}
  #allocation0 [shape = 's32[1]{0}', space=sflag, size = 0x4, scoped, tag = 'scoped memory for tile.18']
  %s0 = inlined_call_operand.vmem [shape: f32[16], index: 0, kind: input, shape index: {}]
  %s1 = inlined_call_operand.vmem [shape: f32[32,16], index: 1, kind: output, shape index: {}]
  // Predicated region
  $region2: #{tile.18} parent=0 // pred_check
    _
  $region3: #{tile.18} parent=0 // pred_check_branch
    %3 = sbr.rel (0) target = $region5
  $region4: #{tile.18} parent=0 // pred_region
    _
  $region5: #{tile.18} parent=0 // pred_fallthru
    _
  %v4 = vld [vmem:[%s0] ss:$0 sm:$0xff]
  %5 = vst [vmem:[%s1] sm:$0xff] %v4
  %s6 = scalar_lea.vmem %s1, 8
  %7 = vst [vmem:[%s6] sm:$0xff] %v4
  %s8 = scalar_lea.vmem %s1, 16
  %9 = vst [vmem:[%s8] sm:$0xff] %v4
  %s10 = scalar_lea.vmem %s1, 24
  %11 = vst [vmem:[%s10] sm:$0xff] %v4

// kernel: tile.19
$region0: #{tile.19}
  %s0 = inlined_call_operand.vmem [shape: f32[32,16], index: 0, kind: input, shape index: {}]
  %s1 = inlined_call_operand.vmem [shape: f32[1,512], index: 1, kind: output, shape index: {}]
  $region1: #{tile.19} parent=0
    #allocation0 [shape = 'u8[16384]{0}', space=vmem, size = 0x4000, scoped, tag = 'scoped mem for output reshape']
    %v2 = vld [vmem:[%s0] ss:$8 sm:$0xf]
    %vm3 = vcmask 130048
    %4 = vst.msk [vmem:[#allocation0] ss:$8 sm:$0xf] %vm3, %v2
    %s5 = scalar_lea.vmem %s0, 7
    %v6 = vld [vmem:[%s5] ss:$8 sm:$0xf]
    %7 = vrot.lane.b32.xlu0 %v6, 112
    %v8 = vpop.permute.xlu0 %7
    %vm9 = vcmask 1048448
    %10 = vst.msk [vmem:[#allocation0] ss:$8 sm:$0xf] %vm9, %v8
    %s11 = scalar_lea.vmem %s0, 6
    %v12 = vld [vmem:[%s11] ss:$8 sm:$0xf]
    %13 = vrot.lane.b32.xlu0 %v12, 96
    %v14 = vpop.permute.xlu0 %13
    %vm15 = vcmask 917248
    %16 = vst.msk [vmem:[#allocation0] ss:$8 sm:$0xf] %vm15, %v14
    %s17 = scalar_lea.vmem %s0, 5
    %v18 = vld [vmem:[%s17] ss:$8 sm:$0xf]
    %19 = vrot.lane.b32.xlu0 %v18, 80
    %v20 = vpop.permute.xlu0 %19
    %vm21 = vcmask 786048
    %22 = vst.msk [vmem:[#allocation0] ss:$8 sm:$0xf] %vm21, %v20
    %s23 = scalar_lea.vmem %s0, 4
    %v24 = vld [vmem:[%s23] ss:$8 sm:$0xf]
    %25 = vrot.lane.b32.xlu0 %v24, 64
    %v26 = vpop.permute.xlu0 %25
    %vm27 = vcmask 654848
    %28 = vst.msk [vmem:[#allocation0] ss:$8 sm:$0xf] %vm27, %v26
    %s29 = scalar_lea.vmem %s0, 3
    %v30 = vld [vmem:[%s29] ss:$8 sm:$0xf]
    %31 = vrot.lane.b32.xlu0 %v30, 48
    %v32 = vpop.permute.xlu0 %31
    %vm33 = vcmask 523648
    %34 = vst.msk [vmem:[#allocation0] ss:$8 sm:$0xf] %vm33, %v32
    %s35 = scalar_lea.vmem %s0, 2
    %v36 = vld [vmem:[%s35] ss:$8 sm:$0xf]
    %37 = vrot.lane.b32.xlu0 %v36, 32
    %v38 = vpop.permute.xlu0 %37
    %vm39 = vcmask 392448
    %40 = vst.msk [vmem:[#allocation0] ss:$8 sm:$0xf] %vm39, %v38
    %s41 = scalar_lea.vmem %s0, 1
    %v42 = vld [vmem:[%s41] ss:$8 sm:$0xf]
    %43 = vrot.lane.b32.xlu0 %v42, 16
    %v44 = vpop.permute.xlu0 %43
    %vm45 = vcmask 261248
    %46 = vst.msk [vmem:[#allocation0] ss:$8 sm:$0xf] %vm45, %v44
    %s48 = sshllo.u32 0, 1
    %v50 = vld [vmem:[#allocation0] sm:%s48]
    %s51 = sshllo.u32 0, 1
    %52 = vst [vmem:[%s1] sm:%s51] %v50
    %s53 = scalar_lea.vmem [#allocation0], 8
    %v54 = vld [vmem:[%s53] sm:%s48]
    %s55 = sshllo.u32 0, 1
    %s56 = scalar_lea.vmem %s1, 1
    %57 = vst [vmem:[%s56] sm:%s55] %v54
    %s58 = scalar_lea.vmem [#allocation0], 16
    %v59 = vld [vmem:[%s58] sm:%s48]
    %s60 = sshllo.u32 0, 1
    %s61 = smul.addr 1, 2
    %s62 = scalar_lea.vmem %s1, %s61
    %63 = vst [vmem:[%s62] sm:%s60] %v59
    %s64 = scalar_lea.vmem [#allocation0], 24
    %v65 = vld [vmem:[%s64] sm:%s48]
    %s66 = sshllo.u32 0, 1
    %s67 = smul.addr 1, 3
    %s68 = scalar_lea.vmem %s1, %s67
    %69 = vst [vmem:[%s68] sm:%s66] %v65

// kernel: decoder_forward.1
$region0: #{decoder_forward.1}
  #allocation0 [shape = 'u32[]', space=smem, size = 0x4, offset = 0x4, fixed_abs, tag = 'smem constant byte address 0x4 - core index']
  #allocation1 [shape = 'u32[144,128]{1,0:T(1,128)}', space=vmem, size = 0x12000, scoped, tag = 'internal scratch']
  #allocation2 [shape = 'f32[12,12]{1,0:T(8,128)}', space=vmem, size = 0x2000, scoped, tag = 'scratch operand']
  #allocation3 [shape = 'f32[18,288]{1,0:T(8,128)}', space=vmem, size = 0x9000, scoped, tag = 'scratch operand']
  #allocation4 [shape = 'f32[34,544]{1,0:T(8,128)}', space=vmem, size = 0x19000, scoped, tag = 'scratch operand']
  %s0 = inlined_call_operand.vmem [shape: f32[2,1,8,8], index: 0, kind: input, shape index: {}]
  %s1 = inlined_call_operand.vmem [shape: f32[5,12,256], index: 1, kind: input, shape index: {}]
  %s2 = inlined_call_operand.vmem [shape: f32[1,256], index: 2, kind: input, shape index: {}]
  %s3 = inlined_call_operand.vmem [shape: f32[3,288,512], index: 3, kind: input, shape index: {}]
  %s4 = inlined_call_operand.vmem [shape: f32[1,512], index: 4, kind: input, shape index: {}]
  %s5 = inlined_call_operand.vmem [shape: f32[3,544,96], index: 5, kind: input, shape index: {}]
  %s6 = inlined_call_operand.vmem [shape: f32[1,96], index: 6, kind: input, shape index: {}]
  %s7 = inlined_call_operand.hbm [shape: f32[2,3,32,32], index: 7, kind: output, shape index: {}]
  %s8 = sld [smem:[#allocation0]]
  $region61: #{decoder_forward.1} parent=0
    _
  %s10 = ssub.s32 1, %s8
  %s11 = scalar_select 0, %s10, %s8
  $region1: #{decoder_forward.1} parent=0
    #allocation5 [shape = 'u8[98304]{0}', space=vmem, size = 0x18000, scoped, tag = 'output window, operand 0']
    #allocation6 [shape = 's32[2]{0}', space=sflag, size = 0x8, scoped, tag = 'scoped memory for decoder_forward.1']
    %12 = vsyncpa [#allocation6], 0
    %s13 = scalar_lea.sflag [#allocation6], 1
    %14 = vsyncpa %s13, 0
    loop: start=0, step=1, limit=4
    $region2: #{decoder_forward.1} parent=1 // loop_pre_header
      _
    $region3: #{decoder_forward.1} parent=1 // loop_header
      %s16 = sphi 0, %s20
      %p17 = scmp.ge.s32.totalorder %s16, 4
      %s26 = sphi 0, %s28
      %s29 = sphi 0, %s26
      %s30 = sphi 0, %s29
      %s46 = sphi 0, %s30
      %s50 = sphi 0, %s50
      %s52 = sphi 0, %s50
      %s53 = sphi 0, %s52
      %s67 = sphi 0, %s53
      %s71 = sphi 0, %s71
      %s73 = sphi 0, %s71
      %s74 = sphi 0, %s73
      %s88 = sphi 0, %s74
      %s92 = sphi 0, %s92
      %s94 = sphi 0, %s92
      %s95 = sphi 0, %s94
      %s109 = sphi 0, %s95
      %s113 = sphi 0, %s113
      %s115 = sphi 0, %s113
      %s116 = sphi 0, %s115
      %s130 = sphi 0, %s116
      %s134 = sphi 0, %s134
      %s136 = sphi 0, %s134
      %s137 = sphi 0, %s136
      %s151 = sphi 0, %s137
      %s155 = sphi 0, %s155
      %s157 = sphi 0, %s155
      %s158 = sphi 0, %s157
      %s172 = sphi 0, %s158
      %s178 = sphi 0, %s180
      %s181 = sphi 0, %s178
      %s182 = sphi 0, %s181
      %s198 = sphi 0, %s182
    $region4: #{decoder_forward.1} parent=1 // loop_header_branch
      %19 = sbr.rel (%p17) target = $region8
    $region5: #{decoder_forward.1} parent=1 // loop_body
      %s21 = ssub.s32 %s16, 1
      %s22 = ssub.s32 %s16, 2
      %s23 = sadd.s32 %s16, 1
      %s24 = ssub.s32 %s16, %s23
      %p25 = scmp.eq.s32.totalorder %s24, 0
      %s27 = sadd.s32 %s26, 1
      %s28 = scalar_select %p25, %s26, %s27
      %p31 = pneg %p25
      %p32 = scmp.eq.s32.totalorder %s16, 1
      %p33 = por %p31, %p32
      %p34 = scmp.ne.s32.totalorder %s26, %s29
      %p35 = scmp.eq.s32.totalorder %s16, 0
      %p36 = por %p34, %p35
      %p37 = scmp.ne.s32.totalorder %s26, %s29
      %p38 = scmp.eq.s32.totalorder %s21, 1
      %p39 = por %p37, %p38
      %p40 = scmp.ne.s32.totalorder %s29, %s30
      %p41 = scmp.eq.s32.totalorder %s21, 0
      %p42 = por %p40, %p41
      %p43 = scmp.ne.s32.totalorder %s29, %s30
      %p44 = scmp.eq.s32.totalorder %s22, 1
      %p45 = por %p43, %p44
      %p47 = scmp.ne.s32.totalorder %s30, %s46
      %p48 = scmp.eq.s32.totalorder %s22, 0
      %p49 = por %p47, %p48
      %s51 = sadd.s32 %s50, 1
      %p54 = scmp.eq.s32.totalorder %s16, 1
      %p55 = scmp.ne.s32.totalorder %s50, %s52
      %p56 = scmp.eq.s32.totalorder %s16, 0
      %p57 = por %p55, %p56
      %p58 = scmp.ne.s32.totalorder %s50, %s52
      %p59 = scmp.eq.s32.totalorder %s21, 1
      %p60 = por %p58, %p59
      %p61 = scmp.ne.s32.totalorder %s52, %s53
      %p62 = scmp.eq.s32.totalorder %s21, 0
      %p63 = por %p61, %p62
      %p64 = scmp.ne.s32.totalorder %s52, %s53
      %p65 = scmp.eq.s32.totalorder %s22, 1
      %p66 = por %p64, %p65
      %p68 = scmp.ne.s32.totalorder %s53, %s67
      %p69 = scmp.eq.s32.totalorder %s22, 0
      %p70 = por %p68, %p69
      %s72 = sadd.s32 %s71, 1
      %p75 = scmp.eq.s32.totalorder %s16, 1
      %p76 = scmp.ne.s32.totalorder %s71, %s73
      %p77 = scmp.eq.s32.totalorder %s16, 0
      %p78 = por %p76, %p77
      %p79 = scmp.ne.s32.totalorder %s71, %s73
      %p80 = scmp.eq.s32.totalorder %s21, 1
      %p81 = por %p79, %p80
      %p82 = scmp.ne.s32.totalorder %s73, %s74
      %p83 = scmp.eq.s32.totalorder %s21, 0
      %p84 = por %p82, %p83
      %p85 = scmp.ne.s32.totalorder %s73, %s74
      %p86 = scmp.eq.s32.totalorder %s22, 1
      %p87 = por %p85, %p86
      %p89 = scmp.ne.s32.totalorder %s74, %s88
      %p90 = scmp.eq.s32.totalorder %s22, 0
      %p91 = por %p89, %p90
      %s93 = sadd.s32 %s92, 1
      %p96 = scmp.eq.s32.totalorder %s16, 1
      %p97 = scmp.ne.s32.totalorder %s92, %s94
      %p98 = scmp.eq.s32.totalorder %s16, 0
      %p99 = por %p97, %p98
      %p100 = scmp.ne.s32.totalorder %s92, %s94
      %p101 = scmp.eq.s32.totalorder %s21, 1
      %p102 = por %p100, %p101
      %p103 = scmp.ne.s32.totalorder %s94, %s95
      %p104 = scmp.eq.s32.totalorder %s21, 0
      %p105 = por %p103, %p104
      %p106 = scmp.ne.s32.totalorder %s94, %s95
      %p107 = scmp.eq.s32.totalorder %s22, 1
      %p108 = por %p106, %p107
      %p110 = scmp.ne.s32.totalorder %s95, %s109
      %p111 = scmp.eq.s32.totalorder %s22, 0
      %p112 = por %p110, %p111
      %s114 = sadd.s32 %s113, 1
      %p117 = scmp.eq.s32.totalorder %s16, 1
      %p118 = scmp.ne.s32.totalorder %s113, %s115
      %p119 = scmp.eq.s32.totalorder %s16, 0
      %p120 = por %p118, %p119
      %p121 = scmp.ne.s32.totalorder %s113, %s115
      %p122 = scmp.eq.s32.totalorder %s21, 1
      %p123 = por %p121, %p122
      %p124 = scmp.ne.s32.totalorder %s115, %s116
      %p125 = scmp.eq.s32.totalorder %s21, 0
      %p126 = por %p124, %p125
      %p127 = scmp.ne.s32.totalorder %s115, %s116
      %p128 = scmp.eq.s32.totalorder %s22, 1
      %p129 = por %p127, %p128
      %p131 = scmp.ne.s32.totalorder %s116, %s130
      %p132 = scmp.eq.s32.totalorder %s22, 0
      %p133 = por %p131, %p132
      %s135 = sadd.s32 %s134, 1
      %p138 = scmp.eq.s32.totalorder %s16, 1
      %p139 = scmp.ne.s32.totalorder %s134, %s136
      %p140 = scmp.eq.s32.totalorder %s16, 0
      %p141 = por %p139, %p140
      %p142 = scmp.ne.s32.totalorder %s134, %s136
      %p143 = scmp.eq.s32.totalorder %s21, 1
      %p144 = por %p142, %p143
      %p145 = scmp.ne.s32.totalorder %s136, %s137
      %p146 = scmp.eq.s32.totalorder %s21, 0
      %p147 = por %p145, %p146
      %p148 = scmp.ne.s32.totalorder %s136, %s137
      %p149 = scmp.eq.s32.totalorder %s22, 1
      %p150 = por %p148, %p149
      %p152 = scmp.ne.s32.totalorder %s137, %s151
      %p153 = scmp.eq.s32.totalorder %s22, 0
      %p154 = por %p152, %p153
      %s156 = sadd.s32 %s155, 1
      %p159 = scmp.eq.s32.totalorder %s16, 1
      %p160 = scmp.ne.s32.totalorder %s155, %s157
      %p161 = scmp.eq.s32.totalorder %s16, 0
      %p162 = por %p160, %p161
      %p163 = scmp.ne.s32.totalorder %s155, %s157
      %p164 = scmp.eq.s32.totalorder %s21, 1
      %p165 = por %p163, %p164
      %p166 = scmp.ne.s32.totalorder %s157, %s158
      %p167 = scmp.eq.s32.totalorder %s21, 0
      %p168 = por %p166, %p167
      %p169 = scmp.ne.s32.totalorder %s157, %s158
      %p170 = scmp.eq.s32.totalorder %s22, 1
      %p171 = por %p169, %p170
      %p173 = scmp.ne.s32.totalorder %s158, %s172
      %p174 = scmp.eq.s32.totalorder %s22, 0
      %p175 = por %p173, %p174
      %s176 = ssub.s32 %s16, %s23
      %p177 = scmp.eq.s32.totalorder %s176, 0
      %s179 = sadd.s32 %s178, 1
      %s180 = scalar_select %p177, %s178, %s179
      %p183 = pneg %p177
      %p184 = scmp.eq.s32.totalorder %s16, 1
      %p185 = por %p183, %p184
      %p186 = scmp.ne.s32.totalorder %s178, %s181
      %p187 = scmp.eq.s32.totalorder %s16, 0
      %p188 = por %p186, %p187
      %p189 = scmp.ne.s32.totalorder %s178, %s181
      %p190 = scmp.eq.s32.totalorder %s21, 1
      %p191 = por %p189, %p190
      %p192 = scmp.ne.s32.totalorder %s181, %s182
      %p193 = scmp.eq.s32.totalorder %s21, 0
      %p194 = por %p192, %p193
      %p195 = scmp.ne.s32.totalorder %s181, %s182
      %p196 = scmp.eq.s32.totalorder %s22, 1
      %p197 = por %p195, %p196
      %p199 = scmp.ne.s32.totalorder %s182, %s198
      %p200 = scmp.eq.s32.totalorder %s22, 0
      %p201 = por %p199, %p200
      %p202 = scmp.le.s32.totalorder 1, %s16
      %p203 = scmp.lt.s32.totalorder %s16, 3
      %p204 = pnand %p202, %p203
      %p205 = pneg %p204
      // Predicated region
      $region9: #{decoder_forward.1} parent=5 // pred_check
        _
      $region10: #{decoder_forward.1} parent=5 // pred_check_branch
        %207 = sbr.rel (%p204) target = $region12
      $region11: #{decoder_forward.1} parent=5 // pred_region
        %s208 = ssub.s32 %s16, 1
        // Predicated region
        $region13: #{decoder_forward.1} parent=11 // pred_check
          %p209 = pneg %p63
        $region14: #{decoder_forward.1} parent=11 // pred_check_branch
          %211 = sbr.rel (%p209) target = $region16
        $region15: #{decoder_forward.1} parent=11 // pred_region
          _
        $region16: #{decoder_forward.1} parent=11 // pred_fallthru
          _
        // Predicated region
        $region17: #{decoder_forward.1} parent=11 // pred_check
          %p212 = pneg %p84
        $region18: #{decoder_forward.1} parent=11 // pred_check_branch
          %214 = sbr.rel (%p212) target = $region20
        $region19: #{decoder_forward.1} parent=11 // pred_region
          _
        $region20: #{decoder_forward.1} parent=11 // pred_fallthru
          _
        // Predicated region
        $region21: #{decoder_forward.1} parent=11 // pred_check
          %p215 = pneg %p105
        $region22: #{decoder_forward.1} parent=11 // pred_check_branch
          %217 = sbr.rel (%p215) target = $region24
        $region23: #{decoder_forward.1} parent=11 // pred_region
          _
        $region24: #{decoder_forward.1} parent=11 // pred_fallthru
          _
        // Predicated region
        $region25: #{decoder_forward.1} parent=11 // pred_check
          %p218 = pneg %p126
        $region26: #{decoder_forward.1} parent=11 // pred_check_branch
          %220 = sbr.rel (%p218) target = $region28
        $region27: #{decoder_forward.1} parent=11 // pred_region
          _
        $region28: #{decoder_forward.1} parent=11 // pred_fallthru
          _
        // Predicated region
        $region29: #{decoder_forward.1} parent=11 // pred_check
          %p221 = pneg %p147
        $region30: #{decoder_forward.1} parent=11 // pred_check_branch
          %223 = sbr.rel (%p221) target = $region32
        $region31: #{decoder_forward.1} parent=11 // pred_region
          _
        $region32: #{decoder_forward.1} parent=11 // pred_fallthru
          _
        // Predicated region
        $region33: #{decoder_forward.1} parent=11 // pred_check
          %p224 = pneg %p168
        $region34: #{decoder_forward.1} parent=11 // pred_check_branch
          %226 = sbr.rel (%p224) target = $region36
        $region35: #{decoder_forward.1} parent=11 // pred_region
          _
        $region36: #{decoder_forward.1} parent=11 // pred_fallthru
          _
      $region12: #{decoder_forward.1} parent=5 // pred_fallthru
        _
      %p227 = scmp.lt.s32.totalorder %s16, 2
      // Predicated region
      $region37: #{decoder_forward.1} parent=5 // pred_check
        %p228 = pneg %p227
      $region38: #{decoder_forward.1} parent=5 // pred_check_branch
        %230 = sbr.rel (%p228) target = $region40
      $region39: #{decoder_forward.1} parent=5 // pred_region
        // Predicated region
        $region41: #{decoder_forward.1} parent=39 // pred_check
          %p231 = pneg %p36
        $region42: #{decoder_forward.1} parent=39 // pred_check_branch
          %233 = sbr.rel (%p231) target = $region44
        $region43: #{decoder_forward.1} parent=39 // pred_region
          %p234 = scmp.lt.s32.totalorder %s16, 1
          %s235 = scalar_select %p234, %s16, 1
          %s236 = smul.addr %s235, 8
          %s237 = scalar_lea.vmem %s0, %s236
        $region44: #{decoder_forward.1} parent=39 // pred_fallthru
          _
      $region40: #{decoder_forward.1} parent=5 // pred_fallthru
        _
      %p238 = scmp.le.s32.totalorder 1, %s16
      %p239 = scmp.lt.s32.totalorder %s16, 3
      %p240 = pnand %p238, %p239
      %p241 = pneg %p240
      // Predicated region
      $region45: #{decoder_forward.1} parent=5 // pred_check
        _
      $region46: #{decoder_forward.1} parent=5 // pred_check_branch
        %243 = sbr.rel (%p240) target = $region48
      $region47: #{decoder_forward.1} parent=5 // pred_region
        %s244 = ssub.s32 %s16, 1
        %p245 = scmp.lt.s32.totalorder %s21, 1
        %s246 = scalar_select %p245, %s21, 1
        %s247 = smul.addr %s246, 8
        %s248 = scalar_lea.vmem %s0, %s247
        %p249 = pneg %p42
        %p250 = pneg %p39
        %p251 = pneg %p63
        %p252 = pneg %p60
        %p253 = pneg %p84
        %p254 = pneg %p81
        %p255 = pneg %p105
        %p256 = pneg %p102
        %p257 = pneg %p126
        %p258 = pneg %p123
        %p259 = pneg %p147
        %p260 = pneg %p144
        %p261 = pneg %p168
        %p262 = pneg %p165
        %p263 = pneg %p194
        %p264 = pneg %p191
        %s265 = sand.u32 %s181, 1
        %s266 = scalar_lea.sflag [#allocation6], %s265
        %s267 = sand.u32 %s181, 1
        %s268 = smul.addr %s267, 96
        %s269 = scalar_lea.vmem [#allocation5], %s268
        %p270 = scmp.lt.s32.totalorder %s21, 1
        %s271 = scalar_select %p270, %s21, 1
        %s272 = smul.addr %s271, 8
        %s273 = scalar_lea.vmem %s0, %s272
        %vm274 = vcmask 97280
        %275 = vst.msk [vmem:[#allocation2] sm:$0xff] %vm274, 0.0
        %vm276 = vcmask 93184
        %277 = vst.msk [vmem:[#allocation2 + $0x8] sm:$0xf] %vm276, 0.0
        %v278 = vld [vmem:[%s273] sm:$0xff]
        %280 = vrot.lane.b32.xlu0 %v278, 2
        %v281 = vpop.permute.xlu0 %280
        %vm283 = vcmask 80912
        %284 = vst.msk [vmem:[#allocation2 + $0x2] sm:$0xff] %vm283, %v281
        %v285 = vld [vmem:[#allocation2] sm:$0xff]
        %v286 = vld [vmem:[%s1] sm:$0xff]
        %v287 = vld [vmem:[%s1 + $0x8] sm:$0xff]
        %v288 = vld [vmem:[%s1 + $0x10] sm:$0xf]
        %v289 = vld [vmem:[%s1 + $0x18] sm:$0xf]
        %v290 = vld [vmem:[#allocation2 + $0x1] sm:$0xff]
        %s291 = scalar_lea.vmem %s1, 32
        %v292 = vld [vmem:[%s291] sm:$0xff]
        %v293 = vld [vmem:[%s291 + $0x8] sm:$0xff]
        %v294 = vld [vmem:[%s291 + $0x10] sm:$0xf]
        %v295 = vld [vmem:[%s291 + $0x18] sm:$0xf]
        %v297 = vsel %vm274, %v290, 0
        %vm299 = vcmask 1043456
        %v301 = vsel %vm299, %v294, 0
        %v304 = vsel %vm299, %v295, 0
        %306 = vmatprep.subr.mxu0 %v293
        %307 = vmatpush1.msra.mxu0 %v292
        %308 = vmatprep.subr.mxu0 %v304
        %309 = vmatpush1.msra.mxu0 %v301
        %310 = vmatprep.subr.mxu0 0.0
        %311 = vmatpush1.msra.mxu0 0.0
        %312 = vmatprep.subr.mxu0 0.0
        %313 = vmatpush1.msra.mxu0 0.0
        %314 = vmatprep.subr.mxu0 0.0
        %315 = vmatpush1.msra.mxu0 0.0
        %316 = vmatprep.subr.mxu0 0.0
        %317 = vmatpush1.msra.mxu0 0.0
        %318 = vmatprep.subr.mxu0 0.0
        %319 = vmatpush1.msra.mxu0 0.0
        %320 = vmatprep.subr.mxu0 0.0
        %321 = vmatpush1.msra.mxu0 0.0
        %322 = vmatprep.subr.mxu0 0.0
        %323 = vmatpush1.msra.mxu0 0.0
        %324 = vmatprep.subr.mxu0 0.0
        %325 = vmatpush1.msra.mxu0 0.0
        %326 = vmatprep.subr.mxu0 0.0
        %327 = vmatpush1.msra.mxu0 0.0
        %328 = vmatprep.subr.mxu0 0.0
        %329 = vmatpush1.msra.mxu0 0.0
        %330 = vmatprep.subr.mxu0 0.0
        %331 = vmatpush1.msra.mxu0 0.0
        %332 = vmatprep.subr.mxu0 0.0
        %333 = vmatpush1.msra.mxu0 0.0
        %334 = vmatprep.subr.mxu0 0.0
        %335 = vmatpush1.msra.mxu0 0.0
        %336 = vmatprep.subr.mxu0 0.0
        %337 = vmatpush1.msra.mxu0 0.0
        %338 = vmatprep.subr.mxu0 0.0
        %339 = vmatpush1.msra.mxu0 0.0
        %340 = vmatprep.subr.mxu0 0.0
        %341 = vmatpush1.msra.mxu0 0.0
        %342 = vmatprep.subr.mxu0 0.0
        %343 = vmatpush1.msra.mxu0 0.0
        %344 = vmatprep.subr.mxu0 0.0
        %345 = vmatpush1.msra.mxu0 0.0
        %346 = vmatprep.subr.mxu0 0.0
        %347 = vmatpush1.msra.mxu0 0.0
        %348 = vmatprep.subr.mxu0 0.0
        %349 = vmatpush1.msra.mxu0 0.0
        %350 = vmatprep.subr.mxu0 0.0
        %351 = vmatpush1.msra.mxu0 0.0
        %352 = vmatprep.subr.mxu0 0.0
        %353 = vmatpush1.msra.mxu0 0.0
        %354 = vmatprep.subr.mxu0 0.0
        %355 = vmatpush1.msra.mxu0 0.0
        %356 = vmatprep.subr.mxu0 0.0
        %357 = vmatpush1.msra.mxu0 0.0
        %358 = vmatprep.subr.mxu0 0.0
        %359 = vmatpush1.msra.mxu0 0.0
        %360 = vmatprep.subr.mxu0 0.0
        %361 = vmatpush1.msra.mxu0 0.0
        %362 = vmatprep.subr.mxu0 0.0
        %363 = vmatpush1.msra.mxu0 0.0
        %364 = vmatprep.subr.mxu0 0.0
        %365 = vmatpush1.msra.mxu0 0.0
        %366 = vmatprep.subr.mxu0 0.0
        %367 = vmatpush1.msra.mxu0 0.0
        %368 = vmatprep.subr.mxu0 0.0
        %369 = vmatpush1.msra.mxu0 0.0
        %370 = vmatprep.mubr.f32.mxu0 0.0
        %371 = vmatmul.mubr.f32.gmra.mrb[0].mxu0 %v297
        %v372 = vpop.f32.mrb[0].mxu0
        %v373 = vadd.f32 0.0, %v372
        %v374 = vpop.f32.mrb[0].mxu0
        %v375 = vadd.f32 0.0, %v374
        %376 = vdwg.mxu0
        %v378 = vsel %vm274, %v285, 0
        %v381 = vsel %vm299, %v288, 0
        %v384 = vsel %vm299, %v289, 0
        %386 = vmatprep.subr.mxu0 %v287
        %387 = vmatpush1.msra.mxu0 %v286
        %388 = vmatprep.subr.mxu0 %v384
        %389 = vmatpush1.msra.mxu0 %v381
        %390 = vmatprep.subr.mxu0 0.0
        %391 = vmatpush1.msra.mxu0 0.0
        %392 = vmatprep.subr.mxu0 0.0
        %393 = vmatpush1.msra.mxu0 0.0
        %394 = vmatprep.subr.mxu0 0.0
        %395 = vmatpush1.msra.mxu0 0.0
        %396 = vmatprep.subr.mxu0 0.0
        %397 = vmatpush1.msra.mxu0 0.0
        %398 = vmatprep.subr.mxu0 0.0
        %399 = vmatpush1.msra.mxu0 0.0
        %400 = vmatprep.subr.mxu0 0.0
        %401 = vmatpush1.msra.mxu0 0.0
        %402 = vmatprep.subr.mxu0 0.0
        %403 = vmatpush1.msra.mxu0 0.0
        %404 = vmatprep.subr.mxu0 0.0
        %405 = vmatpush1.msra.mxu0 0.0
        %406 = vmatprep.subr.mxu0 0.0
        %407 = vmatpush1.msra.mxu0 0.0
        %408 = vmatprep.subr.mxu0 0.0
        %409 = vmatpush1.msra.mxu0 0.0
        %410 = vmatprep.subr.mxu0 0.0
        %411 = vmatpush1.msra.mxu0 0.0
        %412 = vmatprep.subr.mxu0 0.0
        %413 = vmatpush1.msra.mxu0 0.0
        %414 = vmatprep.subr.mxu0 0.0
        %415 = vmatpush1.msra.mxu0 0.0
        %416 = vmatprep.subr.mxu0 0.0
        %417 = vmatpush1.msra.mxu0 0.0
        %418 = vmatprep.subr.mxu0 0.0
        %419 = vmatpush1.msra.mxu0 0.0
        %420 = vmatprep.subr.mxu0 0.0
        %421 = vmatpush1.msra.mxu0 0.0
        %422 = vmatprep.subr.mxu0 0.0
        %423 = vmatpush1.msra.mxu0 0.0
        %424 = vmatprep.subr.mxu0 0.0
        %425 = vmatpush1.msra.mxu0 0.0
        %426 = vmatprep.subr.mxu0 0.0
        %427 = vmatpush1.msra.mxu0 0.0
        %428 = vmatprep.subr.mxu0 0.0
        %429 = vmatpush1.msra.mxu0 0.0
        %430 = vmatprep.subr.mxu0 0.0
        %431 = vmatpush1.msra.mxu0 0.0
        %432 = vmatprep.subr.mxu0 0.0
        %433 = vmatpush1.msra.mxu0 0.0
        %434 = vmatprep.subr.mxu0 0.0
        %435 = vmatpush1.msra.mxu0 0.0
        %436 = vmatprep.subr.mxu0 0.0
        %437 = vmatpush1.msra.mxu0 0.0
        %438 = vmatprep.subr.mxu0 0.0
        %439 = vmatpush1.msra.mxu0 0.0
        %440 = vmatprep.subr.mxu0 0.0
        %441 = vmatpush1.msra.mxu0 0.0
        %442 = vmatprep.subr.mxu0 0.0
        %443 = vmatpush1.msra.mxu0 0.0
        %444 = vmatprep.subr.mxu0 0.0
        %445 = vmatpush1.msra.mxu0 0.0
        %446 = vmatprep.subr.mxu0 0.0
        %447 = vmatpush1.msra.mxu0 0.0
        %448 = vmatprep.subr.mxu0 0.0
        %449 = vmatpush1.msra.mxu0 0.0
        %450 = vmatprep.mubr.f32.mxu0 0.0
        %451 = vmatmul.mubr.f32.gmra.mrb[0].mxu0 %v378
        %v452 = vpop.f32.mrb[0].mxu0
        %v453 = vadd.f32 %v373, %v452
        %v454 = vpop.f32.mrb[0].mxu0
        %v455 = vadd.f32 %v375, %v454
        %456 = vdwg.mxu0
        %v457 = vld [vmem:[#allocation2 + $0x2] sm:$0xff]
        %s458 = scalar_lea.vmem %s1, 64
        %v459 = vld [vmem:[%s458] sm:$0xff]
        %v460 = vld [vmem:[%s458 + $0x8] sm:$0xff]
        %v461 = vld [vmem:[%s458 + $0x10] sm:$0xf]
        %v462 = vld [vmem:[%s458 + $0x18] sm:$0xf]
        %v464 = vsel %vm274, %v457, 0
        %v467 = vsel %vm299, %v461, 0
        %v470 = vsel %vm299, %v462, 0
        %472 = vmatprep.subr.mxu0 %v460
        %473 = vmatpush1.msra.mxu0 %v459
        %474 = vmatprep.subr.mxu0 %v470
        %475 = vmatpush1.msra.mxu0 %v467
        %476 = vmatprep.subr.mxu0 0.0
        %477 = vmatpush1.msra.mxu0 0.0
        %478 = vmatprep.subr.mxu0 0.0
        %479 = vmatpush1.msra.mxu0 0.0
        %480 = vmatprep.subr.mxu0 0.0
        %481 = vmatpush1.msra.mxu0 0.0
        %482 = vmatprep.subr.mxu0 0.0
        %483 = vmatpush1.msra.mxu0 0.0
        %484 = vmatprep.subr.mxu0 0.0
        %485 = vmatpush1.msra.mxu0 0.0
        %486 = vmatprep.subr.mxu0 0.0
        %487 = vmatpush1.msra.mxu0 0.0
        %488 = vmatprep.subr.mxu0 0.0
        %489 = vmatpush1.msra.mxu0 0.0
        %490 = vmatprep.subr.mxu0 0.0
        %491 = vmatpush1.msra.mxu0 0.0
        %492 = vmatprep.subr.mxu0 0.0
        %493 = vmatpush1.msra.mxu0 0.0
        %494 = vmatprep.subr.mxu0 0.0
        %495 = vmatpush1.msra.mxu0 0.0
        %496 = vmatprep.subr.mxu0 0.0
        %497 = vmatpush1.msra.mxu0 0.0
        %498 = vmatprep.subr.mxu0 0.0
        %499 = vmatpush1.msra.mxu0 0.0
        %500 = vmatprep.subr.mxu0 0.0
        %501 = vmatpush1.msra.mxu0 0.0
        %502 = vmatprep.subr.mxu0 0.0
        %503 = vmatpush1.msra.mxu0 0.0
        %504 = vmatprep.subr.mxu0 0.0
        %505 = vmatpush1.msra.mxu0 0.0
        %506 = vmatprep.subr.mxu0 0.0
        %507 = vmatpush1.msra.mxu0 0.0
        %508 = vmatprep.subr.mxu0 0.0
        %509 = vmatpush1.msra.mxu0 0.0
        %510 = vmatprep.subr.mxu0 0.0
        %511 = vmatpush1.msra.mxu0 0.0
        %512 = vmatprep.subr.mxu0 0.0
        %513 = vmatpush1.msra.mxu0 0.0
        %514 = vmatprep.subr.mxu0 0.0
        %515 = vmatpush1.msra.mxu0 0.0
        %516 = vmatprep.subr.mxu0 0.0
        %517 = vmatpush1.msra.mxu0 0.0
        %518 = vmatprep.subr.mxu0 0.0
        %519 = vmatpush1.msra.mxu0 0.0
        %520 = vmatprep.subr.mxu0 0.0
        %521 = vmatpush1.msra.mxu0 0.0
        %522 = vmatprep.subr.mxu0 0.0
        %523 = vmatpush1.msra.mxu0 0.0
        %524 = vmatprep.subr.mxu0 0.0
        %525 = vmatpush1.msra.mxu0 0.0
        %526 = vmatprep.subr.mxu0 0.0
        %527 = vmatpush1.msra.mxu0 0.0
        %528 = vmatprep.subr.mxu0 0.0
        %529 = vmatpush1.msra.mxu0 0.0
        %530 = vmatprep.subr.mxu0 0.0
        %531 = vmatpush1.msra.mxu0 0.0
        %532 = vmatprep.subr.mxu0 0.0
        %533 = vmatpush1.msra.mxu0 0.0
        %534 = vmatprep.subr.mxu0 0.0
        %535 = vmatpush1.msra.mxu0 0.0
        %536 = vmatprep.mubr.f32.mxu0 0.0
        %537 = vmatmul.mubr.f32.gmra.mrb[0].mxu0 %v464
        %v538 = vpop.f32.mrb[0].mxu0
        %v539 = vadd.f32 0.0, %v538
        %v540 = vpop.f32.mrb[0].mxu0
        %v541 = vadd.f32 0.0, %v540
        %542 = vdwg.mxu0
        %v543 = vadd.f32 %v453, %v539
        %v544 = vadd.f32 %v455, %v541
        %v545 = vld [vmem:[#allocation2 + $0x3] sm:$0xff]
        %s546 = scalar_lea.vmem %s1, 96
        %v547 = vld [vmem:[%s546] sm:$0xff]
        %v548 = vld [vmem:[%s546 + $0x8] sm:$0xff]
        %v549 = vld [vmem:[%s546 + $0x10] sm:$0xf]
        %v550 = vld [vmem:[%s546 + $0x18] sm:$0xf]
        %v552 = vsel %vm274, %v545, 0
        %v555 = vsel %vm299, %v549, 0
        %v558 = vsel %vm299, %v550, 0
        %560 = vmatprep.subr.mxu0 %v548
        %561 = vmatpush1.msra.mxu0 %v547
        %562 = vmatprep.subr.mxu0 %v558
        %563 = vmatpush1.msra.mxu0 %v555
        %564 = vmatprep.subr.mxu0 0.0
        %565 = vmatpush1.msra.mxu0 0.0
        %566 = vmatprep.subr.mxu0 0.0
        %567 = vmatpush1.msra.mxu0 0.0
        %568 = vmatprep.subr.mxu0 0.0
        %569 = vmatpush1.msra.mxu0 0.0
        %570 = vmatprep.subr.mxu0 0.0
        %571 = vmatpush1.msra.mxu0 0.0
        %572 = vmatprep.subr.mxu0 0.0
        %573 = vmatpush1.msra.mxu0 0.0
        %574 = vmatprep.subr.mxu0 0.0
        %575 = vmatpush1.msra.mxu0 0.0
        %576 = vmatprep.subr.mxu0 0.0
        %577 = vmatpush1.msra.mxu0 0.0
        %578 = vmatprep.subr.mxu0 0.0
        %579 = vmatpush1.msra.mxu0 0.0
        %580 = vmatprep.subr.mxu0 0.0
        %581 = vmatpush1.msra.mxu0 0.0
        %582 = vmatprep.subr.mxu0 0.0
        %583 = vmatpush1.msra.mxu0 0.0
        %584 = vmatprep.subr.mxu0 0.0
        %585 = vmatpush1.msra.mxu0 0.0
        %586 = vmatprep.subr.mxu0 0.0
        %587 = vmatpush1.msra.mxu0 0.0
        %588 = vmatprep.subr.mxu0 0.0
        %589 = vmatpush1.msra.mxu0 0.0
        %590 = vmatprep.subr.mxu0 0.0
        %591 = vmatpush1.msra.mxu0 0.0
        %592 = vmatprep.subr.mxu0 0.0
        %593 = vmatpush1.msra.mxu0 0.0
        %594 = vmatprep.subr.mxu0 0.0
        %595 = vmatpush1.msra.mxu0 0.0
        %596 = vmatprep.subr.mxu0 0.0
        %597 = vmatpush1.msra.mxu0 0.0
        %598 = vmatprep.subr.mxu0 0.0
        %599 = vmatpush1.msra.mxu0 0.0
        %600 = vmatprep.subr.mxu0 0.0
        %601 = vmatpush1.msra.mxu0 0.0
        %602 = vmatprep.subr.mxu0 0.0
        %603 = vmatpush1.msra.mxu0 0.0
        %604 = vmatprep.subr.mxu0 0.0
        %605 = vmatpush1.msra.mxu0 0.0
        %606 = vmatprep.subr.mxu0 0.0
        %607 = vmatpush1.msra.mxu0 0.0
        %608 = vmatprep.subr.mxu0 0.0
        %609 = vmatpush1.msra.mxu0 0.0
        %610 = vmatprep.subr.mxu0 0.0
        %611 = vmatpush1.msra.mxu0 0.0
        %612 = vmatprep.subr.mxu0 0.0
        %613 = vmatpush1.msra.mxu0 0.0
        %614 = vmatprep.subr.mxu0 0.0
        %615 = vmatpush1.msra.mxu0 0.0
        %616 = vmatprep.subr.mxu0 0.0
        %617 = vmatpush1.msra.mxu0 0.0
        %618 = vmatprep.subr.mxu0 0.0
        %619 = vmatpush1.msra.mxu0 0.0
        %620 = vmatprep.subr.mxu0 0.0
        %621 = vmatpush1.msra.mxu0 0.0
        %622 = vmatprep.subr.mxu0 0.0
        %623 = vmatpush1.msra.mxu0 0.0
        %624 = vmatprep.mubr.f32.mxu0 0.0
        %625 = vmatmul.mubr.f32.gmra.mrb[0].mxu0 %v552
        %v626 = vpop.f32.mrb[0].mxu0
        %v627 = vadd.f32 0.0, %v626
        %v628 = vpop.f32.mrb[0].mxu0
        %v629 = vadd.f32 0.0, %v628
        %630 = vdwg.mxu0
        %v631 = vadd.f32 %v543, %v627
        %v632 = vadd.f32 %v544, %v629
        %v633 = vld [vmem:[#allocation2 + $0x4] sm:$0xff]
        %s634 = scalar_lea.vmem %s1, 128
        %v635 = vld [vmem:[%s634] sm:$0xff]
        %v636 = vld [vmem:[%s634 + $0x8] sm:$0xff]
        %v637 = vld [vmem:[%s634 + $0x10] sm:$0xf]
        %v638 = vld [vmem:[%s634 + $0x18] sm:$0xf]
        %v640 = vsel %vm274, %v633, 0
        %v643 = vsel %vm299, %v637, 0
        %v646 = vsel %vm299, %v638, 0
        %648 = vmatprep.subr.mxu0 %v636
        %649 = vmatpush1.msra.mxu0 %v635
        %650 = vmatprep.subr.mxu0 %v646
        %651 = vmatpush1.msra.mxu0 %v643
        %652 = vmatprep.subr.mxu0 0.0
        %653 = vmatpush1.msra.mxu0 0.0
        %654 = vmatprep.subr.mxu0 0.0
        %655 = vmatpush1.msra.mxu0 0.0
        %656 = vmatprep.subr.mxu0 0.0
        %657 = vmatpush1.msra.mxu0 0.0
        %658 = vmatprep.subr.mxu0 0.0
        %659 = vmatpush1.msra.mxu0 0.0
        %660 = vmatprep.subr.mxu0 0.0
        %661 = vmatpush1.msra.mxu0 0.0
        %662 = vmatprep.subr.mxu0 0.0
        %663 = vmatpush1.msra.mxu0 0.0
        %664 = vmatprep.subr.mxu0 0.0
        %665 = vmatpush1.msra.mxu0 0.0
        %666 = vmatprep.subr.mxu0 0.0
        %667 = vmatpush1.msra.mxu0 0.0
        %668 = vmatprep.subr.mxu0 0.0
        %669 = vmatpush1.msra.mxu0 0.0
        %670 = vmatprep.subr.mxu0 0.0
        %671 = vmatpush1.msra.mxu0 0.0
        %672 = vmatprep.subr.mxu0 0.0
        %673 = vmatpush1.msra.mxu0 0.0
        %674 = vmatprep.subr.mxu0 0.0
        %675 = vmatpush1.msra.mxu0 0.0
        %676 = vmatprep.subr.mxu0 0.0
        %677 = vmatpush1.msra.mxu0 0.0
        %678 = vmatprep.subr.mxu0 0.0
        %679 = vmatpush1.msra.mxu0 0.0
        %680 = vmatprep.subr.mxu0 0.0
        %681 = vmatpush1.msra.mxu0 0.0
        %682 = vmatprep.subr.mxu0 0.0
        %683 = vmatpush1.msra.mxu0 0.0
        %684 = vmatprep.subr.mxu0 0.0
        %685 = vmatpush1.msra.mxu0 0.0
        %686 = vmatprep.subr.mxu0 0.0
        %687 = vmatpush1.msra.mxu0 0.0
        %688 = vmatprep.subr.mxu0 0.0
        %689 = vmatpush1.msra.mxu0 0.0
        %690 = vmatprep.subr.mxu0 0.0
        %691 = vmatpush1.msra.mxu0 0.0
        %692 = vmatprep.subr.mxu0 0.0
        %693 = vmatpush1.msra.mxu0 0.0
        %694 = vmatprep.subr.mxu0 0.0
        %695 = vmatpush1.msra.mxu0 0.0
        %696 = vmatprep.subr.mxu0 0.0
        %697 = vmatpush1.msra.mxu0 0.0
        %698 = vmatprep.subr.mxu0 0.0
        %699 = vmatpush1.msra.mxu0 0.0
        %700 = vmatprep.subr.mxu0 0.0
        %701 = vmatpush1.msra.mxu0 0.0
        %702 = vmatprep.subr.mxu0 0.0
        %703 = vmatpush1.msra.mxu0 0.0
        %704 = vmatprep.subr.mxu0 0.0
        %705 = vmatpush1.msra.mxu0 0.0
        %706 = vmatprep.subr.mxu0 0.0
        %707 = vmatpush1.msra.mxu0 0.0
        %708 = vmatprep.subr.mxu0 0.0
        %709 = vmatpush1.msra.mxu0 0.0
        %710 = vmatprep.subr.mxu0 0.0
        %711 = vmatpush1.msra.mxu0 0.0
        %712 = vmatprep.mubr.f32.mxu0 0.0
        %713 = vmatmul.mubr.f32.gmra.mrb[0].mxu0 %v640
        %v714 = vpop.f32.mrb[0].mxu0
        %v715 = vadd.f32 0.0, %v714
        %v716 = vpop.f32.mrb[0].mxu0
        %v717 = vadd.f32 0.0, %v716
        %718 = vdwg.mxu0
        %v719 = vadd.f32 %v631, %v715
        %v720 = vadd.f32 %v632, %v717
        %v721 = vld [vmem:[%s2] sm:$0x3]
        %v723 = vlaneseq
        %v724 = vshrl.u32 %v723, 7
        %v725 = vsub.s32 0, %v724
        %v726 = vrot.slane %v721, %v725
        %v727 = vlaneseq
        %v728 = vshrl.u32 %v727, 7
        %v729 = vsub.s32 1, %v728
        %v730 = vrot.slane %v721, %v729
        %v733 = vadd.f32 %v719, %v726
        %v734 = vadd.f32 %v720, %v730
        %v735 = vmax.f32 %v733, 0.0
        %v736 = vmax.f32 %v734, 0.0
        %737 = vst [vmem:[#allocation3] sm:$0xff] 0.0
        %738 = vst [vmem:[#allocation3 + $0x8] sm:$0xff] 0.0
        %vm739 = vcmask 261120
        %740 = vst.msk [vmem:[#allocation3 + $0x10] sm:$0xff] %vm739, 0.0
        %741 = vst [vmem:[#allocation3 + $0x18] sm:$0xff] 0.0
        %742 = vst [vmem:[#allocation3 + $0x20] sm:$0xff] 0.0
        %743 = vst.msk [vmem:[#allocation3 + $0x28] sm:$0xff] %vm739, 0.0
        %744 = vst [vmem:[#allocation3 + $0x30] sm:$0x3] 0.0
        %745 = vst [vmem:[#allocation3 + $0x38] sm:$0x3] 0.0
        %vm746 = vcmask 254976
        %747 = vst.msk [vmem:[#allocation3 + $0x40] sm:$0x3] %vm746, 0.0
        %v750 = vcombine.low %v735, %v736
        %v752 = vunpack.c.l.s4 1966171168
        %v753 = vunpack.c.0.s8 %v752
        %v754 = vlaneseq
        %v755 = vshrl.u32 %v754, 7
        %v756 = vsub.s32 %v753, %v755
        %v757 = vrot.slane %v750, %v756
        %v759 = vunpack.c.l.s4 1966171168
        %v760 = vunpack.c.0.s8 %v759
        %v761 = vlaneseq
        %v762 = vshrl.u32 %v761, 7
        %v763 = vsub.s32 %v760, %v762
        %v764 = vrot.slane %v757, %v763
        %765 = vrot.lane.b32.xlu0 %v764, 16
        %v766 = vpop.permute.xlu0 %765
        %v767 = vrot.slane %v766, 7
        %vm768 = vcmask 130048
        %v769 = vsel %vm768, %v767, %v766
        %v771 = vlaneseq
        %vm772 = vcmp.ge.s32.totalorder %v771, 16
        %vm773 = vcmp.lt.s32.totalorder %v771, 272
        %vm774 = vmand %vm772, %vm773
        %s775 = scalar_lea.vmem [#allocation3], 1
        %776 = vst.msk [vmem:[%s775] ss:$8 sm:$0x7] %vm774, %v769
        %777 = vst.msk [vmem:[%s775] ss:$8 sm:$0x0] %vm774, %v769
        %s778 = scalar_lea.vmem [#allocation3], 2
        %779 = vst.msk [vmem:[%s778] ss:$8 sm:$0x7] %vm774, %v769
        %780 = vst.msk [vmem:[%s778] ss:$8 sm:$0x0] %vm774, %v769
        %v781 = vcombine.high %v757, %v757
        %v783 = vunpack.c.l.s4 1966171168
        %v784 = vunpack.c.0.s8 %v783
        %v785 = vlaneseq
        %v786 = vshrl.u32 %v785, 7
        %v787 = vsub.s32 %v784, %v786
        %v788 = vrot.slane %v781, %v787
        %789 = vrot.lane.b32.xlu0 %v788, 16
        %v790 = vpop.permute.xlu0 %789
        %v791 = vrot.slane %v790, 7
        %v792 = vsel %vm768, %v791, %v790
        %s794 = scalar_lea.vmem [#allocation3], 3
        %795 = vst.msk [vmem:[%s794] ss:$8 sm:$0x7] %vm774, %v792
        %796 = vst.msk [vmem:[%s794] ss:$8 sm:$0x0] %vm774, %v792
        %s797 = scalar_lea.vmem [#allocation3], 4
        %798 = vst.msk [vmem:[%s797] ss:$8 sm:$0x7] %vm774, %v792
        %799 = vst.msk [vmem:[%s797] ss:$8 sm:$0x0] %vm774, %v792
        %v800 = vcombine.high %v764, %v764
        %801 = vrot.lane.b32.xlu0 %v800, 16
        %v802 = vpop.permute.xlu0 %801
        %v803 = vrot.slane %v802, 7
        %v804 = vsel %vm768, %v803, %v802
        %s806 = scalar_lea.vmem [#allocation3], 5
        %807 = vst.msk [vmem:[%s806] ss:$8 sm:$0x7] %vm774, %v804
        %808 = vst.msk [vmem:[%s806] ss:$8 sm:$0x0] %vm774, %v804
        %s809 = scalar_lea.vmem [#allocation3], 6
        %810 = vst.msk [vmem:[%s809] ss:$8 sm:$0x7] %vm774, %v804
        %811 = vst.msk [vmem:[%s809] ss:$8 sm:$0x0] %vm774, %v804
        %v812 = vcombine.high %v788, %v788
        %813 = vrot.lane.b32.xlu0 %v812, 16
        %v814 = vpop.permute.xlu0 %813
        %v815 = vrot.slane %v814, 7
        %v816 = vsel %vm768, %v815, %v814
        %s818 = scalar_lea.vmem [#allocation3], 7
        %819 = vst.msk [vmem:[%s818] ss:$8 sm:$0x7] %vm774, %v816
        %820 = vst.msk [vmem:[%s818] ss:$8 sm:$0x0] %vm774, %v816
        %s821 = scalar_lea.vmem [#allocation3], 24
        %822 = vst.msk [vmem:[%s821] ss:$8 sm:$0x7] %vm774, %v816
        %823 = vst.msk [vmem:[%s821] ss:$8 sm:$0x0] %vm774, %v816
        %v824 = vcombine.high %v735, %v736
        %v826 = vunpack.c.l.s4 1966171168
        %v827 = vunpack.c.0.s8 %v826
        %v828 = vlaneseq
        %v829 = vshrl.u32 %v828, 7
        %v830 = vsub.s32 %v827, %v829
        %v831 = vrot.slane %v824, %v830
        %v833 = vunpack.c.l.s4 1966171168
        %v834 = vunpack.c.0.s8 %v833
        %v835 = vlaneseq
        %v836 = vshrl.u32 %v835, 7
        %v837 = vsub.s32 %v834, %v836
        %v838 = vrot.slane %v831, %v837
        %839 = vrot.lane.b32.xlu0 %v838, 16
        %v840 = vpop.permute.xlu0 %839
        %v841 = vrot.slane %v840, 7
        %v842 = vsel %vm768, %v841, %v840
        %s844 = scalar_lea.vmem [#allocation3], 25
        %845 = vst.msk [vmem:[%s844] ss:$8 sm:$0x7] %vm774, %v842
        %846 = vst.msk [vmem:[%s844] ss:$8 sm:$0x0] %vm774, %v842
        %s847 = scalar_lea.vmem [#allocation3], 26
        %848 = vst.msk [vmem:[%s847] ss:$8 sm:$0x7] %vm774, %v842
        %849 = vst.msk [vmem:[%s847] ss:$8 sm:$0x0] %vm774, %v842
        %v850 = vcombine.high %v831, %v831
        %v852 = vunpack.c.l.s4 1966171168
        %v853 = vunpack.c.0.s8 %v852
        %v854 = vlaneseq
        %v855 = vshrl.u32 %v854, 7
        %v856 = vsub.s32 %v853, %v855
        %v857 = vrot.slane %v850, %v856
        %858 = vrot.lane.b32.xlu0 %v857, 16
        %v859 = vpop.permute.xlu0 %858
        %v860 = vrot.slane %v859, 7
        %v861 = vsel %vm768, %v860, %v859
        %s863 = scalar_lea.vmem [#allocation3], 27
        %864 = vst.msk [vmem:[%s863] ss:$8 sm:$0x7] %vm774, %v861
        %865 = vst.msk [vmem:[%s863] ss:$8 sm:$0x0] %vm774, %v861
        %s866 = scalar_lea.vmem [#allocation3], 28
        %867 = vst.msk [vmem:[%s866] ss:$8 sm:$0x7] %vm774, %v861
        %868 = vst.msk [vmem:[%s866] ss:$8 sm:$0x0] %vm774, %v861
        %v869 = vcombine.high %v838, %v838
        %870 = vrot.lane.b32.xlu0 %v869, 16
        %v871 = vpop.permute.xlu0 %870
        %v872 = vrot.slane %v871, 7
        %v873 = vsel %vm768, %v872, %v871
        %s875 = scalar_lea.vmem [#allocation3], 29
        %876 = vst.msk [vmem:[%s875] ss:$8 sm:$0x7] %vm774, %v873
        %877 = vst.msk [vmem:[%s875] ss:$8 sm:$0x0] %vm774, %v873
        %s878 = scalar_lea.vmem [#allocation3], 30
        %879 = vst.msk [vmem:[%s878] ss:$8 sm:$0x7] %vm774, %v873
        %880 = vst.msk [vmem:[%s878] ss:$8 sm:$0x0] %vm774, %v873
        %v881 = vcombine.high %v857, %v857
        %882 = vrot.lane.b32.xlu0 %v881, 16
        %v883 = vpop.permute.xlu0 %882
        %v884 = vrot.slane %v883, 7
        %v885 = vsel %vm768, %v884, %v883
        %s887 = scalar_lea.vmem [#allocation3], 31
        %888 = vst.msk [vmem:[%s887] ss:$8 sm:$0x7] %vm774, %v885
        %889 = vst.msk [vmem:[%s887] ss:$8 sm:$0x0] %vm774, %v885
        %s890 = scalar_lea.vmem [#allocation3], 48
        %891 = vst.msk [vmem:[%s890] ss:$8 sm:$0x7] %vm774, %v885
        %892 = vst.msk [vmem:[%s890] ss:$8 sm:$0x0] %vm774, %v885
        %v893 = vld [vmem:[#allocation3] sm:$0xff]
        %v894 = vld [vmem:[#allocation3 + $0x8] sm:$0xff]
        %v895 = vld [vmem:[#allocation3 + $0x10] sm:$0xff]
        %v896 = vld [vmem:[#allocation3 + $0x18] sm:$0xff]
        %v897 = vld [vmem:[#allocation3 + $0x20] sm:$0xff]
        %v898 = vld [vmem:[#allocation3 + $0x28] sm:$0xff]
        %v899 = vld [vmem:[%s3] sm:$0xff]
        %v900 = vld [vmem:[%s3 + $0x8] sm:$0xff]
        %v901 = vld [vmem:[%s3 + $0x10] sm:$0xff]
        %v902 = vld [vmem:[%s3 + $0x18] sm:$0xff]
        %v903 = vld [vmem:[%s3 + $0x20] sm:$0xff]
        %v904 = vld [vmem:[%s3 + $0x28] sm:$0xff]
        %v905 = vld [vmem:[%s3 + $0x30] sm:$0xff]
        %v906 = vld [vmem:[%s3 + $0x38] sm:$0xff]
        %v907 = vld [vmem:[%s3 + $0x40] sm:$0xff]
        %v908 = vld [vmem:[%s3 + $0x48] sm:$0xff]
        %v909 = vld [vmem:[%s3 + $0x50] sm:$0xff]
        %v910 = vld [vmem:[%s3 + $0x58] sm:$0xff]
        %v911 = vld [vmem:[%s3 + $0x60] sm:$0xff]
        %v912 = vld [vmem:[%s3 + $0x68] sm:$0xff]
        %v913 = vld [vmem:[%s3 + $0x70] sm:$0xff]
        %v914 = vld [vmem:[%s3 + $0x78] sm:$0xff]
        %v915 = vld [vmem:[%s3 + $0x80] sm:$0xff]
        %v916 = vld [vmem:[%s3 + $0x88] sm:$0xff]
        %v917 = vld [vmem:[%s3 + $0x90] sm:$0xff]
        %v918 = vld [vmem:[%s3 + $0x98] sm:$0xff]
        %v919 = vld [vmem:[%s3 + $0xa0] sm:$0xff]
        %v920 = vld [vmem:[%s3 + $0xa8] sm:$0xff]
        %v921 = vld [vmem:[%s3 + $0xb0] sm:$0xff]
        %v922 = vld [vmem:[%s3 + $0xb8] sm:$0xff]
        %v923 = vld [vmem:[%s3 + $0xc0] sm:$0xff]
        %v924 = vld [vmem:[%s3 + $0xc8] sm:$0xff]
        %v925 = vld [vmem:[%s3 + $0xd0] sm:$0xff]
        %v926 = vld [vmem:[%s3 + $0xd8] sm:$0xff]
        %v927 = vld [vmem:[%s3 + $0xe0] sm:$0xff]
        %v928 = vld [vmem:[%s3 + $0xe8] sm:$0xff]
        %v929 = vld [vmem:[%s3 + $0xf0] sm:$0xff]
        %v930 = vld [vmem:[%s3 + $0xf8] sm:$0xff]
        %v931 = vld [vmem:[%s3 + $0x100] sm:$0xff]
        %v932 = vld [vmem:[%s3 + $0x108] sm:$0xff]
        %v933 = vld [vmem:[%s3 + $0x110] sm:$0xff]
        %v934 = vld [vmem:[%s3 + $0x118] sm:$0xff]
        %v935 = vld [vmem:[%s3 + $0x120] sm:$0xff]
        %v936 = vld [vmem:[%s3 + $0x128] sm:$0xff]
        %v937 = vld [vmem:[%s3 + $0x130] sm:$0xff]
        %v938 = vld [vmem:[%s3 + $0x138] sm:$0xff]
        %v939 = vld [vmem:[%s3 + $0x140] sm:$0xff]
        %v940 = vld [vmem:[%s3 + $0x148] sm:$0xff]
        %v941 = vld [vmem:[%s3 + $0x150] sm:$0xff]
        %v942 = vld [vmem:[%s3 + $0x158] sm:$0xff]
        %v943 = vld [vmem:[%s3 + $0x160] sm:$0xff]
        %v944 = vld [vmem:[%s3 + $0x168] sm:$0xff]
        %v945 = vld [vmem:[%s3 + $0x170] sm:$0xff]
        %v946 = vld [vmem:[%s3 + $0x178] sm:$0xff]
        %v947 = vld [vmem:[%s3 + $0x180] sm:$0xff]
        %v948 = vld [vmem:[%s3 + $0x188] sm:$0xff]
        %v949 = vld [vmem:[%s3 + $0x190] sm:$0xff]
        %v950 = vld [vmem:[%s3 + $0x198] sm:$0xff]
        %v951 = vld [vmem:[%s3 + $0x1a0] sm:$0xff]
        %v952 = vld [vmem:[%s3 + $0x1a8] sm:$0xff]
        %v953 = vld [vmem:[%s3 + $0x1b0] sm:$0xff]
        %v954 = vld [vmem:[%s3 + $0x1b8] sm:$0xff]
        %v955 = vld [vmem:[%s3 + $0x1c0] sm:$0xff]
        %v956 = vld [vmem:[%s3 + $0x1c8] sm:$0xff]
        %v957 = vld [vmem:[%s3 + $0x1d0] sm:$0xff]
        %v958 = vld [vmem:[%s3 + $0x1d8] sm:$0xff]
        %v959 = vld [vmem:[%s3 + $0x1e0] sm:$0xff]
        %v960 = vld [vmem:[%s3 + $0x1e8] sm:$0xff]
        %v961 = vld [vmem:[%s3 + $0x1f0] sm:$0xff]
        %v962 = vld [vmem:[%s3 + $0x1f8] sm:$0xff]
        %v963 = vld [vmem:[%s3 + $0x200] sm:$0xff]
        %v964 = vld [vmem:[%s3 + $0x208] sm:$0xff]
        %v965 = vld [vmem:[%s3 + $0x210] sm:$0xff]
        %v966 = vld [vmem:[%s3 + $0x218] sm:$0xff]
        %v967 = vld [vmem:[%s3 + $0x220] sm:$0xff]
        %v968 = vld [vmem:[%s3 + $0x228] sm:$0xff]
        %v969 = vld [vmem:[%s3 + $0x230] sm:$0xff]
        %v970 = vld [vmem:[%s3 + $0x238] sm:$0xff]
        %v971 = vld [vmem:[%s3 + $0x240] sm:$0xff]
        %v972 = vld [vmem:[%s3 + $0x248] sm:$0xff]
        %v973 = vld [vmem:[%s3 + $0x250] sm:$0xff]
        %v974 = vld [vmem:[%s3 + $0x258] sm:$0xff]
        %v975 = vld [vmem:[%s3 + $0x260] sm:$0xff]
        %v976 = vld [vmem:[%s3 + $0x268] sm:$0xff]
        %v977 = vld [vmem:[%s3 + $0x270] sm:$0xff]
        %v978 = vld [vmem:[%s3 + $0x278] sm:$0xff]
        %v979 = vld [vmem:[%s3 + $0x280] sm:$0xff]
        %v980 = vld [vmem:[%s3 + $0x288] sm:$0xff]
        %v981 = vld [vmem:[%s3 + $0x290] sm:$0xff]
        %v982 = vld [vmem:[%s3 + $0x298] sm:$0xff]
        %v983 = vld [vmem:[%s3 + $0x2a0] sm:$0xff]
        %v984 = vld [vmem:[%s3 + $0x2a8] sm:$0xff]
        %v985 = vld [vmem:[%s3 + $0x2b0] sm:$0xff]
        %v986 = vld [vmem:[%s3 + $0x2b8] sm:$0xff]
        %v987 = vld [vmem:[%s3 + $0x2c0] sm:$0xff]
        %v988 = vld [vmem:[%s3 + $0x2c8] sm:$0xff]
        %v989 = vld [vmem:[%s3 + $0x2d0] sm:$0xff]
        %v990 = vld [vmem:[%s3 + $0x2d8] sm:$0xff]
        %v991 = vld [vmem:[%s3 + $0x2e0] sm:$0xff]
        %v992 = vld [vmem:[%s3 + $0x2e8] sm:$0xff]
        %v993 = vld [vmem:[%s3 + $0x2f0] sm:$0xff]
        %v994 = vld [vmem:[%s3 + $0x2f8] sm:$0xff]
        %v995 = vld [vmem:[%s3 + $0x300] sm:$0xff]
        %v996 = vld [vmem:[%s3 + $0x308] sm:$0xff]
        %v997 = vld [vmem:[%s3 + $0x310] sm:$0xff]
        %v998 = vld [vmem:[%s3 + $0x318] sm:$0xff]
        %v999 = vld [vmem:[%s3 + $0x320] sm:$0xff]
        %v1000 = vld [vmem:[%s3 + $0x328] sm:$0xff]
        %v1001 = vld [vmem:[%s3 + $0x330] sm:$0xff]
        %v1002 = vld [vmem:[%s3 + $0x338] sm:$0xff]
        %v1003 = vld [vmem:[%s3 + $0x340] sm:$0xff]
        %v1004 = vld [vmem:[%s3 + $0x348] sm:$0xff]
        %v1005 = vld [vmem:[%s3 + $0x350] sm:$0xff]
        %v1006 = vld [vmem:[%s3 + $0x358] sm:$0xff]
        %v1007 = vld [vmem:[%s3 + $0x360] sm:$0xff]
        %v1008 = vld [vmem:[%s3 + $0x368] sm:$0xff]
        %v1009 = vld [vmem:[%s3 + $0x370] sm:$0xff]
        %v1010 = vld [vmem:[%s3 + $0x378] sm:$0xff]
        %v1011 = vld [vmem:[%s3 + $0x380] sm:$0xff]
        %v1012 = vld [vmem:[%s3 + $0x388] sm:$0xff]
        %v1013 = vld [vmem:[%s3 + $0x390] sm:$0xff]
        %v1014 = vld [vmem:[%s3 + $0x398] sm:$0xff]
        %v1015 = vld [vmem:[%s3 + $0x3a0] sm:$0xff]
        %v1016 = vld [vmem:[%s3 + $0x3a8] sm:$0xff]
        %v1017 = vld [vmem:[%s3 + $0x3b0] sm:$0xff]
        %v1018 = vld [vmem:[%s3 + $0x3b8] sm:$0xff]
        %v1019 = vld [vmem:[%s3 + $0x3c0] sm:$0xff]
        %v1020 = vld [vmem:[%s3 + $0x3c8] sm:$0xff]
        %v1021 = vld [vmem:[%s3 + $0x3d0] sm:$0xff]
        %v1022 = vld [vmem:[%s3 + $0x3d8] sm:$0xff]
        %v1023 = vld [vmem:[%s3 + $0x3e0] sm:$0xff]
        %v1024 = vld [vmem:[%s3 + $0x3e8] sm:$0xff]
        %v1025 = vld [vmem:[%s3 + $0x3f0] sm:$0xff]
        %v1026 = vld [vmem:[%s3 + $0x3f8] sm:$0xff]
        %v1027 = vld [vmem:[%s3 + $0x400] sm:$0xff]
        %v1028 = vld [vmem:[%s3 + $0x408] sm:$0xff]
        %v1029 = vld [vmem:[%s3 + $0x410] sm:$0xff]
        %v1030 = vld [vmem:[%s3 + $0x418] sm:$0xff]
        %v1031 = vld [vmem:[%s3 + $0x420] sm:$0xff]
        %v1032 = vld [vmem:[%s3 + $0x428] sm:$0xff]
        %v1033 = vld [vmem:[%s3 + $0x430] sm:$0xff]
        %v1034 = vld [vmem:[%s3 + $0x438] sm:$0xff]
        %v1035 = vld [vmem:[%s3 + $0x440] sm:$0xff]
        %v1036 = vld [vmem:[%s3 + $0x448] sm:$0xff]
        %v1037 = vld [vmem:[%s3 + $0x450] sm:$0xff]
        %v1038 = vld [vmem:[%s3 + $0x458] sm:$0xff]
        %v1039 = vld [vmem:[%s3 + $0x460] sm:$0xff]
        %v1040 = vld [vmem:[%s3 + $0x468] sm:$0xff]
        %v1041 = vld [vmem:[%s3 + $0x470] sm:$0xff]
        %v1042 = vld [vmem:[%s3 + $0x478] sm:$0xff]
        %v1043 = vld [vmem:[#allocation3] sm:$0xfe]
        %v1044 = vld [vmem:[#allocation3 + $0x8] sm:$0xfe]
        %v1045 = vld [vmem:[#allocation3 + $0x10] sm:$0xfe]
        %v1046 = vld [vmem:[#allocation3 + $0x30] sm:$0x1]
        %v1047 = vld [vmem:[#allocation3 + $0x38] sm:$0x1]
        %v1048 = vld [vmem:[#allocation3 + $0x40] sm:$0x1]
        %s1049 = scalar_lea.vmem %s3, 1152
        %v1050 = vld [vmem:[%s1049] sm:$0xff]
        %v1051 = vld [vmem:[%s1049 + $0x8] sm:$0xff]
        %v1052 = vld [vmem:[%s1049 + $0x10] sm:$0xff]
        %v1053 = vld [vmem:[%s1049 + $0x18] sm:$0xff]
        %v1054 = vld [vmem:[%s1049 + $0x20] sm:$0xff]
        %v1055 = vld [vmem:[%s1049 + $0x28] sm:$0xff]
        %v1056 = vld [vmem:[%s1049 + $0x30] sm:$0xff]
        %v1057 = vld [vmem:[%s1049 + $0x38] sm:$0xff]
        %v1058 = vld [vmem:[%s1049 + $0x40] sm:$0xff]
        %v1059 = vld [vmem:[%s1049 + $0x48] sm:$0xff]
        %v1060 = vld [vmem:[%s1049 + $0x50] sm:$0xff]
        %v1061 = vld [vmem:[%s1049 + $0x58] sm:$0xff]
        %v1062 = vld [vmem:[%s1049 + $0x60] sm:$0xff]
        %v1063 = vld [vmem:[%s1049 + $0x68] sm:$0xff]
        %v1064 = vld [vmem:[%s1049 + $0x70] sm:$0xff]
        %v1065 = vld [vmem:[%s1049 + $0x78] sm:$0xff]
        %v1066 = vld [vmem:[%s1049 + $0x80] sm:$0xff]
        %v1067 = vld [vmem:[%s1049 + $0x88] sm:$0xff]
        %v1068 = vld [vmem:[%s1049 + $0x90] sm:$0xff]
        %v1069 = vld [vmem:[%s1049 + $0x98] sm:$0xff]
        %v1070 = vld [vmem:[%s1049 + $0xa0] sm:$0xff]
        %v1071 = vld [vmem:[%s1049 + $0xa8] sm:$0xff]
        %v1072 = vld [vmem:[%s1049 + $0xb0] sm:$0xff]
        %v1073 = vld [vmem:[%s1049 + $0xb8] sm:$0xff]
        %v1074 = vld [vmem:[%s1049 + $0xc0] sm:$0xff]
        %v1075 = vld [vmem:[%s1049 + $0xc8] sm:$0xff]
        %v1076 = vld [vmem:[%s1049 + $0xd0] sm:$0xff]
        %v1077 = vld [vmem:[%s1049 + $0xd8] sm:$0xff]
        %v1078 = vld [vmem:[%s1049 + $0xe0] sm:$0xff]
        %v1079 = vld [vmem:[%s1049 + $0xe8] sm:$0xff]
        %v1080 = vld [vmem:[%s1049 + $0xf0] sm:$0xff]
        %v1081 = vld [vmem:[%s1049 + $0xf8] sm:$0xff]
        %v1082 = vld [vmem:[%s1049 + $0x100] sm:$0xff]
        %v1083 = vld [vmem:[%s1049 + $0x108] sm:$0xff]
        %v1084 = vld [vmem:[%s1049 + $0x110] sm:$0xff]
        %v1085 = vld [vmem:[%s1049 + $0x118] sm:$0xff]
        %v1086 = vld [vmem:[%s1049 + $0x120] sm:$0xff]
        %v1087 = vld [vmem:[%s1049 + $0x128] sm:$0xff]
        %v1088 = vld [vmem:[%s1049 + $0x130] sm:$0xff]
        %v1089 = vld [vmem:[%s1049 + $0x138] sm:$0xff]
        %v1090 = vld [vmem:[%s1049 + $0x140] sm:$0xff]
        %v1091 = vld [vmem:[%s1049 + $0x148] sm:$0xff]
        %v1092 = vld [vmem:[%s1049 + $0x150] sm:$0xff]
        %v1093 = vld [vmem:[%s1049 + $0x158] sm:$0xff]
        %v1094 = vld [vmem:[%s1049 + $0x160] sm:$0xff]
        %v1095 = vld [vmem:[%s1049 + $0x168] sm:$0xff]
        %v1096 = vld [vmem:[%s1049 + $0x170] sm:$0xff]
        %v1097 = vld [vmem:[%s1049 + $0x178] sm:$0xff]
        %v1098 = vld [vmem:[%s1049 + $0x180] sm:$0xff]
        %v1099 = vld [vmem:[%s1049 + $0x188] sm:$0xff]
        %v1100 = vld [vmem:[%s1049 + $0x190] sm:$0xff]
        %v1101 = vld [vmem:[%s1049 + $0x198] sm:$0xff]
        %v1102 = vld [vmem:[%s1049 + $0x1a0] sm:$0xff]
        %v1103 = vld [vmem:[%s1049 + $0x1a8] sm:$0xff]
        %v1104 = vld [vmem:[%s1049 + $0x1b0] sm:$0xff]
        %v1105 = vld [vmem:[%s1049 + $0x1b8] sm:$0xff]
        %v1106 = vld [vmem:[%s1049 + $0x1c0] sm:$0xff]
        %v1107 = vld [vmem:[%s1049 + $0x1c8] sm:$0xff]
        %v1108 = vld [vmem:[%s1049 + $0x1d0] sm:$0xff]
        %v1109 = vld [vmem:[%s1049 + $0x1d8] sm:$0xff]
        %v1110 = vld [vmem:[%s1049 + $0x1e0] sm:$0xff]
        %v1111 = vld [vmem:[%s1049 + $0x1e8] sm:$0xff]
        %v1112 = vld [vmem:[%s1049 + $0x1f0] sm:$0xff]
        %v1113 = vld [vmem:[%s1049 + $0x1f8] sm:$0xff]
        %v1114 = vld [vmem:[%s1049 + $0x200] sm:$0xff]
        %v1115 = vld [vmem:[%s1049 + $0x208] sm:$0xff]
        %v1116 = vld [vmem:[%s1049 + $0x210] sm:$0xff]
        %v1117 = vld [vmem:[%s1049 + $0x218] sm:$0xff]
        %v1118 = vld [vmem:[%s1049 + $0x220] sm:$0xff]
        %v1119 = vld [vmem:[%s1049 + $0x228] sm:$0xff]
        %v1120 = vld [vmem:[%s1049 + $0x230] sm:$0xff]
        %v1121 = vld [vmem:[%s1049 + $0x238] sm:$0xff]
        %v1122 = vld [vmem:[%s1049 + $0x240] sm:$0xff]
        %v1123 = vld [vmem:[%s1049 + $0x248] sm:$0xff]
        %v1124 = vld [vmem:[%s1049 + $0x250] sm:$0xff]
        %v1125 = vld [vmem:[%s1049 + $0x258] sm:$0xff]
        %v1126 = vld [vmem:[%s1049 + $0x260] sm:$0xff]
        %v1127 = vld [vmem:[%s1049 + $0x268] sm:$0xff]
        %v1128 = vld [vmem:[%s1049 + $0x270] sm:$0xff]
        %v1129 = vld [vmem:[%s1049 + $0x278] sm:$0xff]
        %v1130 = vld [vmem:[%s1049 + $0x280] sm:$0xff]
        %v1131 = vld [vmem:[%s1049 + $0x288] sm:$0xff]
        %v1132 = vld [vmem:[%s1049 + $0x290] sm:$0xff]
        %v1133 = vld [vmem:[%s1049 + $0x298] sm:$0xff]
        %v1134 = vld [vmem:[%s1049 + $0x2a0] sm:$0xff]
        %v1135 = vld [vmem:[%s1049 + $0x2a8] sm:$0xff]
        %v1136 = vld [vmem:[%s1049 + $0x2b0] sm:$0xff]
        %v1137 = vld [vmem:[%s1049 + $0x2b8] sm:$0xff]
        %v1138 = vld [vmem:[%s1049 + $0x2c0] sm:$0xff]
        %v1139 = vld [vmem:[%s1049 + $0x2c8] sm:$0xff]
        %v1140 = vld [vmem:[%s1049 + $0x2d0] sm:$0xff]
        %v1141 = vld [vmem:[%s1049 + $0x2d8] sm:$0xff]
        %v1142 = vld [vmem:[%s1049 + $0x2e0] sm:$0xff]
        %v1143 = vld [vmem:[%s1049 + $0x2e8] sm:$0xff]
        %v1144 = vld [vmem:[%s1049 + $0x2f0] sm:$0xff]
        %v1145 = vld [vmem:[%s1049 + $0x2f8] sm:$0xff]
        %v1146 = vld [vmem:[%s1049 + $0x300] sm:$0xff]
        %v1147 = vld [vmem:[%s1049 + $0x308] sm:$0xff]
        %v1148 = vld [vmem:[%s1049 + $0x310] sm:$0xff]
        %v1149 = vld [vmem:[%s1049 + $0x318] sm:$0xff]
        %v1150 = vld [vmem:[%s1049 + $0x320] sm:$0xff]
        %v1151 = vld [vmem:[%s1049 + $0x328] sm:$0xff]
        %v1152 = vld [vmem:[%s1049 + $0x330] sm:$0xff]
        %v1153 = vld [vmem:[%s1049 + $0x338] sm:$0xff]
        %v1154 = vld [vmem:[%s1049 + $0x340] sm:$0xff]
        %v1155 = vld [vmem:[%s1049 + $0x348] sm:$0xff]
        %v1156 = vld [vmem:[%s1049 + $0x350] sm:$0xff]
        %v1157 = vld [vmem:[%s1049 + $0x358] sm:$0xff]
        %v1158 = vld [vmem:[%s1049 + $0x360] sm:$0xff]
        %v1159 = vld [vmem:[%s1049 + $0x368] sm:$0xff]
        %v1160 = vld [vmem:[%s1049 + $0x370] sm:$0xff]
        %v1161 = vld [vmem:[%s1049 + $0x378] sm:$0xff]
        %v1162 = vld [vmem:[%s1049 + $0x380] sm:$0xff]
        %v1163 = vld [vmem:[%s1049 + $0x388] sm:$0xff]
        %v1164 = vld [vmem:[%s1049 + $0x390] sm:$0xff]
        %v1165 = vld [vmem:[%s1049 + $0x398] sm:$0xff]
        %v1166 = vld [vmem:[%s1049 + $0x3a0] sm:$0xff]
        %v1167 = vld [vmem:[%s1049 + $0x3a8] sm:$0xff]
        %v1168 = vld [vmem:[%s1049 + $0x3b0] sm:$0xff]
        %v1169 = vld [vmem:[%s1049 + $0x3b8] sm:$0xff]
        %v1170 = vld [vmem:[%s1049 + $0x3c0] sm:$0xff]
        %v1171 = vld [vmem:[%s1049 + $0x3c8] sm:$0xff]
        %v1172 = vld [vmem:[%s1049 + $0x3d0] sm:$0xff]
        %v1173 = vld [vmem:[%s1049 + $0x3d8] sm:$0xff]
        %v1174 = vld [vmem:[%s1049 + $0x3e0] sm:$0xff]
        %v1175 = vld [vmem:[%s1049 + $0x3e8] sm:$0xff]
        %v1176 = vld [vmem:[%s1049 + $0x3f0] sm:$0xff]
        %v1177 = vld [vmem:[%s1049 + $0x3f8] sm:$0xff]
        %v1178 = vld [vmem:[%s1049 + $0x400] sm:$0xff]
        %v1179 = vld [vmem:[%s1049 + $0x408] sm:$0xff]
        %v1180 = vld [vmem:[%s1049 + $0x410] sm:$0xff]
        %v1181 = vld [vmem:[%s1049 + $0x418] sm:$0xff]
        %v1182 = vld [vmem:[%s1049 + $0x420] sm:$0xff]
        %v1183 = vld [vmem:[%s1049 + $0x428] sm:$0xff]
        %v1184 = vld [vmem:[%s1049 + $0x430] sm:$0xff]
        %v1185 = vld [vmem:[%s1049 + $0x438] sm:$0xff]
        %v1186 = vld [vmem:[%s1049 + $0x440] sm:$0xff]
        %v1187 = vld [vmem:[%s1049 + $0x448] sm:$0xff]
        %v1188 = vld [vmem:[%s1049 + $0x450] sm:$0xff]
        %v1189 = vld [vmem:[%s1049 + $0x458] sm:$0xff]
        %v1190 = vld [vmem:[%s1049 + $0x460] sm:$0xff]
        %v1191 = vld [vmem:[%s1049 + $0x468] sm:$0xff]
        %v1192 = vld [vmem:[%s1049 + $0x470] sm:$0xff]
        %v1193 = vld [vmem:[%s1049 + $0x478] sm:$0xff]
        %vm1203 = vcmask 1046528
        %v1204 = vrot.slane %v1043, 1
        %v1205 = vrot.slane %v896, 1
        %v1206 = vsel %vm1203, %v1204, %v1205
        %v1207 = vrot.slane %v1044, 1
        %v1208 = vrot.slane %v897, 1
        %v1209 = vsel %vm1203, %v1207, %v1208
        %v1210 = vrot.slane %v1045, 1
        %v1211 = vrot.slane %v898, 1
        %v1212 = vsel %vm1203, %v1210, %v1211
        %v1213 = vrot.slane %v1046, 1
        %v1214 = vsel %vm1203, %v1205, %v1213
        %v1215 = vrot.slane %v1047, 1
        %v1216 = vsel %vm1203, %v1208, %v1215
        %v1217 = vrot.slane %v1048, 1
        %v1218 = vsel %vm1203, %v1211, %v1217
        %v1223 = vsel %vm739, %v1212, 0
        %v1225 = vsel %vm739, %v1218, 0
        %1227 = vmatprep.subr.mxu0 %v1051
        %1228 = vmatpush1.msra.mxu0 %v1050
        %1229 = vmatprep.subr.mxu0 %v1055
        %1230 = vmatpush1.msra.mxu0 %v1054
        %1231 = vmatprep.subr.mxu0 %v1059
        %1232 = vmatpush1.msra.mxu0 %v1058
        %1233 = vmatprep.subr.mxu0 %v1063
        %1234 = vmatpush1.msra.mxu0 %v1062
        %1235 = vmatprep.subr.mxu0 %v1067
        %1236 = vmatpush1.msra.mxu0 %v1066
        %1237 = vmatprep.subr.mxu0 %v1071
        %1238 = vmatpush1.msra.mxu0 %v1070
        %1239 = vmatprep.subr.mxu0 %v1075
        %1240 = vmatpush1.msra.mxu0 %v1074
        %1241 = vmatprep.subr.mxu0 %v1079
        %1242 = vmatpush1.msra.mxu0 %v1078
        %1243 = vmatprep.subr.mxu0 %v1083
        %1244 = vmatpush1.msra.mxu0 %v1082
        %1245 = vmatprep.subr.mxu0 %v1087
        %1246 = vmatpush1.msra.mxu0 %v1086
        %1247 = vmatprep.subr.mxu0 %v1091
        %1248 = vmatpush1.msra.mxu0 %v1090
        %1249 = vmatprep.subr.mxu0 %v1095
        %1250 = vmatpush1.msra.mxu0 %v1094
        %1251 = vmatprep.subr.mxu0 %v1099
        %1252 = vmatpush1.msra.mxu0 %v1098
        %1253 = vmatprep.subr.mxu0 %v1103
        %1254 = vmatpush1.msra.mxu0 %v1102
        %1255 = vmatprep.subr.mxu0 %v1107
        %1256 = vmatpush1.msra.mxu0 %v1106
        %1257 = vmatprep.subr.mxu0 %v1111
        %1258 = vmatpush1.msra.mxu0 %v1110
        %1259 = vmatprep.subr.mxu0 %v1115
        %1260 = vmatpush1.msra.mxu0 %v1114
        %1261 = vmatprep.subr.mxu0 %v1119
        %1262 = vmatpush1.msra.mxu0 %v1118
        %1263 = vmatprep.subr.mxu0 %v1123
        %1264 = vmatpush1.msra.mxu0 %v1122
        %1265 = vmatprep.subr.mxu0 %v1127
        %1266 = vmatpush1.msra.mxu0 %v1126
        %1267 = vmatprep.subr.mxu0 %v1131
        %1268 = vmatpush1.msra.mxu0 %v1130
        %1269 = vmatprep.subr.mxu0 %v1135
        %1270 = vmatpush1.msra.mxu0 %v1134
        %1271 = vmatprep.subr.mxu0 %v1139
        %1272 = vmatpush1.msra.mxu0 %v1138
        %1273 = vmatprep.subr.mxu0 %v1143
        %1274 = vmatpush1.msra.mxu0 %v1142
        %1275 = vmatprep.subr.mxu0 %v1147
        %1276 = vmatpush1.msra.mxu0 %v1146
        %1277 = vmatprep.subr.mxu0 %v1151
        %1278 = vmatpush1.msra.mxu0 %v1150
        %1279 = vmatprep.subr.mxu0 %v1155
        %1280 = vmatpush1.msra.mxu0 %v1154
        %1281 = vmatprep.subr.mxu0 %v1159
        %1282 = vmatpush1.msra.mxu0 %v1158
        %1283 = vmatprep.subr.mxu0 %v1163
        %1284 = vmatpush1.msra.mxu0 %v1162
        %1285 = vmatprep.subr.mxu0 %v1167
        %1286 = vmatpush1.msra.mxu0 %v1166
        %1287 = vmatprep.subr.mxu0 %v1171
        %1288 = vmatpush1.msra.mxu0 %v1170
        %1289 = vmatprep.subr.mxu0 %v1175
        %1290 = vmatpush1.msra.mxu0 %v1174
        %1291 = vmatprep.mubr.f32.mxu0 %v1209
        %1292 = vmatmul.mubr.f32.gmra.mrb[0].mxu0 %v1206
        %v1293 = vpop.f32.mrb[0].mxu0
        %v1294 = vadd.f32 0.0, %v1293
        %v1295 = vpop.f32.mrb[0].mxu0
        %v1296 = vadd.f32 0.0, %v1295
        %1297 = vmatprep.mubr.f32.mxu0 %v1216
        %1298 = vmatmul.mubr.f32.gmra.mrb[0].mxu0 %v1214
        %v1299 = vpop.f32.mrb[0].mxu0
        %v1300 = vadd.f32 0.0, %v1299
        %v1301 = vpop.f32.mrb[0].mxu0
        %v1302 = vadd.f32 0.0, %v1301
        %1303 = vdwg.mxu0
        %1304 = vmatprep.subr.mxu0 %v1179
        %1305 = vmatpush1.msra.mxu0 %v1178
        %1306 = vmatprep.subr.mxu0 %v1183
        %1307 = vmatpush1.msra.mxu0 %v1182
        %1308 = vmatprep.subr.mxu0 %v1187
        %1309 = vmatpush1.msra.mxu0 %v1186
        %1310 = vmatprep.subr.mxu0 %v1191
        %1311 = vmatpush1.msra.mxu0 %v1190
        %1312 = vmatprep.subr.mxu0 0.0
        %1313 = vmatpush1.msra.mxu0 0.0
        %1314 = vmatprep.subr.mxu0 0.0
        %1315 = vmatpush1.msra.mxu0 0.0
        %1316 = vmatprep.subr.mxu0 0.0
        %1317 = vmatpush1.msra.mxu0 0.0
        %1318 = vmatprep.subr.mxu0 0.0
        %1319 = vmatpush1.msra.mxu0 0.0
        %1320 = vmatprep.subr.mxu0 0.0
        %1321 = vmatpush1.msra.mxu0 0.0
        %1322 = vmatprep.subr.mxu0 0.0
        %1323 = vmatpush1.msra.mxu0 0.0
        %1324 = vmatprep.subr.mxu0 0.0
        %1325 = vmatpush1.msra.mxu0 0.0
        %1326 = vmatprep.subr.mxu0 0.0
        %1327 = vmatpush1.msra.mxu0 0.0
        %1328 = vmatprep.subr.mxu0 0.0
        %1329 = vmatpush1.msra.mxu0 0.0
        %1330 = vmatprep.subr.mxu0 0.0
        %1331 = vmatpush1.msra.mxu0 0.0
        %1332 = vmatprep.subr.mxu0 0.0
        %1333 = vmatpush1.msra.mxu0 0.0
        %1334 = vmatprep.subr.mxu0 0.0
        %1335 = vmatpush1.msra.mxu0 0.0
        %1336 = vmatprep.subr.mxu0 0.0
        %1337 = vmatpush1.msra.mxu0 0.0
        %1338 = vmatprep.subr.mxu0 0.0
        %1339 = vmatpush1.msra.mxu0 0.0
        %1340 = vmatprep.subr.mxu0 0.0
        %1341 = vmatpush1.msra.mxu0 0.0
        %1342 = vmatprep.subr.mxu0 0.0
        %1343 = vmatpush1.msra.mxu0 0.0
        %1344 = vmatprep.subr.mxu0 0.0
        %1345 = vmatpush1.msra.mxu0 0.0
        %1346 = vmatprep.subr.mxu0 0.0
        %1347 = vmatpush1.msra.mxu0 0.0
        %1348 = vmatprep.subr.mxu0 0.0
        %1349 = vmatpush1.msra.mxu0 0.0
        %1350 = vmatprep.subr.mxu0 0.0
        %1351 = vmatpush1.msra.mxu0 0.0
        %1352 = vmatprep.subr.mxu0 0.0
        %1353 = vmatpush1.msra.mxu0 0.0
        %1354 = vmatprep.subr.mxu0 0.0
        %1355 = vmatpush1.msra.mxu0 0.0
        %1356 = vmatprep.subr.mxu0 0.0
        %1357 = vmatpush1.msra.mxu0 0.0
        %1358 = vmatprep.subr.mxu0 0.0
        %1359 = vmatpush1.msra.mxu0 0.0
        %1360 = vmatprep.subr.mxu0 0.0
        %1361 = vmatpush1.msra.mxu0 0.0
        %1362 = vmatprep.subr.mxu0 0.0
        %1363 = vmatpush1.msra.mxu0 0.0
        %1364 = vmatprep.subr.mxu0 0.0
        %1365 = vmatpush1.msra.mxu0 0.0
        %1366 = vmatprep.subr.mxu0 0.0
        %1367 = vmatpush1.msra.mxu0 0.0
        %1368 = vmatprep.mubr.f32.mxu0 0.0
        %1369 = vmatmul.mubr.f32.gmra.mrb[0].mxu0 %v1223
        %v1370 = vpop.f32.mrb[0].mxu0
        %v1371 = vadd.f32 %v1294, %v1370
        %v1372 = vpop.f32.mrb[0].mxu0
        %v1373 = vadd.f32 %v1296, %v1372
        %1374 = vmatprep.mubr.f32.mxu0 0.0
        %1375 = vmatmul.mubr.f32.gmra.mrb[0].mxu0 %v1225
        %v1376 = vpop.f32.mrb[0].mxu0
        %v1377 = vadd.f32 %v1300, %v1376
        %v1378 = vpop.f32.mrb[0].mxu0
        %v1379 = vadd.f32 %v1302, %v1378
        %1380 = vdwg.mxu0
        %1381 = vmatprep.subr.mxu0 %v1053
        %1382 = vmatpush1.msra.mxu0 %v1052
        %1383 = vmatprep.subr.mxu0 %v1057
        %1384 = vmatpush1.msra.mxu0 %v1056
        %1385 = vmatprep.subr.mxu0 %v1061
        %1386 = vmatpush1.msra.mxu0 %v1060
        %1387 = vmatprep.subr.mxu0 %v1065
        %1388 = vmatpush1.msra.mxu0 %v1064
        %1389 = vmatprep.subr.mxu0 %v1069
        %1390 = vmatpush1.msra.mxu0 %v1068
        %1391 = vmatprep.subr.mxu0 %v1073
        %1392 = vmatpush1.msra.mxu0 %v1072
        %1393 = vmatprep.subr.mxu0 %v1077
        %1394 = vmatpush1.msra.mxu0 %v1076
        %1395 = vmatprep.subr.mxu0 %v1081
        %1396 = vmatpush1.msra.mxu0 %v1080
        %1397 = vmatprep.subr.mxu0 %v1085
        %1398 = vmatpush1.msra.mxu0 %v1084
        %1399 = vmatprep.subr.mxu0 %v1089
        %1400 = vmatpush1.msra.mxu0 %v1088
        %1401 = vmatprep.subr.mxu0 %v1093
        %1402 = vmatpush1.msra.mxu0 %v1092
        %1403 = vmatprep.subr.mxu0 %v1097
        %1404 = vmatpush1.msra.mxu0 %v1096
        %1405 = vmatprep.subr.mxu0 %v1101
        %1406 = vmatpush1.msra.mxu0 %v1100
        %1407 = vmatprep.subr.mxu0 %v1105
        %1408 = vmatpush1.msra.mxu0 %v1104
        %1409 = vmatprep.subr.mxu0 %v1109
        %1410 = vmatpush1.msra.mxu0 %v1108
        %1411 = vmatprep.subr.mxu0 %v1113
        %1412 = vmatpush1.msra.mxu0 %v1112
        %1413 = vmatprep.subr.mxu0 %v1117
        %1414 = vmatpush1.msra.mxu0 %v1116
        %1415 = vmatprep.subr.mxu0 %v1121
        %1416 = vmatpush1.msra.mxu0 %v1120
        %1417 = vmatprep.subr.mxu0 %v1125
        %1418 = vmatpush1.msra.mxu0 %v1124
        %1419 = vmatprep.subr.mxu0 %v1129
        %1420 = vmatpush1.msra.mxu0 %v1128
        %1421 = vmatprep.subr.mxu0 %v1133
        %1422 = vmatpush1.msra.mxu0 %v1132
        %1423 = vmatprep.subr.mxu0 %v1137
        %1424 = vmatpush1.msra.mxu0 %v1136
        %1425 = vmatprep.subr.mxu0 %v1141
        %1426 = vmatpush1.msra.mxu0 %v1140
        %1427 = vmatprep.subr.mxu0 %v1145
        %1428 = vmatpush1.msra.mxu0 %v1144
        %1429 = vmatprep.subr.mxu0 %v1149
        %1430 = vmatpush1.msra.mxu0 %v1148
        %1431 = vmatprep.subr.mxu0 %v1153
        %1432 = vmatpush1.msra.mxu0 %v1152
        %1433 = vmatprep.subr.mxu0 %v1157
        %1434 = vmatpush1.msra.mxu0 %v1156
        %1435 = vmatprep.subr.mxu0 %v1161
        %1436 = vmatpush1.msra.mxu0 %v1160
        %1437 = vmatprep.subr.mxu0 %v1165
        %1438 = vmatpush1.msra.mxu0 %v1164
        %1439 = vmatprep.subr.mxu0 %v1169
        %1440 = vmatpush1.msra.mxu0 %v1168
        %1441 = vmatprep.subr.mxu0 %v1173
        %1442 = vmatpush1.msra.mxu0 %v1172
        %1443 = vmatprep.subr.mxu0 %v1177
        %1444 = vmatpush1.msra.mxu0 %v1176
        %1445 = vmatprep.mubr.f32.mxu0 %v1209
        %1446 = vmatmul.mubr.f32.gmra.mrb[0].mxu0 %v1206
        %v1447 = vpop.f32.mrb[0].mxu0
        %v1448 = vadd.f32 0.0, %v1447
        %v1449 = vpop.f32.mrb[0].mxu0
        %v1450 = vadd.f32 0.0, %v1449
        %1451 = vmatprep.mubr.f32.mxu0 %v1216
        %1452 = vmatmul.mubr.f32.gmra.mrb[0].mxu0 %v1214
        %v1453 = vpop.f32.mrb[0].mxu0
        %v1454 = vadd.f32 0.0, %v1453
        %v1455 = vpop.f32.mrb[0].mxu0
        %v1456 = vadd.f32 0.0, %v1455
        %1457 = vdwg.mxu0
        %1458 = vmatprep.subr.mxu0 %v1181
        %1459 = vmatpush1.msra.mxu0 %v1180
        %1460 = vmatprep.subr.mxu0 %v1185
        %1461 = vmatpush1.msra.mxu0 %v1184
        %1462 = vmatprep.subr.mxu0 %v1189
        %1463 = vmatpush1.msra.mxu0 %v1188
        %1464 = vmatprep.subr.mxu0 %v1193
        %1465 = vmatpush1.msra.mxu0 %v1192
        %1466 = vmatprep.subr.mxu0 0.0
        %1467 = vmatpush1.msra.mxu0 0.0
        %1468 = vmatprep.subr.mxu0 0.0
        %1469 = vmatpush1.msra.mxu0 0.0
        %1470 = vmatprep.subr.mxu0 0.0
        %1471 = vmatpush1.msra.mxu0 0.0
        %1472 = vmatprep.subr.mxu0 0.0
        %1473 = vmatpush1.msra.mxu0 0.0
        %1474 = vmatprep.subr.mxu0 0.0
        %1475 = vmatpush1.msra.mxu0 0.0
        %1476 = vmatprep.subr.mxu0 0.0
        %1477 = vmatpush1.msra.mxu0 0.0
        %1478 = vmatprep.subr.mxu0 0.0
        %1479 = vmatpush1.msra.mxu0 0.0
        %1480 = vmatprep.subr.mxu0 0.0
        %1481 = vmatpush1.msra.mxu0 0.0
        %1482 = vmatprep.subr.mxu0 0.0
        %1483 = vmatpush1.msra.mxu0 0.0
        %1484 = vmatprep.subr.mxu0 0.0
        %1485 = vmatpush1.msra.mxu0 0.0
        %1486 = vmatprep.subr.mxu0 0.0
        %1487 = vmatpush1.msra.mxu0 0.0
        %1488 = vmatprep.subr.mxu0 0.0
        %1489 = vmatpush1.msra.mxu0 0.0
        %1490 = vmatprep.subr.mxu0 0.0
        %1491 = vmatpush1.msra.mxu0 0.0
        %1492 = vmatprep.subr.mxu0 0.0
        %1493 = vmatpush1.msra.mxu0 0.0
        %1494 = vmatprep.subr.mxu0 0.0
        %1495 = vmatpush1.msra.mxu0 0.0
        %1496 = vmatprep.subr.mxu0 0.0
        %1497 = vmatpush1.msra.mxu0 0.0
        %1498 = vmatprep.subr.mxu0 0.0
        %1499 = vmatpush1.msra.mxu0 0.0
        %1500 = vmatprep.subr.mxu0 0.0
        %1501 = vmatpush1.msra.mxu0 0.0
        %1502 = vmatprep.subr.mxu0 0.0
        %1503 = vmatpush1.msra.mxu0 0.0
        %1504 = vmatprep.subr.mxu0 0.0
        %1505 = vmatpush1.msra.mxu0 0.0
        %1506 = vmatprep.subr.mxu0 0.0
        %1507 = vmatpush1.msra.mxu0 0.0
        %1508 = vmatprep.subr.mxu0 0.0
        %1509 = vmatpush1.msra.mxu0 0.0
        %1510 = vmatprep.subr.mxu0 0.0
        %1511 = vmatpush1.msra.mxu0 0.0
        %1512 = vmatprep.subr.mxu0 0.0
        %1513 = vmatpush1.msra.mxu0 0.0
        %1514 = vmatprep.subr.mxu0 0.0
        %1515 = vmatpush1.msra.mxu0 0.0
        %1516 = vmatprep.subr.mxu0 0.0
        %1517 = vmatpush1.msra.mxu0 0.0
        %1518 = vmatprep.subr.mxu0 0.0
        %1519 = vmatpush1.msra.mxu0 0.0
        %1520 = vmatprep.subr.mxu0 0.0
        %1521 = vmatpush1.msra.mxu0 0.0
        %1522 = vmatprep.mubr.f32.mxu0 0.0
        %1523 = vmatmul.mubr.f32.gmra.mrb[0].mxu0 %v1223
        %v1524 = vpop.f32.mrb[0].mxu0
        %v1525 = vadd.f32 %v1448, %v1524
        %v1526 = vpop.f32.mrb[0].mxu0
        %v1527 = vadd.f32 %v1450, %v1526
        %1528 = vmatprep.mubr.f32.mxu0 0.0
        %1529 = vmatmul.mubr.f32.gmra.mrb[0].mxu0 %v1225
        %v1530 = vpop.f32.mrb[0].mxu0
        %v1531 = vadd.f32 %v1454, %v1530
        %v1532 = vpop.f32.mrb[0].mxu0
        %v1533 = vadd.f32 %v1456, %v1532
        %1534 = vdwg.mxu0
        %v1536 = vsel %vm739, %v895, 0
        %v1538 = vsel %vm739, %v898, 0
        %1540 = vmatprep.subr.mxu0 %v900
        %1541 = vmatpush1.msra.mxu0 %v899
        %1542 = vmatprep.subr.mxu0 %v904
        %1543 = vmatpush1.msra.mxu0 %v903
        %1544 = vmatprep.subr.mxu0 %v908
        %1545 = vmatpush1.msra.mxu0 %v907
        %1546 = vmatprep.subr.mxu0 %v912
        %1547 = vmatpush1.msra.mxu0 %v911
        %1548 = vmatprep.subr.mxu0 %v916
        %1549 = vmatpush1.msra.mxu0 %v915
        %1550 = vmatprep.subr.mxu0 %v920
        %1551 = vmatpush1.msra.mxu0 %v919
        %1552 = vmatprep.subr.mxu0 %v924
        %1553 = vmatpush1.msra.mxu0 %v923
        %1554 = vmatprep.subr.mxu0 %v928
        %1555 = vmatpush1.msra.mxu0 %v927
        %1556 = vmatprep.subr.mxu0 %v932
        %1557 = vmatpush1.msra.mxu0 %v931
        %1558 = vmatprep.subr.mxu0 %v936
        %1559 = vmatpush1.msra.mxu0 %v935
        %1560 = vmatprep.subr.mxu0 %v940
        %1561 = vmatpush1.msra.mxu0 %v939
        %1562 = vmatprep.subr.mxu0 %v944
        %1563 = vmatpush1.msra.mxu0 %v943
        %1564 = vmatprep.subr.mxu0 %v948
        %1565 = vmatpush1.msra.mxu0 %v947
        %1566 = vmatprep.subr.mxu0 %v952
        %1567 = vmatpush1.msra.mxu0 %v951
        %1568 = vmatprep.subr.mxu0 %v956
        %1569 = vmatpush1.msra.mxu0 %v955
        %1570 = vmatprep.subr.mxu0 %v960
        %1571 = vmatpush1.msra.mxu0 %v959
        %1572 = vmatprep.subr.mxu0 %v964
        %1573 = vmatpush1.msra.mxu0 %v963
        %1574 = vmatprep.subr.mxu0 %v968
        %1575 = vmatpush1.msra.mxu0 %v967
        %1576 = vmatprep.subr.mxu0 %v972
        %1577 = vmatpush1.msra.mxu0 %v971
        %1578 = vmatprep.subr.mxu0 %v976
        %1579 = vmatpush1.msra.mxu0 %v975
        %1580 = vmatprep.subr.mxu0 %v980
        %1581 = vmatpush1.msra.mxu0 %v979
        %1582 = vmatprep.subr.mxu0 %v984
        %1583 = vmatpush1.msra.mxu0 %v983
        %1584 = vmatprep.subr.mxu0 %v988
        %1585 = vmatpush1.msra.mxu0 %v987
        %1586 = vmatprep.subr.mxu0 %v992
        %1587 = vmatpush1.msra.mxu0 %v991
        %1588 = vmatprep.subr.mxu0 %v996
        %1589 = vmatpush1.msra.mxu0 %v995
        %1590 = vmatprep.subr.mxu0 %v1000
        %1591 = vmatpush1.msra.mxu0 %v999
        %1592 = vmatprep.subr.mxu0 %v1004
        %1593 = vmatpush1.msra.mxu0 %v1003
        %1594 = vmatprep.subr.mxu0 %v1008
        %1595 = vmatpush1.msra.mxu0 %v1007
        %1596 = vmatprep.subr.mxu0 %v1012
        %1597 = vmatpush1.msra.mxu0 %v1011
        %1598 = vmatprep.subr.mxu0 %v1016
        %1599 = vmatpush1.msra.mxu0 %v1015
        %1600 = vmatprep.subr.mxu0 %v1020
        %1601 = vmatpush1.msra.mxu0 %v1019
        %1602 = vmatprep.subr.mxu0 %v1024
        %1603 = vmatpush1.msra.mxu0 %v1023
        %1604 = vmatprep.mubr.f32.mxu0 %v894
        %1605 = vmatmul.mubr.f32.gmra.mrb[0].mxu0 %v893
        %v1606 = vpop.f32.mrb[0].mxu0
        %v1607 = vadd.f32 %v1371, %v1606
        %v1608 = vpop.f32.mrb[0].mxu0
        %v1609 = vadd.f32 %v1373, %v1608
        %1610 = vmatprep.mubr.f32.mxu0 %v897
        %1611 = vmatmul.mubr.f32.gmra.mrb[0].mxu0 %v896
        %v1612 = vpop.f32.mrb[0].mxu0
        %v1613 = vadd.f32 %v1377, %v1612
        %v1614 = vpop.f32.mrb[0].mxu0
        %v1615 = vadd.f32 %v1379, %v1614
        %1616 = vdwg.mxu0
        %1617 = vmatprep.subr.mxu0 %v1028
        %1618 = vmatpush1.msra.mxu0 %v1027
        %1619 = vmatprep.subr.mxu0 %v1032
        %1620 = vmatpush1.msra.mxu0 %v1031
        %1621 = vmatprep.subr.mxu0 %v1036
        %1622 = vmatpush1.msra.mxu0 %v1035
        %1623 = vmatprep.subr.mxu0 %v1040
        %1624 = vmatpush1.msra.mxu0 %v1039
        %1625 = vmatprep.subr.mxu0 0.0
        %1626 = vmatpush1.msra.mxu0 0.0
        %1627 = vmatprep.subr.mxu0 0.0
        %1628 = vmatpush1.msra.mxu0 0.0
        %1629 = vmatprep.subr.mxu0 0.0
        %1630 = vmatpush1.msra.mxu0 0.0
        %1631 = vmatprep.subr.mxu0 0.0
        %1632 = vmatpush1.msra.mxu0 0.0
        %1633 = vmatprep.subr.mxu0 0.0
        %1634 = vmatpush1.msra.mxu0 0.0
        %1635 = vmatprep.subr.mxu0 0.0
        %1636 = vmatpush1.msra.mxu0 0.0
        %1637 = vmatprep.subr.mxu0 0.0
        %1638 = vmatpush1.msra.mxu0 0.0
        %1639 = vmatprep.subr.mxu0 0.0
        %1640 = vmatpush1.msra.mxu0 0.0
        %1641 = vmatprep.subr.mxu0 0.0
        %1642 = vmatpush1.msra.mxu0 0.0
        %1643 = vmatprep.subr.mxu0 0.0
        %1644 = vmatpush1.msra.mxu0 0.0
        %1645 = vmatprep.subr.mxu0 0.0
        %1646 = vmatpush1.msra.mxu0 0.0
        %1647 = vmatprep.subr.mxu0 0.0
        %1648 = vmatpush1.msra.mxu0 0.0
        %1649 = vmatprep.subr.mxu0 0.0
        %1650 = vmatpush1.msra.mxu0 0.0
        %1651 = vmatprep.subr.mxu0 0.0
        %1652 = vmatpush1.msra.mxu0 0.0
        %1653 = vmatprep.subr.mxu0 0.0
        %1654 = vmatpush1.msra.mxu0 0.0
        %1655 = vmatprep.subr.mxu0 0.0
        %1656 = vmatpush1.msra.mxu0 0.0
        %1657 = vmatprep.subr.mxu0 0.0
        %1658 = vmatpush1.msra.mxu0 0.0
        %1659 = vmatprep.subr.mxu0 0.0
        %1660 = vmatpush1.msra.mxu0 0.0
        %1661 = vmatprep.subr.mxu0 0.0
        %1662 = vmatpush1.msra.mxu0 0.0
        %1663 = vmatprep.subr.mxu0 0.0
        %1664 = vmatpush1.msra.mxu0 0.0
        %1665 = vmatprep.subr.mxu0 0.0
        %1666 = vmatpush1.msra.mxu0 0.0
        %1667 = vmatprep.subr.mxu0 0.0
        %1668 = vmatpush1.msra.mxu0 0.0
        %1669 = vmatprep.subr.mxu0 0.0
        %1670 = vmatpush1.msra.mxu0 0.0
        %1671 = vmatprep.subr.mxu0 0.0
        %1672 = vmatpush1.msra.mxu0 0.0
        %1673 = vmatprep.subr.mxu0 0.0
        %1674 = vmatpush1.msra.mxu0 0.0
        %1675 = vmatprep.subr.mxu0 0.0
        %1676 = vmatpush1.msra.mxu0 0.0
        %1677 = vmatprep.subr.mxu0 0.0
        %1678 = vmatpush1.msra.mxu0 0.0
        %1679 = vmatprep.subr.mxu0 0.0
        %1680 = vmatpush1.msra.mxu0 0.0
        %1681 = vmatprep.mubr.f32.mxu0 0.0
        %1682 = vmatmul.mubr.f32.gmra.mrb[0].mxu0 %v1536
        %v1683 = vpop.f32.mrb[0].mxu0
        %v1684 = vadd.f32 %v1607, %v1683
        %v1685 = vpop.f32.mrb[0].mxu0
        %v1686 = vadd.f32 %v1609, %v1685
        %1687 = vmatprep.mubr.f32.mxu0 0.0
        %1688 = vmatmul.mubr.f32.gmra.mrb[0].mxu0 %v1538
        %v1689 = vpop.f32.mrb[0].mxu0
        %v1690 = vadd.f32 %v1613, %v1689
        %v1691 = vpop.f32.mrb[0].mxu0
        %v1692 = vadd.f32 %v1615, %v1691
        %1693 = vdwg.mxu0
        %1694 = vmatprep.subr.mxu0 %v902
        %1695 = vmatpush1.msra.mxu0 %v901
        %1696 = vmatprep.subr.mxu0 %v906
        %1697 = vmatpush1.msra.mxu0 %v905
        %1698 = vmatprep.subr.mxu0 %v910
        %1699 = vmatpush1.msra.mxu0 %v909
        %1700 = vmatprep.subr.mxu0 %v914
        %1701 = vmatpush1.msra.mxu0 %v913
        %1702 = vmatprep.subr.mxu0 %v918
        %1703 = vmatpush1.msra.mxu0 %v917
        %1704 = vmatprep.subr.mxu0 %v922
        %1705 = vmatpush1.msra.mxu0 %v921
        %1706 = vmatprep.subr.mxu0 %v926
        %1707 = vmatpush1.msra.mxu0 %v925
        %1708 = vmatprep.subr.mxu0 %v930
        %1709 = vmatpush1.msra.mxu0 %v929
        %1710 = vmatprep.subr.mxu0 %v934
        %1711 = vmatpush1.msra.mxu0 %v933
        %1712 = vmatprep.subr.mxu0 %v938
        %1713 = vmatpush1.msra.mxu0 %v937
        %1714 = vmatprep.subr.mxu0 %v942
        %1715 = vmatpush1.msra.mxu0 %v941
        %1716 = vmatprep.subr.mxu0 %v946
        %1717 = vmatpush1.msra.mxu0 %v945
        %1718 = vmatprep.subr.mxu0 %v950
        %1719 = vmatpush1.msra.mxu0 %v949
        %1720 = vmatprep.subr.mxu0 %v954
        %1721 = vmatpush1.msra.mxu0 %v953
        %1722 = vmatprep.subr.mxu0 %v958
        %1723 = vmatpush1.msra.mxu0 %v957
        %1724 = vmatprep.subr.mxu0 %v962
        %1725 = vmatpush1.msra.mxu0 %v961
        %1726 = vmatprep.subr.mxu0 %v966
        %1727 = vmatpush1.msra.mxu0 %v965
        %1728 = vmatprep.subr.mxu0 %v970
        %1729 = vmatpush1.msra.mxu0 %v969
        %1730 = vmatprep.subr.mxu0 %v974
        %1731 = vmatpush1.msra.mxu0 %v973
        %1732 = vmatprep.subr.mxu0 %v978
        %1733 = vmatpush1.msra.mxu0 %v977
        %1734 = vmatprep.subr.mxu0 %v982
        %1735 = vmatpush1.msra.mxu0 %v981
        %1736 = vmatprep.subr.mxu0 %v986
        %1737 = vmatpush1.msra.mxu0 %v985
        %1738 = vmatprep.subr.mxu0 %v990
        %1739 = vmatpush1.msra.mxu0 %v989
        %1740 = vmatprep.subr.mxu0 %v994
        %1741 = vmatpush1.msra.mxu0 %v993
        %1742 = vmatprep.subr.mxu0 %v998
        %1743 = vmatpush1.msra.mxu0 %v997
        %1744 = vmatprep.subr.mxu0 %v1002
        %1745 = vmatpush1.msra.mxu0 %v1001
        %1746 = vmatprep.subr.mxu0 %v1006
        %1747 = vmatpush1.msra.mxu0 %v1005
        %1748 = vmatprep.subr.mxu0 %v1010
        %1749 = vmatpush1.msra.mxu0 %v1009
        %1750 = vmatprep.subr.mxu0 %v1014
        %1751 = vmatpush1.msra.mxu0 %v1013
        %1752 = vmatprep.subr.mxu0 %v1018
        %1753 = vmatpush1.msra.mxu0 %v1017
        %1754 = vmatprep.subr.mxu0 %v1022
        %1755 = vmatpush1.msra.mxu0 %v1021
        %1756 = vmatprep.subr.mxu0 %v1026
        %1757 = vmatpush1.msra.mxu0 %v1025
        %1758 = vmatprep.mubr.f32.mxu0 %v894
        %1759 = vmatmul.mubr.f32.gmra.mrb[0].mxu0 %v893
        %v1760 = vpop.f32.mrb[0].mxu0
        %v1761 = vadd.f32 %v1525, %v1760
        %v1762 = vpop.f32.mrb[0].mxu0
        %v1763 = vadd.f32 %v1527, %v1762
        %1764 = vmatprep.mubr.f32.mxu0 %v897
        %1765 = vmatmul.mubr.f32.gmra.mrb[0].mxu0 %v896
        %v1766 = vpop.f32.mrb[0].mxu0
        %v1767 = vadd.f32 %v1531, %v1766
        %v1768 = vpop.f32.mrb[0].mxu0
        %v1769 = vadd.f32 %v1533, %v1768
        %1770 = vdwg.mxu0
        %1771 = vmatprep.subr.mxu0 %v1030
        %1772 = vmatpush1.msra.mxu0 %v1029
        %1773 = vmatprep.subr.mxu0 %v1034
        %1774 = vmatpush1.msra.mxu0 %v1033
        %1775 = vmatprep.subr.mxu0 %v1038
        %1776 = vmatpush1.msra.mxu0 %v1037
        %1777 = vmatprep.subr.mxu0 %v1042
        %1778 = vmatpush1.msra.mxu0 %v1041
        %1779 = vmatprep.subr.mxu0 0.0
        %1780 = vmatpush1.msra.mxu0 0.0
        %1781 = vmatprep.subr.mxu0 0.0
        %1782 = vmatpush1.msra.mxu0 0.0
        %1783 = vmatprep.subr.mxu0 0.0
        %1784 = vmatpush1.msra.mxu0 0.0
        %1785 = vmatprep.subr.mxu0 0.0
        %1786 = vmatpush1.msra.mxu0 0.0
        %1787 = vmatprep.subr.mxu0 0.0
        %1788 = vmatpush1.msra.mxu0 0.0
        %1789 = vmatprep.subr.mxu0 0.0
        %1790 = vmatpush1.msra.mxu0 0.0
        %1791 = vmatprep.subr.mxu0 0.0
        %1792 = vmatpush1.msra.mxu0 0.0
        %1793 = vmatprep.subr.mxu0 0.0
        %1794 = vmatpush1.msra.mxu0 0.0
        %1795 = vmatprep.subr.mxu0 0.0
        %1796 = vmatpush1.msra.mxu0 0.0
        %1797 = vmatprep.subr.mxu0 0.0
        %1798 = vmatpush1.msra.mxu0 0.0
        %1799 = vmatprep.subr.mxu0 0.0
        %1800 = vmatpush1.msra.mxu0 0.0
        %1801 = vmatprep.subr.mxu0 0.0
        %1802 = vmatpush1.msra.mxu0 0.0
        %1803 = vmatprep.subr.mxu0 0.0
        %1804 = vmatpush1.msra.mxu0 0.0
        %1805 = vmatprep.subr.mxu0 0.0
        %1806 = vmatpush1.msra.mxu0 0.0
        %1807 = vmatprep.subr.mxu0 0.0
        %1808 = vmatpush1.msra.mxu0 0.0
        %1809 = vmatprep.subr.mxu0 0.0
        %1810 = vmatpush1.msra.mxu0 0.0
        %1811 = vmatprep.subr.mxu0 0.0
        %1812 = vmatpush1.msra.mxu0 0.0
        %1813 = vmatprep.subr.mxu0 0.0
        %1814 = vmatpush1.msra.mxu0 0.0
        %1815 = vmatprep.subr.mxu0 0.0
        %1816 = vmatpush1.msra.mxu0 0.0
        %1817 = vmatprep.subr.mxu0 0.0
        %1818 = vmatpush1.msra.mxu0 0.0
        %1819 = vmatprep.subr.mxu0 0.0
        %1820 = vmatpush1.msra.mxu0 0.0
        %1821 = vmatprep.subr.mxu0 0.0
        %1822 = vmatpush1.msra.mxu0 0.0
        %1823 = vmatprep.subr.mxu0 0.0
        %1824 = vmatpush1.msra.mxu0 0.0
        %1825 = vmatprep.subr.mxu0 0.0
        %1826 = vmatpush1.msra.mxu0 0.0
        %1827 = vmatprep.subr.mxu0 0.0
        %1828 = vmatpush1.msra.mxu0 0.0
        %1829 = vmatprep.subr.mxu0 0.0
        %1830 = vmatpush1.msra.mxu0 0.0
        %1831 = vmatprep.subr.mxu0 0.0
        %1832 = vmatpush1.msra.mxu0 0.0
        %1833 = vmatprep.subr.mxu0 0.0
        %1834 = vmatpush1.msra.mxu0 0.0
        %1835 = vmatprep.mubr.f32.mxu0 0.0
        %1836 = vmatmul.mubr.f32.gmra.mrb[0].mxu0 %v1536
        %v1837 = vpop.f32.mrb[0].mxu0
        %v1838 = vadd.f32 %v1761, %v1837
        %v1839 = vpop.f32.mrb[0].mxu0
        %v1840 = vadd.f32 %v1763, %v1839
        %1841 = vmatprep.mubr.f32.mxu0 0.0
        %1842 = vmatmul.mubr.f32.gmra.mrb[0].mxu0 %v1538
        %v1843 = vpop.f32.mrb[0].mxu0
        %v1844 = vadd.f32 %v1767, %v1843
        %v1845 = vpop.f32.mrb[0].mxu0
        %v1846 = vadd.f32 %v1769, %v1845
        %1847 = vdwg.mxu0
        %v1848 = vld [vmem:[#allocation3] sm:$0xfc]
        %v1849 = vld [vmem:[#allocation3 + $0x8] sm:$0xfc]
        %v1850 = vld [vmem:[#allocation3 + $0x10] sm:$0xfc]
        %v1851 = vld [vmem:[#allocation3 + $0x30] sm:$0x3]
        %v1852 = vld [vmem:[#allocation3 + $0x38] sm:$0x3]
        %v1853 = vld [vmem:[#allocation3 + $0x40] sm:$0x3]
        %s1854 = scalar_lea.vmem %s3, 2304
        %v1855 = vld [vmem:[%s1854] sm:$0xff]
        %v1856 = vld [vmem:[%s1854 + $0x8] sm:$0xff]
        %v1857 = vld [vmem:[%s1854 + $0x10] sm:$0xff]
        %v1858 = vld [vmem:[%s1854 + $0x18] sm:$0xff]
        %v1859 = vld [vmem:[%s1854 + $0x20] sm:$0xff]
        %v1860 = vld [vmem:[%s1854 + $0x28] sm:$0xff]
        %v1861 = vld [vmem:[%s1854 + $0x30] sm:$0xff]
        %v1862 = vld [vmem:[%s1854 + $0x38] sm:$0xff]
        %v1863 = vld [vmem:[%s1854 + $0x40] sm:$0xff]
        %v1864 = vld [vmem:[%s1854 + $0x48] sm:$0xff]
        %v1865 = vld [vmem:[%s1854 + $0x50] sm:$0xff]
        %v1866 = vld [vmem:[%s1854 + $0x58] sm:$0xff]
        %v1867 = vld [vmem:[%s1854 + $0x60] sm:$0xff]
        %v1868 = vld [vmem:[%s1854 + $0x68] sm:$0xff]
        %v1869 = vld [vmem:[%s1854 + $0x70] sm:$0xff]
        %v1870 = vld [vmem:[%s1854 + $0x78] sm:$0xff]
        %v1871 = vld [vmem:[%s1854 + $0x80] sm:$0xff]
        %v1872 = vld [vmem:[%s1854 + $0x88] sm:$0xff]
        %v1873 = vld [vmem:[%s1854 + $0x90] sm:$0xff]
        %v1874 = vld [vmem:[%s1854 + $0x98] sm:$0xff]
        %v1875 = vld [vmem:[%s1854 + $0xa0] sm:$0xff]
        %v1876 = vld [vmem:[%s1854 + $0xa8] sm:$0xff]
        %v1877 = vld [vmem:[%s1854 + $0xb0] sm:$0xff]
        %v1878 = vld [vmem:[%s1854 + $0xb8] sm:$0xff]
        %v1879 = vld [vmem:[%s1854 + $0xc0] sm:$0xff]
        %v1880 = vld [vmem:[%s1854 + $0xc8] sm:$0xff]
        %v1881 = vld [vmem:[%s1854 + $0xd0] sm:$0xff]
        %v1882 = vld [vmem:[%s1854 + $0xd8] sm:$0xff]
        %v1883 = vld [vmem:[%s1854 + $0xe0] sm:$0xff]
        %v1884 = vld [vmem:[%s1854 + $0xe8] sm:$0xff]
        %v1885 = vld [vmem:[%s1854 + $0xf0] sm:$0xff]
        %v1886 = vld [vmem:[%s1854 + $0xf8] sm:$0xff]
        %v1887 = vld [vmem:[%s1854 + $0x100] sm:$0xff]
        %v1888 = vld [vmem:[%s1854 + $0x108] sm:$0xff]
        %v1889 = vld [vmem:[%s1854 + $0x110] sm:$0xff]
        %v1890 = vld [vmem:[%s1854 + $0x118] sm:$0xff]
        %v1891 = vld [vmem:[%s1854 + $0x120] sm:$0xff]
        %v1892 = vld [vmem:[%s1854 + $0x128] sm:$0xff]
        %v1893 = vld [vmem:[%s1854 + $0x130] sm:$0xff]
        %v1894 = vld [vmem:[%s1854 + $0x138] sm:$0xff]
        %v1895 = vld [vmem:[%s1854 + $0x140] sm:$0xff]
        %v1896 = vld [vmem:[%s1854 + $0x148] sm:$0xff]
        %v1897 = vld [vmem:[%s1854 + $0x150] sm:$0xff]
        %v1898 = vld [vmem:[%s1854 + $0x158] sm:$0xff]
        %v1899 = vld [vmem:[%s1854 + $0x160] sm:$0xff]
        %v1900 = vld [vmem:[%s1854 + $0x168] sm:$0xff]
        %v1901 = vld [vmem:[%s1854 + $0x170] sm:$0xff]
        %v1902 = vld [vmem:[%s1854 + $0x178] sm:$0xff]
        %v1903 = vld [vmem:[%s1854 + $0x180] sm:$0xff]
        %v1904 = vld [vmem:[%s1854 + $0x188] sm:$0xff]
        %v1905 = vld [vmem:[%s1854 + $0x190] sm:$0xff]
        %v1906 = vld [vmem:[%s1854 + $0x198] sm:$0xff]
        %v1907 = vld [vmem:[%s1854 + $0x1a0] sm:$0xff]
        %v1908 = vld [vmem:[%s1854 + $0x1a8] sm:$0xff]
        %v1909 = vld [vmem:[%s1854 + $0x1b0] sm:$0xff]
        %v1910 = vld [vmem:[%s1854 + $0x1b8] sm:$0xff]
        %v1911 = vld [vmem:[%s1854 + $0x1c0] sm:$0xff]
        %v1912 = vld [vmem:[%s1854 + $0x1c8] sm:$0xff]
        %v1913 = vld [vmem:[%s1854 + $0x1d0] sm:$0xff]
        %v1914 = vld [vmem:[%s1854 + $0x1d8] sm:$0xff]
        %v1915 = vld [vmem:[%s1854 + $0x1e0] sm:$0xff]
        %v1916 = vld [vmem:[%s1854 + $0x1e8] sm:$0xff]
        %v1917 = vld [vmem:[%s1854 + $0x1f0] sm:$0xff]
        %v1918 = vld [vmem:[%s1854 + $0x1f8] sm:$0xff]
        %v1919 = vld [vmem:[%s1854 + $0x200] sm:$0xff]
        %v1920 = vld [vmem:[%s1854 + $0x208] sm:$0xff]
        %v1921 = vld [vmem:[%s1854 + $0x210] sm:$0xff]
        %v1922 = vld [vmem:[%s1854 + $0x218] sm:$0xff]
        %v1923 = vld [vmem:[%s1854 + $0x220] sm:$0xff]
        %v1924 = vld [vmem:[%s1854 + $0x228] sm:$0xff]
        %v1925 = vld [vmem:[%s1854 + $0x230] sm:$0xff]
        %v1926 = vld [vmem:[%s1854 + $0x238] sm:$0xff]
        %v1927 = vld [vmem:[%s1854 + $0x240] sm:$0xff]
        %v1928 = vld [vmem:[%s1854 + $0x248] sm:$0xff]
        %v1929 = vld [vmem:[%s1854 + $0x250] sm:$0xff]
        %v1930 = vld [vmem:[%s1854 + $0x258] sm:$0xff]
        %v1931 = vld [vmem:[%s1854 + $0x260] sm:$0xff]
        %v1932 = vld [vmem:[%s1854 + $0x268] sm:$0xff]
        %v1933 = vld [vmem:[%s1854 + $0x270] sm:$0xff]
        %v1934 = vld [vmem:[%s1854 + $0x278] sm:$0xff]
        %v1935 = vld [vmem:[%s1854 + $0x280] sm:$0xff]
        %v1936 = vld [vmem:[%s1854 + $0x288] sm:$0xff]
        %v1937 = vld [vmem:[%s1854 + $0x290] sm:$0xff]
        %v1938 = vld [vmem:[%s1854 + $0x298] sm:$0xff]
        %v1939 = vld [vmem:[%s1854 + $0x2a0] sm:$0xff]
        %v1940 = vld [vmem:[%s1854 + $0x2a8] sm:$0xff]
        %v1941 = vld [vmem:[%s1854 + $0x2b0] sm:$0xff]
        %v1942 = vld [vmem:[%s1854 + $0x2b8] sm:$0xff]
        %v1943 = vld [vmem:[%s1854 + $0x2c0] sm:$0xff]
        %v1944 = vld [vmem:[%s1854 + $0x2c8] sm:$0xff]
        %v1945 = vld [vmem:[%s1854 + $0x2d0] sm:$0xff]
        %v1946 = vld [vmem:[%s1854 + $0x2d8] sm:$0xff]
        %v1947 = vld [vmem:[%s1854 + $0x2e0] sm:$0xff]
        %v1948 = vld [vmem:[%s1854 + $0x2e8] sm:$0xff]
        %v1949 = vld [vmem:[%s1854 + $0x2f0] sm:$0xff]
        %v1950 = vld [vmem:[%s1854 + $0x2f8] sm:$0xff]
        %v1951 = vld [vmem:[%s1854 + $0x300] sm:$0xff]
        %v1952 = vld [vmem:[%s1854 + $0x308] sm:$0xff]
        %v1953 = vld [vmem:[%s1854 + $0x310] sm:$0xff]
        %v1954 = vld [vmem:[%s1854 + $0x318] sm:$0xff]
        %v1955 = vld [vmem:[%s1854 + $0x320] sm:$0xff]
        %v1956 = vld [vmem:[%s1854 + $0x328] sm:$0xff]
        %v1957 = vld [vmem:[%s1854 + $0x330] sm:$0xff]
        %v1958 = vld [vmem:[%s1854 + $0x338] sm:$0xff]
        %v1959 = vld [vmem:[%s1854 + $0x340] sm:$0xff]
        %v1960 = vld [vmem:[%s1854 + $0x348] sm:$0xff]
        %v1961 = vld [vmem:[%s1854 + $0x350] sm:$0xff]
        %v1962 = vld [vmem:[%s1854 + $0x358] sm:$0xff]
        %v1963 = vld [vmem:[%s1854 + $0x360] sm:$0xff]
        %v1964 = vld [vmem:[%s1854 + $0x368] sm:$0xff]
        %v1965 = vld [vmem:[%s1854 + $0x370] sm:$0xff]
        %v1966 = vld [vmem:[%s1854 + $0x378] sm:$0xff]
        %v1967 = vld [vmem:[%s1854 + $0x380] sm:$0xff]
        %v1968 = vld [vmem:[%s1854 + $0x388] sm:$0xff]
        %v1969 = vld [vmem:[%s1854 + $0x390] sm:$0xff]
        %v1970 = vld [vmem:[%s1854 + $0x398] sm:$0xff]
        %v1971 = vld [vmem:[%s1854 + $0x3a0] sm:$0xff]
        %v1972 = vld [vmem:[%s1854 + $0x3a8] sm:$0xff]
        %v1973 = vld [vmem:[%s1854 + $0x3b0] sm:$0xff]
        %v1974 = vld [vmem:[%s1854 + $0x3b8] sm:$0xff]
        %v1975 = vld [vmem:[%s1854 + $0x3c0] sm:$0xff]
        %v1976 = vld [vmem:[%s1854 + $0x3c8] sm:$0xff]
        %v1977 = vld [vmem:[%s1854 + $0x3d0] sm:$0xff]
        %v1978 = vld [vmem:[%s1854 + $0x3d8] sm:$0xff]
        %v1979 = vld [vmem:[%s1854 + $0x3e0] sm:$0xff]
        %v1980 = vld [vmem:[%s1854 + $0x3e8] sm:$0xff]
        %v1981 = vld [vmem:[%s1854 + $0x3f0] sm:$0xff]
        %v1982 = vld [vmem:[%s1854 + $0x3f8] sm:$0xff]
        %v1983 = vld [vmem:[%s1854 + $0x400] sm:$0xff]
        %v1984 = vld [vmem:[%s1854 + $0x408] sm:$0xff]
        %v1985 = vld [vmem:[%s1854 + $0x410] sm:$0xff]
        %v1986 = vld [vmem:[%s1854 + $0x418] sm:$0xff]
        %v1987 = vld [vmem:[%s1854 + $0x420] sm:$0xff]
        %v1988 = vld [vmem:[%s1854 + $0x428] sm:$0xff]
        %v1989 = vld [vmem:[%s1854 + $0x430] sm:$0xff]
        %v1990 = vld [vmem:[%s1854 + $0x438] sm:$0xff]
        %v1991 = vld [vmem:[%s1854 + $0x440] sm:$0xff]
        %v1992 = vld [vmem:[%s1854 + $0x448] sm:$0xff]
        %v1993 = vld [vmem:[%s1854 + $0x450] sm:$0xff]
        %v1994 = vld [vmem:[%s1854 + $0x458] sm:$0xff]
        %v1995 = vld [vmem:[%s1854 + $0x460] sm:$0xff]
        %v1996 = vld [vmem:[%s1854 + $0x468] sm:$0xff]
        %v1997 = vld [vmem:[%s1854 + $0x470] sm:$0xff]
        %v1998 = vld [vmem:[%s1854 + $0x478] sm:$0xff]
        %vm2005 = vcmask 1045504
        %v2006 = vrot.slane %v1848, 2
        %v2007 = vrot.slane %v896, 2
        %v2008 = vsel %vm2005, %v2006, %v2007
        %v2009 = vrot.slane %v1849, 2
        %v2010 = vrot.slane %v897, 2
        %v2011 = vsel %vm2005, %v2009, %v2010
        %v2012 = vrot.slane %v1850, 2
        %v2013 = vrot.slane %v898, 2
        %v2014 = vsel %vm2005, %v2012, %v2013
        %v2015 = vrot.slane %v1851, 2
        %v2016 = vsel %vm2005, %v2007, %v2015
        %v2017 = vrot.slane %v1852, 2
        %v2018 = vsel %vm2005, %v2010, %v2017
        %v2019 = vrot.slane %v1853, 2
        %v2020 = vsel %vm2005, %v2013, %v2019
        %v2025 = vsel %vm739, %v2014, 0
        %v2027 = vsel %vm739, %v2020, 0
        %2029 = vmatprep.subr.mxu0 %v1856
        %2030 = vmatpush1.msra.mxu0 %v1855
        %2031 = vmatprep.subr.mxu0 %v1860
        %2032 = vmatpush1.msra.mxu0 %v1859
        %2033 = vmatprep.subr.mxu0 %v1864
        %2034 = vmatpush1.msra.mxu0 %v1863
        %2035 = vmatprep.subr.mxu0 %v1868
        %2036 = vmatpush1.msra.mxu0 %v1867
        %2037 = vmatprep.subr.mxu0 %v1872
        %2038 = vmatpush1.msra.mxu0 %v1871
        %2039 = vmatprep.subr.mxu0 %v1876
        %2040 = vmatpush1.msra.mxu0 %v1875
        %2041 = vmatprep.subr.mxu0 %v1880
        %2042 = vmatpush1.msra.mxu0 %v1879
        %2043 = vmatprep.subr.mxu0 %v1884
        %2044 = vmatpush1.msra.mxu0 %v1883
        %2045 = vmatprep.subr.mxu0 %v1888
        %2046 = vmatpush1.msra.mxu0 %v1887
        %2047 = vmatprep.subr.mxu0 %v1892
        %2048 = vmatpush1.msra.mxu0 %v1891
        %2049 = vmatprep.subr.mxu0 %v1896
        %2050 = vmatpush1.msra.mxu0 %v1895
        %2051 = vmatprep.subr.mxu0 %v1900
        %2052 = vmatpush1.msra.mxu0 %v1899
        %2053 = vmatprep.subr.mxu0 %v1904
        %2054 = vmatpush1.msra.mxu0 %v1903
        %2055 = vmatprep.subr.mxu0 %v1908
        %2056 = vmatpush1.msra.mxu0 %v1907
        %2057 = vmatprep.subr.mxu0 %v1912
        %2058 = vmatpush1.msra.mxu0 %v1911
        %2059 = vmatprep.subr.mxu0 %v1916
        %2060 = vmatpush1.msra.mxu0 %v1915
        %2061 = vmatprep.subr.mxu0 %v1920
        %2062 = vmatpush1.msra.mxu0 %v1919
        %2063 = vmatprep.subr.mxu0 %v1924
        %2064 = vmatpush1.msra.mxu0 %v1923
        %2065 = vmatprep.subr.mxu0 %v1928
        %2066 = vmatpush1.msra.mxu0 %v1927
        %2067 = vmatprep.subr.mxu0 %v1932
        %2068 = vmatpush1.msra.mxu0 %v1931
        %2069 = vmatprep.subr.mxu0 %v1936
        %2070 = vmatpush1.msra.mxu0 %v1935
        %2071 = vmatprep.subr.mxu0 %v1940
        %2072 = vmatpush1.msra.mxu0 %v1939
        %2073 = vmatprep.subr.mxu0 %v1944
        %2074 = vmatpush1.msra.mxu0 %v1943
        %2075 = vmatprep.subr.mxu0 %v1948
        %2076 = vmatpush1.msra.mxu0 %v1947
        %2077 = vmatprep.subr.mxu0 %v1952
        %2078 = vmatpush1.msra.mxu0 %v1951
        %2079 = vmatprep.subr.mxu0 %v1956
        %2080 = vmatpush1.msra.mxu0 %v1955
        %2081 = vmatprep.subr.mxu0 %v1960
        %2082 = vmatpush1.msra.mxu0 %v1959
        %2083 = vmatprep.subr.mxu0 %v1964
        %2084 = vmatpush1.msra.mxu0 %v1963
        %2085 = vmatprep.subr.mxu0 %v1968
        %2086 = vmatpush1.msra.mxu0 %v1967
        %2087 = vmatprep.subr.mxu0 %v1972
        %2088 = vmatpush1.msra.mxu0 %v1971
        %2089 = vmatprep.subr.mxu0 %v1976
        %2090 = vmatpush1.msra.mxu0 %v1975
        %2091 = vmatprep.subr.mxu0 %v1980
        %2092 = vmatpush1.msra.mxu0 %v1979
        %2093 = vmatprep.mubr.f32.mxu0 %v2011
        %2094 = vmatmul.mubr.f32.gmra.mrb[0].mxu0 %v2008
        %v2095 = vpop.f32.mrb[0].mxu0
        %v2096 = vadd.f32 0.0, %v2095
        %v2097 = vpop.f32.mrb[0].mxu0
        %v2098 = vadd.f32 0.0, %v2097
        %2099 = vmatprep.mubr.f32.mxu0 %v2018
        %2100 = vmatmul.mubr.f32.gmra.mrb[0].mxu0 %v2016
        %v2101 = vpop.f32.mrb[0].mxu0
        %v2102 = vadd.f32 0.0, %v2101
        %v2103 = vpop.f32.mrb[0].mxu0
        %v2104 = vadd.f32 0.0, %v2103
        %2105 = vdwg.mxu0
        %2106 = vmatprep.subr.mxu0 %v1984
        %2107 = vmatpush1.msra.mxu0 %v1983
        %2108 = vmatprep.subr.mxu0 %v1988
        %2109 = vmatpush1.msra.mxu0 %v1987
        %2110 = vmatprep.subr.mxu0 %v1992
        %2111 = vmatpush1.msra.mxu0 %v1991
        %2112 = vmatprep.subr.mxu0 %v1996
        %2113 = vmatpush1.msra.mxu0 %v1995
        %2114 = vmatprep.subr.mxu0 0.0
        %2115 = vmatpush1.msra.mxu0 0.0
        %2116 = vmatprep.subr.mxu0 0.0
        %2117 = vmatpush1.msra.mxu0 0.0
        %2118 = vmatprep.subr.mxu0 0.0
        %2119 = vmatpush1.msra.mxu0 0.0
        %2120 = vmatprep.subr.mxu0 0.0
        %2121 = vmatpush1.msra.mxu0 0.0
        %2122 = vmatprep.subr.mxu0 0.0
        %2123 = vmatpush1.msra.mxu0 0.0
        %2124 = vmatprep.subr.mxu0 0.0
        %2125 = vmatpush1.msra.mxu0 0.0
        %2126 = vmatprep.subr.mxu0 0.0
        %2127 = vmatpush1.msra.mxu0 0.0
        %2128 = vmatprep.subr.mxu0 0.0
        %2129 = vmatpush1.msra.mxu0 0.0
        %2130 = vmatprep.subr.mxu0 0.0
        %2131 = vmatpush1.msra.mxu0 0.0
        %2132 = vmatprep.subr.mxu0 0.0
        %2133 = vmatpush1.msra.mxu0 0.0
        %2134 = vmatprep.subr.mxu0 0.0
        %2135 = vmatpush1.msra.mxu0 0.0
        %2136 = vmatprep.subr.mxu0 0.0
        %2137 = vmatpush1.msra.mxu0 0.0
        %2138 = vmatprep.subr.mxu0 0.0
        %2139 = vmatpush1.msra.mxu0 0.0
        %2140 = vmatprep.subr.mxu0 0.0
        %2141 = vmatpush1.msra.mxu0 0.0
        %2142 = vmatprep.subr.mxu0 0.0
        %2143 = vmatpush1.msra.mxu0 0.0
        %2144 = vmatprep.subr.mxu0 0.0
        %2145 = vmatpush1.msra.mxu0 0.0
        %2146 = vmatprep.subr.mxu0 0.0
        %2147 = vmatpush1.msra.mxu0 0.0
        %2148 = vmatprep.subr.mxu0 0.0
        %2149 = vmatpush1.msra.mxu0 0.0
        %2150 = vmatprep.subr.mxu0 0.0
        %2151 = vmatpush1.msra.mxu0 0.0
        %2152 = vmatprep.subr.mxu0 0.0
        %2153 = vmatpush1.msra.mxu0 0.0
        %2154 = vmatprep.subr.mxu0 0.0
        %2155 = vmatpush1.msra.mxu0 0.0
        %2156 = vmatprep.subr.mxu0 0.0
        %2157 = vmatpush1.msra.mxu0 0.0
        %2158 = vmatprep.subr.mxu0 0.0
        %2159 = vmatpush1.msra.mxu0 0.0
        %2160 = vmatprep.subr.mxu0 0.0
        %2161 = vmatpush1.msra.mxu0 0.0
        %2162 = vmatprep.subr.mxu0 0.0
        %2163 = vmatpush1.msra.mxu0 0.0
        %2164 = vmatprep.subr.mxu0 0.0
        %2165 = vmatpush1.msra.mxu0 0.0
        %2166 = vmatprep.subr.mxu0 0.0
        %2167 = vmatpush1.msra.mxu0 0.0
        %2168 = vmatprep.subr.mxu0 0.0
        %2169 = vmatpush1.msra.mxu0 0.0
        %2170 = vmatprep.mubr.f32.mxu0 0.0
        %2171 = vmatmul.mubr.f32.gmra.mrb[0].mxu0 %v2025
        %v2172 = vpop.f32.mrb[0].mxu0
        %v2173 = vadd.f32 %v2096, %v2172
        %v2174 = vpop.f32.mrb[0].mxu0
        %v2175 = vadd.f32 %v2098, %v2174
        %2176 = vmatprep.mubr.f32.mxu0 0.0
        %2177 = vmatmul.mubr.f32.gmra.mrb[0].mxu0 %v2027
        %v2178 = vpop.f32.mrb[0].mxu0
        %v2179 = vadd.f32 %v2102, %v2178
        %v2180 = vpop.f32.mrb[0].mxu0
        %v2181 = vadd.f32 %v2104, %v2180
        %2182 = vdwg.mxu0
        %2183 = vmatprep.subr.mxu0 %v1858
        %2184 = vmatpush1.msra.mxu0 %v1857
        %2185 = vmatprep.subr.mxu0 %v1862
        %2186 = vmatpush1.msra.mxu0 %v1861
        %2187 = vmatprep.subr.mxu0 %v1866
        %2188 = vmatpush1.msra.mxu0 %v1865
        %2189 = vmatprep.subr.mxu0 %v1870
        %2190 = vmatpush1.msra.mxu0 %v1869
        %2191 = vmatprep.subr.mxu0 %v1874
        %2192 = vmatpush1.msra.mxu0 %v1873
        %2193 = vmatprep.subr.mxu0 %v1878
        %2194 = vmatpush1.msra.mxu0 %v1877
        %2195 = vmatprep.subr.mxu0 %v1882
        %2196 = vmatpush1.msra.mxu0 %v1881
        %2197 = vmatprep.subr.mxu0 %v1886
        %2198 = vmatpush1.msra.mxu0 %v1885
        %2199 = vmatprep.subr.mxu0 %v1890
        %2200 = vmatpush1.msra.mxu0 %v1889
        %2201 = vmatprep.subr.mxu0 %v1894
        %2202 = vmatpush1.msra.mxu0 %v1893
        %2203 = vmatprep.subr.mxu0 %v1898
        %2204 = vmatpush1.msra.mxu0 %v1897
        %2205 = vmatprep.subr.mxu0 %v1902
        %2206 = vmatpush1.msra.mxu0 %v1901
        %2207 = vmatprep.subr.mxu0 %v1906
        %2208 = vmatpush1.msra.mxu0 %v1905
        %2209 = vmatprep.subr.mxu0 %v1910
        %2210 = vmatpush1.msra.mxu0 %v1909
        %2211 = vmatprep.subr.mxu0 %v1914
        %2212 = vmatpush1.msra.mxu0 %v1913
        %2213 = vmatprep.subr.mxu0 %v1918
        %2214 = vmatpush1.msra.mxu0 %v1917
        %2215 = vmatprep.subr.mxu0 %v1922
        %2216 = vmatpush1.msra.mxu0 %v1921
        %2217 = vmatprep.subr.mxu0 %v1926
        %2218 = vmatpush1.msra.mxu0 %v1925
        %2219 = vmatprep.subr.mxu0 %v1930
        %2220 = vmatpush1.msra.mxu0 %v1929
        %2221 = vmatprep.subr.mxu0 %v1934
        %2222 = vmatpush1.msra.mxu0 %v1933
        %2223 = vmatprep.subr.mxu0 %v1938
        %2224 = vmatpush1.msra.mxu0 %v1937
        %2225 = vmatprep.subr.mxu0 %v1942
        %2226 = vmatpush1.msra.mxu0 %v1941
        %2227 = vmatprep.subr.mxu0 %v1946
        %2228 = vmatpush1.msra.mxu0 %v1945
        %2229 = vmatprep.subr.mxu0 %v1950
        %2230 = vmatpush1.msra.mxu0 %v1949
        %2231 = vmatprep.subr.mxu0 %v1954
        %2232 = vmatpush1.msra.mxu0 %v1953
        %2233 = vmatprep.subr.mxu0 %v1958
        %2234 = vmatpush1.msra.mxu0 %v1957
        %2235 = vmatprep.subr.mxu0 %v1962
        %2236 = vmatpush1.msra.mxu0 %v1961
        %2237 = vmatprep.subr.mxu0 %v1966
        %2238 = vmatpush1.msra.mxu0 %v1965
        %2239 = vmatprep.subr.mxu0 %v1970
        %2240 = vmatpush1.msra.mxu0 %v1969
        %2241 = vmatprep.subr.mxu0 %v1974
        %2242 = vmatpush1.msra.mxu0 %v1973
        %2243 = vmatprep.subr.mxu0 %v1978
        %2244 = vmatpush1.msra.mxu0 %v1977
        %2245 = vmatprep.subr.mxu0 %v1982
        %2246 = vmatpush1.msra.mxu0 %v1981
        %2247 = vmatprep.mubr.f32.mxu0 %v2011
        %2248 = vmatmul.mubr.f32.gmra.mrb[0].mxu0 %v2008
        %v2249 = vpop.f32.mrb[0].mxu0
        %v2250 = vadd.f32 0.0, %v2249
        %v2251 = vpop.f32.mrb[0].mxu0
        %v2252 = vadd.f32 0.0, %v2251
        %2253 = vmatprep.mubr.f32.mxu0 %v2018
        %2254 = vmatmul.mubr.f32.gmra.mrb[0].mxu0 %v2016
        %v2255 = vpop.f32.mrb[0].mxu0
        %v2256 = vadd.f32 0.0, %v2255
        %v2257 = vpop.f32.mrb[0].mxu0
        %v2258 = vadd.f32 0.0, %v2257
        %2259 = vdwg.mxu0
        %2260 = vmatprep.subr.mxu0 %v1986
        %2261 = vmatpush1.msra.mxu0 %v1985
        %2262 = vmatprep.subr.mxu0 %v1990
        %2263 = vmatpush1.msra.mxu0 %v1989
        %2264 = vmatprep.subr.mxu0 %v1994
        %2265 = vmatpush1.msra.mxu0 %v1993
        %2266 = vmatprep.subr.mxu0 %v1998
        %2267 = vmatpush1.msra.mxu0 %v1997
        %2268 = vmatprep.subr.mxu0 0.0
        %2269 = vmatpush1.msra.mxu0 0.0
        %2270 = vmatprep.subr.mxu0 0.0
        %2271 = vmatpush1.msra.mxu0 0.0
        %2272 = vmatprep.subr.mxu0 0.0
        %2273 = vmatpush1.msra.mxu0 0.0
        %2274 = vmatprep.subr.mxu0 0.0
        %2275 = vmatpush1.msra.mxu0 0.0
        %2276 = vmatprep.subr.mxu0 0.0
        %2277 = vmatpush1.msra.mxu0 0.0
        %2278 = vmatprep.subr.mxu0 0.0
        %2279 = vmatpush1.msra.mxu0 0.0
        %2280 = vmatprep.subr.mxu0 0.0
        %2281 = vmatpush1.msra.mxu0 0.0
        %2282 = vmatprep.subr.mxu0 0.0
        %2283 = vmatpush1.msra.mxu0 0.0
        %2284 = vmatprep.subr.mxu0 0.0
        %2285 = vmatpush1.msra.mxu0 0.0
        %2286 = vmatprep.subr.mxu0 0.0
        %2287 = vmatpush1.msra.mxu0 0.0
        %2288 = vmatprep.subr.mxu0 0.0
        %2289 = vmatpush1.msra.mxu0 0.0
        %2290 = vmatprep.subr.mxu0 0.0
        %2291 = vmatpush1.msra.mxu0 0.0
        %2292 = vmatprep.subr.mxu0 0.0
        %2293 = vmatpush1.msra.mxu0 0.0
        %2294 = vmatprep.subr.mxu0 0.0
        %2295 = vmatpush1.msra.mxu0 0.0
        %2296 = vmatprep.subr.mxu0 0.0
        %2297 = vmatpush1.msra.mxu0 0.0
        %2298 = vmatprep.subr.mxu0 0.0
        %2299 = vmatpush1.msra.mxu0 0.0
        %2300 = vmatprep.subr.mxu0 0.0
        %2301 = vmatpush1.msra.mxu0 0.0
        %2302 = vmatprep.subr.mxu0 0.0
        %2303 = vmatpush1.msra.mxu0 0.0
        %2304 = vmatprep.subr.mxu0 0.0
        %2305 = vmatpush1.msra.mxu0 0.0
        %2306 = vmatprep.subr.mxu0 0.0
        %2307 = vmatpush1.msra.mxu0 0.0
        %2308 = vmatprep.subr.mxu0 0.0
        %2309 = vmatpush1.msra.mxu0 0.0
        %2310 = vmatprep.subr.mxu0 0.0
        %2311 = vmatpush1.msra.mxu0 0.0
        %2312 = vmatprep.subr.mxu0 0.0
        %2313 = vmatpush1.msra.mxu0 0.0
        %2314 = vmatprep.subr.mxu0 0.0
        %2315 = vmatpush1.msra.mxu0 0.0
        %2316 = vmatprep.subr.mxu0 0.0
        %2317 = vmatpush1.msra.mxu0 0.0
        %2318 = vmatprep.subr.mxu0 0.0
        %2319 = vmatpush1.msra.mxu0 0.0
        %2320 = vmatprep.subr.mxu0 0.0
        %2321 = vmatpush1.msra.mxu0 0.0
        %2322 = vmatprep.subr.mxu0 0.0
        %2323 = vmatpush1.msra.mxu0 0.0
        %2324 = vmatprep.mubr.f32.mxu0 0.0
        %2325 = vmatmul.mubr.f32.gmra.mrb[0].mxu0 %v2025
        %v2326 = vpop.f32.mrb[0].mxu0
        %v2327 = vadd.f32 %v2250, %v2326
        %v2328 = vpop.f32.mrb[0].mxu0
        %v2329 = vadd.f32 %v2252, %v2328
        %2330 = vmatprep.mubr.f32.mxu0 0.0
        %2331 = vmatmul.mubr.f32.gmra.mrb[0].mxu0 %v2027
        %v2332 = vpop.f32.mrb[0].mxu0
        %v2333 = vadd.f32 %v2256, %v2332
        %v2334 = vpop.f32.mrb[0].mxu0
        %v2335 = vadd.f32 %v2258, %v2334
        %2336 = vdwg.mxu0
        %v2337 = vadd.f32 %v1684, %v2173
        %v2338 = vadd.f32 %v1686, %v2175
        %v2339 = vadd.f32 %v1838, %v2327
        %v2340 = vadd.f32 %v1840, %v2329
        %v2341 = vadd.f32 %v1690, %v2179
        %v2342 = vadd.f32 %v1692, %v2181
        %v2343 = vadd.f32 %v1844, %v2333
        %v2344 = vadd.f32 %v1846, %v2335
        %v2345 = vld [vmem:[%s4] sm:$0xf]
        %v2347 = vlaneseq
        %v2348 = vshrl.u32 %v2347, 7
        %v2349 = vsub.s32 0, %v2348
        %v2350 = vrot.slane %v2345, %v2349
        %v2351 = vlaneseq
        %v2352 = vshrl.u32 %v2351, 7
        %v2353 = vsub.s32 1, %v2352
        %v2354 = vrot.slane %v2345, %v2353
        %v2355 = vlaneseq
        %v2356 = vshrl.u32 %v2355, 7
        %v2357 = vsub.s32 2, %v2356
        %v2358 = vrot.slane %v2345, %v2357
        %v2359 = vlaneseq
        %v2360 = vshrl.u32 %v2359, 7
        %v2361 = vsub.s32 3, %v2360
        %v2362 = vrot.slane %v2345, %v2361
        %v2367 = vadd.f32 %v2337, %v2350
        %v2368 = vadd.f32 %v2338, %v2354
        %v2369 = vadd.f32 %v2339, %v2358
        %v2370 = vadd.f32 %v2340, %v2362
        %v2371 = vadd.f32 %v2341, %v2350
        %v2372 = vadd.f32 %v2342, %v2354
        %v2373 = vadd.f32 %v2343, %v2358
        %v2374 = vadd.f32 %v2344, %v2362
        %v2375 = vmax.f32 %v2367, 0.0
        %v2376 = vmax.f32 %v2368, 0.0
        %v2377 = vmax.f32 %v2369, 0.0
        %v2378 = vmax.f32 %v2370, 0.0
        %v2379 = vmax.f32 %v2371, 0.0
        %v2380 = vmax.f32 %v2372, 0.0
        %v2381 = vmax.f32 %v2373, 0.0
        %v2382 = vmax.f32 %v2374, 0.0
        %2383 = vst [vmem:[#allocation4] sm:$0xff] 0.0
        %2384 = vst [vmem:[#allocation4 + $0x8] sm:$0xff] 0.0
        %2385 = vst [vmem:[#allocation4 + $0x10] sm:$0xff] 0.0
        %2386 = vst [vmem:[#allocation4 + $0x18] sm:$0xff] 0.0
        %2387 = vst.msk [vmem:[#allocation4 + $0x20] sm:$0xff] %vm739, 0.0
        %2388 = vst [vmem:[#allocation4 + $0x28] sm:$0xff] 0.0
        %2389 = vst [vmem:[#allocation4 + $0x30] sm:$0xff] 0.0
        %2390 = vst [vmem:[#allocation4 + $0x38] sm:$0xff] 0.0
        %2391 = vst [vmem:[#allocation4 + $0x40] sm:$0xff] 0.0
        %2392 = vst.msk [vmem:[#allocation4 + $0x48] sm:$0xff] %vm739, 0.0
        %2393 = vst [vmem:[#allocation4 + $0x50] sm:$0xff] 0.0
        %2394 = vst [vmem:[#allocation4 + $0x58] sm:$0xff] 0.0
        %2395 = vst [vmem:[#allocation4 + $0x60] sm:$0xff] 0.0
        %2396 = vst [vmem:[#allocation4 + $0x68] sm:$0xff] 0.0
        %2397 = vst.msk [vmem:[#allocation4 + $0x70] sm:$0xff] %vm739, 0.0
        %2398 = vst [vmem:[#allocation4 + $0x78] sm:$0xff] 0.0
        %2399 = vst [vmem:[#allocation4 + $0x80] sm:$0xff] 0.0
        %2400 = vst [vmem:[#allocation4 + $0x88] sm:$0xff] 0.0
        %2401 = vst [vmem:[#allocation4 + $0x90] sm:$0xff] 0.0
        %2402 = vst.msk [vmem:[#allocation4 + $0x98] sm:$0xff] %vm739, 0.0
        %2403 = vst [vmem:[#allocation4 + $0xa0] sm:$0x3] 0.0
        %2404 = vst [vmem:[#allocation4 + $0xa8] sm:$0x3] 0.0
        %2405 = vst [vmem:[#allocation4 + $0xb0] sm:$0x3] 0.0
        %2406 = vst [vmem:[#allocation4 + $0xb8] sm:$0x3] 0.0
        %2407 = vst.msk [vmem:[#allocation4 + $0xc0] sm:$0x3] %vm746, 0.0
        %v2412 = vcombine.low %v2375, %v2376
        %v2413 = vcombine.low %v2377, %v2378
        %v2415 = vunpack.c.l.s4 1966171168
        %v2416 = vunpack.c.0.s8 %v2415
        %v2417 = vlaneseq
        %v2418 = vshrl.u32 %v2417, 7
        %v2419 = vsub.s32 %v2416, %v2418
        %v2420 = vrot.slane %v2412, %v2419
        %v2422 = vunpack.c.l.s4 1966171168
        %v2423 = vunpack.c.0.s8 %v2422
        %v2424 = vlaneseq
        %v2425 = vshrl.u32 %v2424, 7
        %v2426 = vsub.s32 %v2423, %v2425
        %v2427 = vrot.slane %v2413, %v2426
        %v2428 = vcombine.low %v2420, %v2427
        %v2430 = vunpack.c.l.s4 1966171168
        %v2431 = vunpack.c.0.s8 %v2430
        %v2432 = vlaneseq
        %v2433 = vshrl.u32 %v2432, 7
        %v2434 = vsub.s32 %v2431, %v2433
        %v2435 = vrot.slane %v2428, %v2434
        %2436 = vrot.lane.b32.xlu0 %v2435, 16
        %v2437 = vpop.permute.xlu0 %2436
        %v2438 = vrot.slane %v2437, 7
        %v2439 = vsel %vm768, %v2438, %v2437
        %vm2441 = vcmp.lt.s32.totalorder %v771, 528
        %vm2442 = vmand %vm772, %vm2441
        %s2443 = scalar_lea.vmem [#allocation4], 1
        %2444 = vst.msk [vmem:[%s2443] ss:$8 sm:$0xf] %vm2442, %v2439
        %2445 = vst.msk [vmem:[%s2443] ss:$8 sm:$0x10] %vm2442, %v2439
        %s2446 = scalar_lea.vmem [#allocation4], 2
        %2447 = vst.msk [vmem:[%s2446] ss:$8 sm:$0xf] %vm2442, %v2439
        %2448 = vst.msk [vmem:[%s2446] ss:$8 sm:$0x10] %vm2442, %v2439
        %v2449 = vcombine.high %v2420, %v2427
        %v2451 = vunpack.c.l.s4 1966171168
        %v2452 = vunpack.c.0.s8 %v2451
        %v2453 = vlaneseq
        %v2454 = vshrl.u32 %v2453, 7
        %v2455 = vsub.s32 %v2452, %v2454
        %v2456 = vrot.slane %v2449, %v2455
        %2457 = vrot.lane.b32.xlu0 %v2456, 16
        %v2458 = vpop.permute.xlu0 %2457
        %v2459 = vrot.slane %v2458, 7
        %v2460 = vsel %vm768, %v2459, %v2458
        %s2462 = scalar_lea.vmem [#allocation4], 3
        %2463 = vst.msk [vmem:[%s2462] ss:$8 sm:$0xf] %vm2442, %v2460
        %2464 = vst.msk [vmem:[%s2462] ss:$8 sm:$0x10] %vm2442, %v2460
        %s2465 = scalar_lea.vmem [#allocation4], 4
        %2466 = vst.msk [vmem:[%s2465] ss:$8 sm:$0xf] %vm2442, %v2460
        %2467 = vst.msk [vmem:[%s2465] ss:$8 sm:$0x10] %vm2442, %v2460
        %v2468 = vcombine.high %v2435, %v2435
        %2469 = vrot.lane.b32.xlu0 %v2468, 16
        %v2470 = vpop.permute.xlu0 %2469
        %v2471 = vrot.slane %v2470, 7
        %v2472 = vsel %vm768, %v2471, %v2470
        %s2474 = scalar_lea.vmem [#allocation4], 5
        %2475 = vst.msk [vmem:[%s2474] ss:$8 sm:$0xf] %vm2442, %v2472
        %2476 = vst.msk [vmem:[%s2474] ss:$8 sm:$0x10] %vm2442, %v2472
        %s2477 = scalar_lea.vmem [#allocation4], 6
        %2478 = vst.msk [vmem:[%s2477] ss:$8 sm:$0xf] %vm2442, %v2472
        %2479 = vst.msk [vmem:[%s2477] ss:$8 sm:$0x10] %vm2442, %v2472
        %v2480 = vcombine.high %v2456, %v2456
        %2481 = vrot.lane.b32.xlu0 %v2480, 16
        %v2482 = vpop.permute.xlu0 %2481
        %v2483 = vrot.slane %v2482, 7
        %v2484 = vsel %vm768, %v2483, %v2482
        %s2486 = scalar_lea.vmem [#allocation4], 7
        %2487 = vst.msk [vmem:[%s2486] ss:$8 sm:$0xf] %vm2442, %v2484
        %2488 = vst.msk [vmem:[%s2486] ss:$8 sm:$0x10] %vm2442, %v2484
        %s2489 = scalar_lea.vmem [#allocation4], 40
        %2490 = vst.msk [vmem:[%s2489] ss:$8 sm:$0xf] %vm2442, %v2484
        %2491 = vst.msk [vmem:[%s2489] ss:$8 sm:$0x10] %vm2442, %v2484
        %v2492 = vcombine.high %v2375, %v2376
        %v2493 = vcombine.high %v2377, %v2378
        %v2495 = vunpack.c.l.s4 1966171168
        %v2496 = vunpack.c.0.s8 %v2495
        %v2497 = vlaneseq
        %v2498 = vshrl.u32 %v2497, 7
        %v2499 = vsub.s32 %v2496, %v2498
        %v2500 = vrot.slane %v2492, %v2499
        %v2502 = vunpack.c.l.s4 1966171168
        %v2503 = vunpack.c.0.s8 %v2502
        %v2504 = vlaneseq
        %v2505 = vshrl.u32 %v2504, 7
        %v2506 = vsub.s32 %v2503, %v2505
        %v2507 = vrot.slane %v2493, %v2506
        %v2508 = vcombine.low %v2500, %v2507
        %v2510 = vunpack.c.l.s4 1966171168
        %v2511 = vunpack.c.0.s8 %v2510
        %v2512 = vlaneseq
        %v2513 = vshrl.u32 %v2512, 7
        %v2514 = vsub.s32 %v2511, %v2513
        %v2515 = vrot.slane %v2508, %v2514
        %2516 = vrot.lane.b32.xlu0 %v2515, 16
        %v2517 = vpop.permute.xlu0 %2516
        %v2518 = vrot.slane %v2517, 7
        %v2519 = vsel %vm768, %v2518, %v2517
        %s2521 = scalar_lea.vmem [#allocation4], 41
        %2522 = vst.msk [vmem:[%s2521] ss:$8 sm:$0xf] %vm2442, %v2519
        %2523 = vst.msk [vmem:[%s2521] ss:$8 sm:$0x10] %vm2442, %v2519
        %s2524 = scalar_lea.vmem [#allocation4], 42
        %2525 = vst.msk [vmem:[%s2524] ss:$8 sm:$0xf] %vm2442, %v2519
        %2526 = vst.msk [vmem:[%s2524] ss:$8 sm:$0x10] %vm2442, %v2519
        %v2527 = vcombine.high %v2500, %v2507
        %v2529 = vunpack.c.l.s4 1966171168
        %v2530 = vunpack.c.0.s8 %v2529
        %v2531 = vlaneseq
        %v2532 = vshrl.u32 %v2531, 7
        %v2533 = vsub.s32 %v2530, %v2532
        %v2534 = vrot.slane %v2527, %v2533
        %2535 = vrot.lane.b32.xlu0 %v2534, 16
        %v2536 = vpop.permute.xlu0 %2535
        %v2537 = vrot.slane %v2536, 7
        %v2538 = vsel %vm768, %v2537, %v2536
        %s2540 = scalar_lea.vmem [#allocation4], 43
        %2541 = vst.msk [vmem:[%s2540] ss:$8 sm:$0xf] %vm2442, %v2538
        %2542 = vst.msk [vmem:[%s2540] ss:$8 sm:$0x10] %vm2442, %v2538
        %s2543 = scalar_lea.vmem [#allocation4], 44
        %2544 = vst.msk [vmem:[%s2543] ss:$8 sm:$0xf] %vm2442, %v2538
        %2545 = vst.msk [vmem:[%s2543] ss:$8 sm:$0x10] %vm2442, %v2538
        %v2546 = vcombine.high %v2515, %v2515
        %2547 = vrot.lane.b32.xlu0 %v2546, 16
        %v2548 = vpop.permute.xlu0 %2547
        %v2549 = vrot.slane %v2548, 7
        %v2550 = vsel %vm768, %v2549, %v2548
        %s2552 = scalar_lea.vmem [#allocation4], 45
        %2553 = vst.msk [vmem:[%s2552] ss:$8 sm:$0xf] %vm2442, %v2550
        %2554 = vst.msk [vmem:[%s2552] ss:$8 sm:$0x10] %vm2442, %v2550
        %s2555 = scalar_lea.vmem [#allocation4], 46
        %2556 = vst.msk [vmem:[%s2555] ss:$8 sm:$0xf] %vm2442, %v2550
        %2557 = vst.msk [vmem:[%s2555] ss:$8 sm:$0x10] %vm2442, %v2550
        %v2558 = vcombine.high %v2534, %v2534
        %2559 = vrot.lane.b32.xlu0 %v2558, 16
        %v2560 = vpop.permute.xlu0 %2559
        %v2561 = vrot.slane %v2560, 7
        %v2562 = vsel %vm768, %v2561, %v2560
        %s2564 = scalar_lea.vmem [#allocation4], 47
        %2565 = vst.msk [vmem:[%s2564] ss:$8 sm:$0xf] %vm2442, %v2562
        %2566 = vst.msk [vmem:[%s2564] ss:$8 sm:$0x10] %vm2442, %v2562
        %s2567 = scalar_lea.vmem [#allocation4], 80
        %2568 = vst.msk [vmem:[%s2567] ss:$8 sm:$0xf] %vm2442, %v2562
        %2569 = vst.msk [vmem:[%s2567] ss:$8 sm:$0x10] %vm2442, %v2562
        %v2574 = vcombine.low %v2379, %v2380
        %v2575 = vcombine.low %v2381, %v2382
        %v2577 = vunpack.c.l.s4 1966171168
        %v2578 = vunpack.c.0.s8 %v2577
        %v2579 = vlaneseq
        %v2580 = vshrl.u32 %v2579, 7
        %v2581 = vsub.s32 %v2578, %v2580
        %v2582 = vrot.slane %v2574, %v2581
        %v2584 = vunpack.c.l.s4 1966171168
        %v2585 = vunpack.c.0.s8 %v2584
        %v2586 = vlaneseq
        %v2587 = vshrl.u32 %v2586, 7
        %v2588 = vsub.s32 %v2585, %v2587
        %v2589 = vrot.slane %v2575, %v2588
        %v2590 = vcombine.low %v2582, %v2589
        %v2592 = vunpack.c.l.s4 1966171168
        %v2593 = vunpack.c.0.s8 %v2592
        %v2594 = vlaneseq
        %v2595 = vshrl.u32 %v2594, 7
        %v2596 = vsub.s32 %v2593, %v2595
        %v2597 = vrot.slane %v2590, %v2596
        %2598 = vrot.lane.b32.xlu0 %v2597, 16
        %v2599 = vpop.permute.xlu0 %2598
        %v2600 = vrot.slane %v2599, 7
        %v2601 = vsel %vm768, %v2600, %v2599
        %s2603 = scalar_lea.vmem [#allocation4], 81
        %2604 = vst.msk [vmem:[%s2603] ss:$8 sm:$0xf] %vm2442, %v2601
        %2605 = vst.msk [vmem:[%s2603] ss:$8 sm:$0x10] %vm2442, %v2601
        %s2606 = scalar_lea.vmem [#allocation4], 82
        %2607 = vst.msk [vmem:[%s2606] ss:$8 sm:$0xf] %vm2442, %v2601
        %2608 = vst.msk [vmem:[%s2606] ss:$8 sm:$0x10] %vm2442, %v2601
        %v2609 = vcombine.high %v2582, %v2589
        %v2611 = vunpack.c.l.s4 1966171168
        %v2612 = vunpack.c.0.s8 %v2611
        %v2613 = vlaneseq
        %v2614 = vshrl.u32 %v2613, 7
        %v2615 = vsub.s32 %v2612, %v2614
        %v2616 = vrot.slane %v2609, %v2615
        %2617 = vrot.lane.b32.xlu0 %v2616, 16
        %v2618 = vpop.permute.xlu0 %2617
        %v2619 = vrot.slane %v2618, 7
        %v2620 = vsel %vm768, %v2619, %v2618
        %s2622 = scalar_lea.vmem [#allocation4], 83
        %2623 = vst.msk [vmem:[%s2622] ss:$8 sm:$0xf] %vm2442, %v2620
        %2624 = vst.msk [vmem:[%s2622] ss:$8 sm:$0x10] %vm2442, %v2620
        %s2625 = scalar_lea.vmem [#allocation4], 84
        %2626 = vst.msk [vmem:[%s2625] ss:$8 sm:$0xf] %vm2442, %v2620
        %2627 = vst.msk [vmem:[%s2625] ss:$8 sm:$0x10] %vm2442, %v2620
        %v2628 = vcombine.high %v2597, %v2597
        %2629 = vrot.lane.b32.xlu0 %v2628, 16
        %v2630 = vpop.permute.xlu0 %2629
        %v2631 = vrot.slane %v2630, 7
        %v2632 = vsel %vm768, %v2631, %v2630
        %s2634 = scalar_lea.vmem [#allocation4], 85
        %2635 = vst.msk [vmem:[%s2634] ss:$8 sm:$0xf] %vm2442, %v2632
        %2636 = vst.msk [vmem:[%s2634] ss:$8 sm:$0x10] %vm2442, %v2632
        %s2637 = scalar_lea.vmem [#allocation4], 86
        %2638 = vst.msk [vmem:[%s2637] ss:$8 sm:$0xf] %vm2442, %v2632
        %2639 = vst.msk [vmem:[%s2637] ss:$8 sm:$0x10] %vm2442, %v2632
        %v2640 = vcombine.high %v2616, %v2616
        %2641 = vrot.lane.b32.xlu0 %v2640, 16
        %v2642 = vpop.permute.xlu0 %2641
        %v2643 = vrot.slane %v2642, 7
        %v2644 = vsel %vm768, %v2643, %v2642
        %s2646 = scalar_lea.vmem [#allocation4], 87
        %2647 = vst.msk [vmem:[%s2646] ss:$8 sm:$0xf] %vm2442, %v2644
        %2648 = vst.msk [vmem:[%s2646] ss:$8 sm:$0x10] %vm2442, %v2644
        %s2649 = scalar_lea.vmem [#allocation4], 120
        %2650 = vst.msk [vmem:[%s2649] ss:$8 sm:$0xf] %vm2442, %v2644
        %2651 = vst.msk [vmem:[%s2649] ss:$8 sm:$0x10] %vm2442, %v2644
        %v2652 = vcombine.high %v2379, %v2380
        %v2653 = vcombine.high %v2381, %v2382
        %v2655 = vunpack.c.l.s4 1966171168
        %v2656 = vunpack.c.0.s8 %v2655
        %v2657 = vlaneseq
        %v2658 = vshrl.u32 %v2657, 7
        %v2659 = vsub.s32 %v2656, %v2658
        %v2660 = vrot.slane %v2652, %v2659
        %v2662 = vunpack.c.l.s4 1966171168
        %v2663 = vunpack.c.0.s8 %v2662
        %v2664 = vlaneseq
        %v2665 = vshrl.u32 %v2664, 7
        %v2666 = vsub.s32 %v2663, %v2665
        %v2667 = vrot.slane %v2653, %v2666
        %v2668 = vcombine.low %v2660, %v2667
        %v2670 = vunpack.c.l.s4 1966171168
        %v2671 = vunpack.c.0.s8 %v2670
        %v2672 = vlaneseq
        %v2673 = vshrl.u32 %v2672, 7
        %v2674 = vsub.s32 %v2671, %v2673
        %v2675 = vrot.slane %v2668, %v2674
        %2676 = vrot.lane.b32.xlu0 %v2675, 16
        %v2677 = vpop.permute.xlu0 %2676
        %v2678 = vrot.slane %v2677, 7
        %v2679 = vsel %vm768, %v2678, %v2677
        %s2681 = scalar_lea.vmem [#allocation4], 121
        %2682 = vst.msk [vmem:[%s2681] ss:$8 sm:$0xf] %vm2442, %v2679
        %2683 = vst.msk [vmem:[%s2681] ss:$8 sm:$0x10] %vm2442, %v2679
        %s2684 = scalar_lea.vmem [#allocation4], 122
        %2685 = vst.msk [vmem:[%s2684] ss:$8 sm:$0xf] %vm2442, %v2679
        %2686 = vst.msk [vmem:[%s2684] ss:$8 sm:$0x10] %vm2442, %v2679
        %v2687 = vcombine.high %v2660, %v2667
        %v2689 = vunpack.c.l.s4 1966171168
        %v2690 = vunpack.c.0.s8 %v2689
        %v2691 = vlaneseq
        %v2692 = vshrl.u32 %v2691, 7
        %v2693 = vsub.s32 %v2690, %v2692
        %v2694 = vrot.slane %v2687, %v2693
        %2695 = vrot.lane.b32.xlu0 %v2694, 16
        %v2696 = vpop.permute.xlu0 %2695
        %v2697 = vrot.slane %v2696, 7
        %v2698 = vsel %vm768, %v2697, %v2696
        %s2700 = scalar_lea.vmem [#allocation4], 123
        %2701 = vst.msk [vmem:[%s2700] ss:$8 sm:$0xf] %vm2442, %v2698
        %2702 = vst.msk [vmem:[%s2700] ss:$8 sm:$0x10] %vm2442, %v2698
        %s2703 = scalar_lea.vmem [#allocation4], 124
        %2704 = vst.msk [vmem:[%s2703] ss:$8 sm:$0xf] %vm2442, %v2698
        %2705 = vst.msk [vmem:[%s2703] ss:$8 sm:$0x10] %vm2442, %v2698
        %v2706 = vcombine.high %v2675, %v2675
        %2707 = vrot.lane.b32.xlu0 %v2706, 16
        %v2708 = vpop.permute.xlu0 %2707
        %v2709 = vrot.slane %v2708, 7
        %v2710 = vsel %vm768, %v2709, %v2708
        %s2712 = scalar_lea.vmem [#allocation4], 125
        %2713 = vst.msk [vmem:[%s2712] ss:$8 sm:$0xf] %vm2442, %v2710
        %2714 = vst.msk [vmem:[%s2712] ss:$8 sm:$0x10] %vm2442, %v2710
        %s2715 = scalar_lea.vmem [#allocation4], 126
        %2716 = vst.msk [vmem:[%s2715] ss:$8 sm:$0xf] %vm2442, %v2710
        %2717 = vst.msk [vmem:[%s2715] ss:$8 sm:$0x10] %vm2442, %v2710
        %v2718 = vcombine.high %v2694, %v2694
        %2719 = vrot.lane.b32.xlu0 %v2718, 16
        %v2720 = vpop.permute.xlu0 %2719
        %v2721 = vrot.slane %v2720, 7
        %v2722 = vsel %vm768, %v2721, %v2720
        %s2724 = scalar_lea.vmem [#allocation4], 127
        %2725 = vst.msk [vmem:[%s2724] ss:$8 sm:$0xf] %vm2442, %v2722
        %2726 = vst.msk [vmem:[%s2724] ss:$8 sm:$0x10] %vm2442, %v2722
        %s2727 = scalar_lea.vmem [#allocation4], 160
        %2728 = vst.msk [vmem:[%s2727] ss:$8 sm:$0xf] %vm2442, %v2722
        %2729 = vst.msk [vmem:[%s2727] ss:$8 sm:$0x10] %vm2442, %v2722
        %v2730 = vld [vmem:[#allocation4] sm:$0xff]
        %v2731 = vld [vmem:[#allocation4 + $0x8] sm:$0xff]
        %v2732 = vld [vmem:[#allocation4 + $0x10] sm:$0xff]
        %v2733 = vld [vmem:[#allocation4 + $0x18] sm:$0xff]
        %v2734 = vld [vmem:[#allocation4 + $0x20] sm:$0xff]
        %v2735 = vld [vmem:[#allocation4 + $0x28] sm:$0xff]
        %v2736 = vld [vmem:[#allocation4 + $0x30] sm:$0xff]
        %v2737 = vld [vmem:[#allocation4 + $0x38] sm:$0xff]
        %v2738 = vld [vmem:[#allocation4 + $0x40] sm:$0xff]
        %v2739 = vld [vmem:[#allocation4 + $0x48] sm:$0xff]
        %v2740 = vld [vmem:[#allocation4 + $0x50] sm:$0xff]
        %v2741 = vld [vmem:[#allocation4 + $0x58] sm:$0xff]
        %v2742 = vld [vmem:[#allocation4 + $0x60] sm:$0xff]
        %v2743 = vld [vmem:[#allocation4 + $0x68] sm:$0xff]
        %v2744 = vld [vmem:[#allocation4 + $0x70] sm:$0xff]
        %v2745 = vld [vmem:[#allocation4 + $0x78] sm:$0xff]
        %v2746 = vld [vmem:[#allocation4 + $0x80] sm:$0xff]
        %v2747 = vld [vmem:[#allocation4 + $0x88] sm:$0xff]
        %v2748 = vld [vmem:[#allocation4 + $0x90] sm:$0xff]
        %v2749 = vld [vmem:[#allocation4 + $0x98] sm:$0xff]
        %v2750 = vld [vmem:[%s5] sm:$0xff]
        %v2751 = vld [vmem:[%s5 + $0x8] sm:$0xff]
        %v2752 = vld [vmem:[%s5 + $0x10] sm:$0xff]
        %v2753 = vld [vmem:[%s5 + $0x18] sm:$0xff]
        %v2754 = vld [vmem:[%s5 + $0x20] sm:$0xff]
        %v2755 = vld [vmem:[%s5 + $0x28] sm:$0xff]
        %v2756 = vld [vmem:[%s5 + $0x30] sm:$0xff]
        %v2757 = vld [vmem:[%s5 + $0x38] sm:$0xff]
        %v2758 = vld [vmem:[%s5 + $0x40] sm:$0xff]
        %v2759 = vld [vmem:[%s5 + $0x48] sm:$0xff]
        %v2760 = vld [vmem:[%s5 + $0x50] sm:$0xff]
        %v2761 = vld [vmem:[%s5 + $0x58] sm:$0xff]
        %v2762 = vld [vmem:[%s5 + $0x60] sm:$0xff]
        %v2763 = vld [vmem:[%s5 + $0x68] sm:$0xff]
        %v2764 = vld [vmem:[%s5 + $0x70] sm:$0xff]
        %v2765 = vld [vmem:[%s5 + $0x78] sm:$0xff]
        %v2766 = vld [vmem:[%s5 + $0x80] sm:$0xff]
        %v2767 = vld [vmem:[%s5 + $0x88] sm:$0xff]
        %v2768 = vld [vmem:[%s5 + $0x90] sm:$0xff]
        %v2769 = vld [vmem:[%s5 + $0x98] sm:$0xff]
        %v2770 = vld [vmem:[%s5 + $0xa0] sm:$0xff]
        %v2771 = vld [vmem:[%s5 + $0xa8] sm:$0xff]
        %v2772 = vld [vmem:[%s5 + $0xb0] sm:$0xff]
        %v2773 = vld [vmem:[%s5 + $0xb8] sm:$0xff]
        %v2774 = vld [vmem:[%s5 + $0xc0] sm:$0xff]
        %v2775 = vld [vmem:[%s5 + $0xc8] sm:$0xff]
        %v2776 = vld [vmem:[%s5 + $0xd0] sm:$0xff]
        %v2777 = vld [vmem:[%s5 + $0xd8] sm:$0xff]
        %v2778 = vld [vmem:[%s5 + $0xe0] sm:$0xff]
        %v2779 = vld [vmem:[%s5 + $0xe8] sm:$0xff]
        %v2780 = vld [vmem:[%s5 + $0xf0] sm:$0xff]
        %v2781 = vld [vmem:[%s5 + $0xf8] sm:$0xff]
        %v2782 = vld [vmem:[%s5 + $0x100] sm:$0xff]
        %v2783 = vld [vmem:[%s5 + $0x108] sm:$0xff]
        %v2784 = vld [vmem:[%s5 + $0x110] sm:$0xff]
        %v2785 = vld [vmem:[%s5 + $0x118] sm:$0xff]
        %v2786 = vld [vmem:[%s5 + $0x120] sm:$0xff]
        %v2787 = vld [vmem:[%s5 + $0x128] sm:$0xff]
        %v2788 = vld [vmem:[%s5 + $0x130] sm:$0xff]
        %v2789 = vld [vmem:[%s5 + $0x138] sm:$0xff]
        %v2790 = vld [vmem:[%s5 + $0x140] sm:$0xff]
        %v2791 = vld [vmem:[%s5 + $0x148] sm:$0xff]
        %v2792 = vld [vmem:[%s5 + $0x150] sm:$0xff]
        %v2793 = vld [vmem:[%s5 + $0x158] sm:$0xff]
        %v2794 = vld [vmem:[%s5 + $0x160] sm:$0xff]
        %v2795 = vld [vmem:[%s5 + $0x168] sm:$0xff]
        %v2796 = vld [vmem:[%s5 + $0x170] sm:$0xff]
        %v2797 = vld [vmem:[%s5 + $0x178] sm:$0xff]
        %v2798 = vld [vmem:[%s5 + $0x180] sm:$0xff]
        %v2799 = vld [vmem:[%s5 + $0x188] sm:$0xff]
        %v2800 = vld [vmem:[%s5 + $0x190] sm:$0xff]
        %v2801 = vld [vmem:[%s5 + $0x198] sm:$0xff]
        %v2802 = vld [vmem:[%s5 + $0x1a0] sm:$0xff]
        %v2803 = vld [vmem:[%s5 + $0x1a8] sm:$0xff]
        %v2804 = vld [vmem:[%s5 + $0x1b0] sm:$0xff]
        %v2805 = vld [vmem:[%s5 + $0x1b8] sm:$0xff]
        %v2806 = vld [vmem:[%s5 + $0x1c0] sm:$0xff]
        %v2807 = vld [vmem:[%s5 + $0x1c8] sm:$0xff]
        %v2808 = vld [vmem:[%s5 + $0x1d0] sm:$0xff]
        %v2809 = vld [vmem:[%s5 + $0x1d8] sm:$0xff]
        %v2810 = vld [vmem:[%s5 + $0x1e0] sm:$0xff]
        %v2811 = vld [vmem:[%s5 + $0x1e8] sm:$0xff]
        %v2812 = vld [vmem:[%s5 + $0x1f0] sm:$0xff]
        %v2813 = vld [vmem:[%s5 + $0x1f8] sm:$0xff]
        %v2814 = vld [vmem:[%s5 + $0x200] sm:$0xff]
        %v2815 = vld [vmem:[%s5 + $0x208] sm:$0xff]
        %v2816 = vld [vmem:[%s5 + $0x210] sm:$0xff]
        %v2817 = vld [vmem:[%s5 + $0x218] sm:$0xff]
        %v2818 = vld [vmem:[#allocation4] sm:$0xfe]
        %v2819 = vld [vmem:[#allocation4 + $0x8] sm:$0xfe]
        %v2820 = vld [vmem:[#allocation4 + $0x10] sm:$0xfe]
        %v2821 = vld [vmem:[#allocation4 + $0x18] sm:$0xfe]
        %v2822 = vld [vmem:[#allocation4 + $0x20] sm:$0xfe]
        %v2823 = vld [vmem:[#allocation4 + $0xa0] sm:$0x1]
        %v2824 = vld [vmem:[#allocation4 + $0xa8] sm:$0x1]
        %v2825 = vld [vmem:[#allocation4 + $0xb0] sm:$0x1]
        %v2826 = vld [vmem:[#allocation4 + $0xb8] sm:$0x1]
        %v2827 = vld [vmem:[#allocation4 + $0xc0] sm:$0x1]
        %s2828 = scalar_lea.vmem %s5, 544
        %v2829 = vld [vmem:[%s2828] sm:$0xff]
        %v2830 = vld [vmem:[%s2828 + $0x8] sm:$0xff]
        %v2831 = vld [vmem:[%s2828 + $0x10] sm:$0xff]
        %v2832 = vld [vmem:[%s2828 + $0x18] sm:$0xff]
        %v2833 = vld [vmem:[%s2828 + $0x20] sm:$0xff]
        %v2834 = vld [vmem:[%s2828 + $0x28] sm:$0xff]
        %v2835 = vld [vmem:[%s2828 + $0x30] sm:$0xff]
        %v2836 = vld [vmem:[%s2828 + $0x38] sm:$0xff]
        %v2837 = vld [vmem:[%s2828 + $0x40] sm:$0xff]
        %v2838 = vld [vmem:[%s2828 + $0x48] sm:$0xff]
        %v2839 = vld [vmem:[%s2828 + $0x50] sm:$0xff]
        %v2840 = vld [vmem:[%s2828 + $0x58] sm:$0xff]
        %v2841 = vld [vmem:[%s2828 + $0x60] sm:$0xff]
        %v2842 = vld [vmem:[%s2828 + $0x68] sm:$0xff]
        %v2843 = vld [vmem:[%s2828 + $0x70] sm:$0xff]
        %v2844 = vld [vmem:[%s2828 + $0x78] sm:$0xff]
        %v2845 = vld [vmem:[%s2828 + $0x80] sm:$0xff]
        %v2846 = vld [vmem:[%s2828 + $0x88] sm:$0xff]
        %v2847 = vld [vmem:[%s2828 + $0x90] sm:$0xff]
        %v2848 = vld [vmem:[%s2828 + $0x98] sm:$0xff]
        %v2849 = vld [vmem:[%s2828 + $0xa0] sm:$0xff]
        %v2850 = vld [vmem:[%s2828 + $0xa8] sm:$0xff]
        %v2851 = vld [vmem:[%s2828 + $0xb0] sm:$0xff]
        %v2852 = vld [vmem:[%s2828 + $0xb8] sm:$0xff]
        %v2853 = vld [vmem:[%s2828 + $0xc0] sm:$0xff]
        %v2854 = vld [vmem:[%s2828 + $0xc8] sm:$0xff]
        %v2855 = vld [vmem:[%s2828 + $0xd0] sm:$0xff]
        %v2856 = vld [vmem:[%s2828 + $0xd8] sm:$0xff]
        %v2857 = vld [vmem:[%s2828 + $0xe0] sm:$0xff]
        %v2858 = vld [vmem:[%s2828 + $0xe8] sm:$0xff]
        %v2859 = vld [vmem:[%s2828 + $0xf0] sm:$0xff]
        %v2860 = vld [vmem:[%s2828 + $0xf8] sm:$0xff]
        %v2861 = vld [vmem:[%s2828 + $0x100] sm:$0xff]
        %v2862 = vld [vmem:[%s2828 + $0x108] sm:$0xff]
        %v2863 = vld [vmem:[%s2828 + $0x110] sm:$0xff]
        %v2864 = vld [vmem:[%s2828 + $0x118] sm:$0xff]
        %v2865 = vld [vmem:[%s2828 + $0x120] sm:$0xff]
        %v2866 = vld [vmem:[%s2828 + $0x128] sm:$0xff]
        %v2867 = vld [vmem:[%s2828 + $0x130] sm:$0xff]
        %v2868 = vld [vmem:[%s2828 + $0x138] sm:$0xff]
        %v2869 = vld [vmem:[%s2828 + $0x140] sm:$0xff]
        %v2870 = vld [vmem:[%s2828 + $0x148] sm:$0xff]
        %v2871 = vld [vmem:[%s2828 + $0x150] sm:$0xff]
        %v2872 = vld [vmem:[%s2828 + $0x158] sm:$0xff]
        %v2873 = vld [vmem:[%s2828 + $0x160] sm:$0xff]
        %v2874 = vld [vmem:[%s2828 + $0x168] sm:$0xff]
        %v2875 = vld [vmem:[%s2828 + $0x170] sm:$0xff]
        %v2876 = vld [vmem:[%s2828 + $0x178] sm:$0xff]
        %v2877 = vld [vmem:[%s2828 + $0x180] sm:$0xff]
        %v2878 = vld [vmem:[%s2828 + $0x188] sm:$0xff]
        %v2879 = vld [vmem:[%s2828 + $0x190] sm:$0xff]
        %v2880 = vld [vmem:[%s2828 + $0x198] sm:$0xff]
        %v2881 = vld [vmem:[%s2828 + $0x1a0] sm:$0xff]
        %v2882 = vld [vmem:[%s2828 + $0x1a8] sm:$0xff]
        %v2883 = vld [vmem:[%s2828 + $0x1b0] sm:$0xff]
        %v2884 = vld [vmem:[%s2828 + $0x1b8] sm:$0xff]
        %v2885 = vld [vmem:[%s2828 + $0x1c0] sm:$0xff]
        %v2886 = vld [vmem:[%s2828 + $0x1c8] sm:$0xff]
        %v2887 = vld [vmem:[%s2828 + $0x1d0] sm:$0xff]
        %v2888 = vld [vmem:[%s2828 + $0x1d8] sm:$0xff]
        %v2889 = vld [vmem:[%s2828 + $0x1e0] sm:$0xff]
        %v2890 = vld [vmem:[%s2828 + $0x1e8] sm:$0xff]
        %v2891 = vld [vmem:[%s2828 + $0x1f0] sm:$0xff]
        %v2892 = vld [vmem:[%s2828 + $0x1f8] sm:$0xff]
        %v2893 = vld [vmem:[%s2828 + $0x200] sm:$0xff]
        %v2894 = vld [vmem:[%s2828 + $0x208] sm:$0xff]
        %v2895 = vld [vmem:[%s2828 + $0x210] sm:$0xff]
        %v2896 = vld [vmem:[%s2828 + $0x218] sm:$0xff]
        %v2922 = vrot.slane %v2818, 1
        %v2923 = vrot.slane %v2735, 1
        %v2924 = vsel %vm1203, %v2922, %v2923
        %v2925 = vrot.slane %v2819, 1
        %v2926 = vrot.slane %v2736, 1
        %v2927 = vsel %vm1203, %v2925, %v2926
        %v2928 = vrot.slane %v2820, 1
        %v2929 = vrot.slane %v2737, 1
        %v2930 = vsel %vm1203, %v2928, %v2929
        %v2931 = vrot.slane %v2821, 1
        %v2932 = vrot.slane %v2738, 1
        %v2933 = vsel %vm1203, %v2931, %v2932
        %v2934 = vrot.slane %v2822, 1
        %v2935 = vrot.slane %v2739, 1
        %v2936 = vsel %vm1203, %v2934, %v2935
        %v2937 = vrot.slane %v2740, 1
        %v2938 = vsel %vm1203, %v2923, %v2937
        %v2939 = vrot.slane %v2741, 1
        %v2940 = vsel %vm1203, %v2926, %v2939
        %v2941 = vrot.slane %v2742, 1
        %v2942 = vsel %vm1203, %v2929, %v2941
        %v2943 = vrot.slane %v2743, 1
        %v2944 = vsel %vm1203, %v2932, %v2943
        %v2945 = vrot.slane %v2744, 1
        %v2946 = vsel %vm1203, %v2935, %v2945
        %v2947 = vrot.slane %v2745, 1
        %v2948 = vsel %vm1203, %v2937, %v2947
        %v2949 = vrot.slane %v2746, 1
        %v2950 = vsel %vm1203, %v2939, %v2949
        %v2951 = vrot.slane %v2747, 1
        %v2952 = vsel %vm1203, %v2941, %v2951
        %v2953 = vrot.slane %v2748, 1
        %v2954 = vsel %vm1203, %v2943, %v2953
        %v2955 = vrot.slane %v2749, 1
        %v2956 = vsel %vm1203, %v2945, %v2955
        %v2957 = vrot.slane %v2823, 1
        %v2958 = vsel %vm1203, %v2947, %v2957
        %v2959 = vrot.slane %v2824, 1
        %v2960 = vsel %vm1203, %v2949, %v2959
        %v2961 = vrot.slane %v2825, 1
        %v2962 = vsel %vm1203, %v2951, %v2961
        %v2963 = vrot.slane %v2826, 1
        %v2964 = vsel %vm1203, %v2953, %v2963
        %v2965 = vrot.slane %v2827, 1
        %v2966 = vsel %vm1203, %v2955, %v2965
        %v2983 = vsel %vm739, %v2936, 0
        %v2985 = vsel %vm739, %v2946, 0
        %v2987 = vsel %vm739, %v2956, 0
        %v2989 = vsel %vm739, %v2966, 0
        %2991 = vmatprep.subr.mxu0 0.0
        %2992 = vmatpush1.msra.mxu0 %v2829
        %2993 = vmatprep.subr.mxu0 0.0
        %2994 = vmatpush1.msra.mxu0 %v2830
        %2995 = vmatprep.subr.mxu0 0.0
        %2996 = vmatpush1.msra.mxu0 %v2831
        %2997 = vmatprep.subr.mxu0 0.0
        %2998 = vmatpush1.msra.mxu0 %v2832
        %2999 = vmatprep.subr.mxu0 0.0
        %3000 = vmatpush1.msra.mxu0 %v2833
        %3001 = vmatprep.subr.mxu0 0.0
        %3002 = vmatpush1.msra.mxu0 %v2834
        %3003 = vmatprep.subr.mxu0 0.0
        %3004 = vmatpush1.msra.mxu0 %v2835
        %3005 = vmatprep.subr.mxu0 0.0
        %3006 = vmatpush1.msra.mxu0 %v2836
        %3007 = vmatprep.subr.mxu0 0.0
        %3008 = vmatpush1.msra.mxu0 %v2837
        %3009 = vmatprep.subr.mxu0 0.0
        %3010 = vmatpush1.msra.mxu0 %v2838
        %3011 = vmatprep.subr.mxu0 0.0
        %3012 = vmatpush1.msra.mxu0 %v2839
        %3013 = vmatprep.subr.mxu0 0.0
        %3014 = vmatpush1.msra.mxu0 %v2840
        %3015 = vmatprep.subr.mxu0 0.0
        %3016 = vmatpush1.msra.mxu0 %v2841
        %3017 = vmatprep.subr.mxu0 0.0
        %3018 = vmatpush1.msra.mxu0 %v2842
        %3019 = vmatprep.subr.mxu0 0.0
        %3020 = vmatpush1.msra.mxu0 %v2843
        %3021 = vmatprep.subr.mxu0 0.0
        %3022 = vmatpush1.msra.mxu0 %v2844
        %3023 = vmatprep.subr.mxu0 0.0
        %3024 = vmatpush1.msra.mxu0 %v2845
        %3025 = vmatprep.subr.mxu0 0.0
        %3026 = vmatpush1.msra.mxu0 %v2846
        %3027 = vmatprep.subr.mxu0 0.0
        %3028 = vmatpush1.msra.mxu0 %v2847
        %3029 = vmatprep.subr.mxu0 0.0
        %3030 = vmatpush1.msra.mxu0 %v2848
        %3031 = vmatprep.subr.mxu0 0.0
        %3032 = vmatpush1.msra.mxu0 %v2849
        %3033 = vmatprep.subr.mxu0 0.0
        %3034 = vmatpush1.msra.mxu0 %v2850
        %3035 = vmatprep.subr.mxu0 0.0
        %3036 = vmatpush1.msra.mxu0 %v2851
        %3037 = vmatprep.subr.mxu0 0.0
        %3038 = vmatpush1.msra.mxu0 %v2852
        %3039 = vmatprep.subr.mxu0 0.0
        %3040 = vmatpush1.msra.mxu0 %v2853
        %3041 = vmatprep.subr.mxu0 0.0
        %3042 = vmatpush1.msra.mxu0 %v2854
        %3043 = vmatprep.subr.mxu0 0.0
        %3044 = vmatpush1.msra.mxu0 %v2855
        %3045 = vmatprep.subr.mxu0 0.0
        %3046 = vmatpush1.msra.mxu0 %v2856
        %3047 = vmatprep.subr.mxu0 0.0
        %3048 = vmatpush1.msra.mxu0 %v2857
        %3049 = vmatprep.subr.mxu0 0.0
        %3050 = vmatpush1.msra.mxu0 %v2858
        %3051 = vmatprep.subr.mxu0 0.0
        %3052 = vmatpush1.msra.mxu0 %v2859
        %3053 = vmatprep.subr.mxu0 0.0
        %3054 = vmatpush1.msra.mxu0 %v2860
        %3055 = vmatprep.mubr.f32.mxu0 %v2927
        %3056 = vmatmul.mubr.f32.gmra.mrb[0].mxu0 %v2924
        %v3057 = vpop.f32.mrb[0].mxu0
        %v3058 = vadd.f32 0.0, %v3057
        %v3059 = vpop.f32.mrb[0].mxu0
        %3060 = vmatprep.mubr.f32.mxu0 %v2940
        %3061 = vmatmul.mubr.f32.gmra.mrb[0].mxu0 %v2938
        %v3062 = vpop.f32.mrb[0].mxu0
        %v3063 = vadd.f32 0.0, %v3062
        %v3064 = vpop.f32.mrb[0].mxu0
        %3065 = vmatprep.mubr.f32.mxu0 %v2950
        %3066 = vmatmul.mubr.f32.gmra.mrb[0].mxu0 %v2948
        %v3067 = vpop.f32.mrb[0].mxu0
        %v3068 = vadd.f32 0.0, %v3067
        %v3069 = vpop.f32.mrb[0].mxu0
        %3070 = vmatprep.mubr.f32.mxu0 %v2960
        %3071 = vmatmul.mubr.f32.gmra.mrb[0].mxu0 %v2958
        %v3072 = vpop.f32.mrb[0].mxu0
        %v3073 = vadd.f32 0.0, %v3072
        %v3074 = vpop.f32.mrb[0].mxu0
        %3075 = vdwg.mxu0
        %3076 = vmatprep.subr.mxu0 0.0
        %3077 = vmatpush1.msra.mxu0 %v2861
        %3078 = vmatprep.subr.mxu0 0.0
        %3079 = vmatpush1.msra.mxu0 %v2862
        %3080 = vmatprep.subr.mxu0 0.0
        %3081 = vmatpush1.msra.mxu0 %v2863
        %3082 = vmatprep.subr.mxu0 0.0
        %3083 = vmatpush1.msra.mxu0 %v2864
        %3084 = vmatprep.subr.mxu0 0.0
        %3085 = vmatpush1.msra.mxu0 %v2865
        %3086 = vmatprep.subr.mxu0 0.0
        %3087 = vmatpush1.msra.mxu0 %v2866
        %3088 = vmatprep.subr.mxu0 0.0
        %3089 = vmatpush1.msra.mxu0 %v2867
        %3090 = vmatprep.subr.mxu0 0.0
        %3091 = vmatpush1.msra.mxu0 %v2868
        %3092 = vmatprep.subr.mxu0 0.0
        %3093 = vmatpush1.msra.mxu0 %v2869
        %3094 = vmatprep.subr.mxu0 0.0
        %3095 = vmatpush1.msra.mxu0 %v2870
        %3096 = vmatprep.subr.mxu0 0.0
        %3097 = vmatpush1.msra.mxu0 %v2871
        %3098 = vmatprep.subr.mxu0 0.0
        %3099 = vmatpush1.msra.mxu0 %v2872
        %3100 = vmatprep.subr.mxu0 0.0
        %3101 = vmatpush1.msra.mxu0 %v2873
        %3102 = vmatprep.subr.mxu0 0.0
        %3103 = vmatpush1.msra.mxu0 %v2874
        %3104 = vmatprep.subr.mxu0 0.0
        %3105 = vmatpush1.msra.mxu0 %v2875
        %3106 = vmatprep.subr.mxu0 0.0
        %3107 = vmatpush1.msra.mxu0 %v2876
        %3108 = vmatprep.subr.mxu0 0.0
        %3109 = vmatpush1.msra.mxu0 %v2877
        %3110 = vmatprep.subr.mxu0 0.0
        %3111 = vmatpush1.msra.mxu0 %v2878
        %3112 = vmatprep.subr.mxu0 0.0
        %3113 = vmatpush1.msra.mxu0 %v2879
        %3114 = vmatprep.subr.mxu0 0.0
        %3115 = vmatpush1.msra.mxu0 %v2880
        %3116 = vmatprep.subr.mxu0 0.0
        %3117 = vmatpush1.msra.mxu0 %v2881
        %3118 = vmatprep.subr.mxu0 0.0
        %3119 = vmatpush1.msra.mxu0 %v2882
        %3120 = vmatprep.subr.mxu0 0.0
        %3121 = vmatpush1.msra.mxu0 %v2883
        %3122 = vmatprep.subr.mxu0 0.0
        %3123 = vmatpush1.msra.mxu0 %v2884
        %3124 = vmatprep.subr.mxu0 0.0
        %3125 = vmatpush1.msra.mxu0 %v2885
        %3126 = vmatprep.subr.mxu0 0.0
        %3127 = vmatpush1.msra.mxu0 %v2886
        %3128 = vmatprep.subr.mxu0 0.0
        %3129 = vmatpush1.msra.mxu0 %v2887
        %3130 = vmatprep.subr.mxu0 0.0
        %3131 = vmatpush1.msra.mxu0 %v2888
        %3132 = vmatprep.subr.mxu0 0.0
        %3133 = vmatpush1.msra.mxu0 %v2889
        %3134 = vmatprep.subr.mxu0 0.0
        %3135 = vmatpush1.msra.mxu0 %v2890
        %3136 = vmatprep.subr.mxu0 0.0
        %3137 = vmatpush1.msra.mxu0 %v2891
        %3138 = vmatprep.subr.mxu0 0.0
        %3139 = vmatpush1.msra.mxu0 %v2892
        %3140 = vmatprep.mubr.f32.mxu0 %v2933
        %3141 = vmatmul.mubr.f32.gmra.mrb[0].mxu0 %v2930
        %v3142 = vpop.f32.mrb[0].mxu0
        %v3143 = vadd.f32 %v3058, %v3142
        %v3144 = vpop.f32.mrb[0].mxu0
        %3145 = vmatprep.mubr.f32.mxu0 %v2944
        %3146 = vmatmul.mubr.f32.gmra.mrb[0].mxu0 %v2942
        %v3147 = vpop.f32.mrb[0].mxu0
        %v3148 = vadd.f32 %v3063, %v3147
        %v3149 = vpop.f32.mrb[0].mxu0
        %3150 = vmatprep.mubr.f32.mxu0 %v2954
        %3151 = vmatmul.mubr.f32.gmra.mrb[0].mxu0 %v2952
        %v3152 = vpop.f32.mrb[0].mxu0
        %v3153 = vadd.f32 %v3068, %v3152
        %v3154 = vpop.f32.mrb[0].mxu0
        %3155 = vmatprep.mubr.f32.mxu0 %v2964
        %3156 = vmatmul.mubr.f32.gmra.mrb[0].mxu0 %v2962
        %v3157 = vpop.f32.mrb[0].mxu0
        %v3158 = vadd.f32 %v3073, %v3157
        %v3159 = vpop.f32.mrb[0].mxu0
        %3160 = vdwg.mxu0
        %3161 = vmatprep.subr.mxu0 0.0
        %3162 = vmatpush1.msra.mxu0 %v2893
        %3163 = vmatprep.subr.mxu0 0.0
        %3164 = vmatpush1.msra.mxu0 %v2894
        %3165 = vmatprep.subr.mxu0 0.0
        %3166 = vmatpush1.msra.mxu0 %v2895
        %3167 = vmatprep.subr.mxu0 0.0
        %3168 = vmatpush1.msra.mxu0 %v2896
        %3169 = vmatprep.subr.mxu0 0.0
        %3170 = vmatpush1.msra.mxu0 0.0
        %3171 = vmatprep.subr.mxu0 0.0
        %3172 = vmatpush1.msra.mxu0 0.0
        %3173 = vmatprep.subr.mxu0 0.0
        %3174 = vmatpush1.msra.mxu0 0.0
        %3175 = vmatprep.subr.mxu0 0.0
        %3176 = vmatpush1.msra.mxu0 0.0
        %3177 = vmatprep.subr.mxu0 0.0
        %3178 = vmatpush1.msra.mxu0 0.0
        %3179 = vmatprep.subr.mxu0 0.0
        %3180 = vmatpush1.msra.mxu0 0.0
        %3181 = vmatprep.subr.mxu0 0.0
        %3182 = vmatpush1.msra.mxu0 0.0
        %3183 = vmatprep.subr.mxu0 0.0
        %3184 = vmatpush1.msra.mxu0 0.0
        %3185 = vmatprep.subr.mxu0 0.0
        %3186 = vmatpush1.msra.mxu0 0.0
        %3187 = vmatprep.subr.mxu0 0.0
        %3188 = vmatpush1.msra.mxu0 0.0
        %3189 = vmatprep.subr.mxu0 0.0
        %3190 = vmatpush1.msra.mxu0 0.0
        %3191 = vmatprep.subr.mxu0 0.0
        %3192 = vmatpush1.msra.mxu0 0.0
        %3193 = vmatprep.subr.mxu0 0.0
        %3194 = vmatpush1.msra.mxu0 0.0
        %3195 = vmatprep.subr.mxu0 0.0
        %3196 = vmatpush1.msra.mxu0 0.0
        %3197 = vmatprep.subr.mxu0 0.0
        %3198 = vmatpush1.msra.mxu0 0.0
        %3199 = vmatprep.subr.mxu0 0.0
        %3200 = vmatpush1.msra.mxu0 0.0
        %3201 = vmatprep.subr.mxu0 0.0
        %3202 = vmatpush1.msra.mxu0 0.0
        %3203 = vmatprep.subr.mxu0 0.0
        %3204 = vmatpush1.msra.mxu0 0.0
        %3205 = vmatprep.subr.mxu0 0.0
        %3206 = vmatpush1.msra.mxu0 0.0
        %3207 = vmatprep.subr.mxu0 0.0
        %3208 = vmatpush1.msra.mxu0 0.0
        %3209 = vmatprep.subr.mxu0 0.0
        %3210 = vmatpush1.msra.mxu0 0.0
        %3211 = vmatprep.subr.mxu0 0.0
        %3212 = vmatpush1.msra.mxu0 0.0
        %3213 = vmatprep.subr.mxu0 0.0
        %3214 = vmatpush1.msra.mxu0 0.0
        %3215 = vmatprep.subr.mxu0 0.0
        %3216 = vmatpush1.msra.mxu0 0.0
        %3217 = vmatprep.subr.mxu0 0.0
        %3218 = vmatpush1.msra.mxu0 0.0
        %3219 = vmatprep.subr.mxu0 0.0
        %3220 = vmatpush1.msra.mxu0 0.0
        %3221 = vmatprep.subr.mxu0 0.0
        %3222 = vmatpush1.msra.mxu0 0.0
        %3223 = vmatprep.subr.mxu0 0.0
        %3224 = vmatpush1.msra.mxu0 0.0
        %3225 = vmatprep.mubr.f32.mxu0 0.0
        %3226 = vmatmul.mubr.f32.gmra.mrb[0].mxu0 %v2983
        %v3227 = vpop.f32.mrb[0].mxu0
        %v3228 = vadd.f32 %v3143, %v3227
        %v3229 = vpop.f32.mrb[0].mxu0
        %3230 = vmatprep.mubr.f32.mxu0 0.0
        %3231 = vmatmul.mubr.f32.gmra.mrb[0].mxu0 %v2985
        %v3232 = vpop.f32.mrb[0].mxu0
        %v3233 = vadd.f32 %v3148, %v3232
        %v3234 = vpop.f32.mrb[0].mxu0
        %3235 = vmatprep.mubr.f32.mxu0 0.0
        %3236 = vmatmul.mubr.f32.gmra.mrb[0].mxu0 %v2987
        %v3237 = vpop.f32.mrb[0].mxu0
        %v3238 = vadd.f32 %v3153, %v3237
        %v3239 = vpop.f32.mrb[0].mxu0
        %3240 = vmatprep.mubr.f32.mxu0 0.0
        %3241 = vmatmul.mubr.f32.gmra.mrb[0].mxu0 %v2989
        %v3242 = vpop.f32.mrb[0].mxu0
        %v3243 = vadd.f32 %v3158, %v3242
        %v3244 = vpop.f32.mrb[0].mxu0
        %3245 = vdwg.mxu0
        %v3247 = vsel %vm739, %v2734, 0
        %v3249 = vsel %vm739, %v2739, 0
        %v3251 = vsel %vm739, %v2744, 0
        %v3253 = vsel %vm739, %v2749, 0
        %3255 = vmatprep.subr.mxu0 0.0
        %3256 = vmatpush1.msra.mxu0 %v2750
        %3257 = vmatprep.subr.mxu0 0.0
        %3258 = vmatpush1.msra.mxu0 %v2751
        %3259 = vmatprep.subr.mxu0 0.0
        %3260 = vmatpush1.msra.mxu0 %v2752
        %3261 = vmatprep.subr.mxu0 0.0
        %3262 = vmatpush1.msra.mxu0 %v2753
        %3263 = vmatprep.subr.mxu0 0.0
        %3264 = vmatpush1.msra.mxu0 %v2754
        %3265 = vmatprep.subr.mxu0 0.0
        %3266 = vmatpush1.msra.mxu0 %v2755
        %3267 = vmatprep.subr.mxu0 0.0
        %3268 = vmatpush1.msra.mxu0 %v2756
        %3269 = vmatprep.subr.mxu0 0.0
        %3270 = vmatpush1.msra.mxu0 %v2757
        %3271 = vmatprep.subr.mxu0 0.0
        %3272 = vmatpush1.msra.mxu0 %v2758
        %3273 = vmatprep.subr.mxu0 0.0
        %3274 = vmatpush1.msra.mxu0 %v2759
        %3275 = vmatprep.subr.mxu0 0.0
        %3276 = vmatpush1.msra.mxu0 %v2760
        %3277 = vmatprep.subr.mxu0 0.0
        %3278 = vmatpush1.msra.mxu0 %v2761
        %3279 = vmatprep.subr.mxu0 0.0
        %3280 = vmatpush1.msra.mxu0 %v2762
        %3281 = vmatprep.subr.mxu0 0.0
        %3282 = vmatpush1.msra.mxu0 %v2763
        %3283 = vmatprep.subr.mxu0 0.0
        %3284 = vmatpush1.msra.mxu0 %v2764
        %3285 = vmatprep.subr.mxu0 0.0
        %3286 = vmatpush1.msra.mxu0 %v2765
        %3287 = vmatprep.subr.mxu0 0.0
        %3288 = vmatpush1.msra.mxu0 %v2766
        %3289 = vmatprep.subr.mxu0 0.0
        %3290 = vmatpush1.msra.mxu0 %v2767
        %3291 = vmatprep.subr.mxu0 0.0
        %3292 = vmatpush1.msra.mxu0 %v2768
        %3293 = vmatprep.subr.mxu0 0.0
        %3294 = vmatpush1.msra.mxu0 %v2769
        %3295 = vmatprep.subr.mxu0 0.0
        %3296 = vmatpush1.msra.mxu0 %v2770
        %3297 = vmatprep.subr.mxu0 0.0
        %3298 = vmatpush1.msra.mxu0 %v2771
        %3299 = vmatprep.subr.mxu0 0.0
        %3300 = vmatpush1.msra.mxu0 %v2772
        %3301 = vmatprep.subr.mxu0 0.0
        %3302 = vmatpush1.msra.mxu0 %v2773
        %3303 = vmatprep.subr.mxu0 0.0
        %3304 = vmatpush1.msra.mxu0 %v2774
        %3305 = vmatprep.subr.mxu0 0.0
        %3306 = vmatpush1.msra.mxu0 %v2775
        %3307 = vmatprep.subr.mxu0 0.0
        %3308 = vmatpush1.msra.mxu0 %v2776
        %3309 = vmatprep.subr.mxu0 0.0
        %3310 = vmatpush1.msra.mxu0 %v2777
        %3311 = vmatprep.subr.mxu0 0.0
        %3312 = vmatpush1.msra.mxu0 %v2778
        %3313 = vmatprep.subr.mxu0 0.0
        %3314 = vmatpush1.msra.mxu0 %v2779
        %3315 = vmatprep.subr.mxu0 0.0
        %3316 = vmatpush1.msra.mxu0 %v2780
        %3317 = vmatprep.subr.mxu0 0.0
        %3318 = vmatpush1.msra.mxu0 %v2781
        %3319 = vmatprep.mubr.f32.mxu0 %v2731
        %3320 = vmatmul.mubr.f32.gmra.mrb[0].mxu0 %v2730
        %v3321 = vpop.f32.mrb[0].mxu0
        %v3322 = vadd.f32 %v3228, %v3321
        %v3323 = vpop.f32.mrb[0].mxu0
        %3324 = vmatprep.mubr.f32.mxu0 %v2736
        %3325 = vmatmul.mubr.f32.gmra.mrb[0].mxu0 %v2735
        %v3326 = vpop.f32.mrb[0].mxu0
        %v3327 = vadd.f32 %v3233, %v3326
        %v3328 = vpop.f32.mrb[0].mxu0
        %3329 = vmatprep.mubr.f32.mxu0 %v2741
        %3330 = vmatmul.mubr.f32.gmra.mrb[0].mxu0 %v2740
        %v3331 = vpop.f32.mrb[0].mxu0
        %v3332 = vadd.f32 %v3238, %v3331
        %v3333 = vpop.f32.mrb[0].mxu0
        %3334 = vmatprep.mubr.f32.mxu0 %v2746
        %3335 = vmatmul.mubr.f32.gmra.mrb[0].mxu0 %v2745
        %v3336 = vpop.f32.mrb[0].mxu0
        %v3337 = vadd.f32 %v3243, %v3336
        %v3338 = vpop.f32.mrb[0].mxu0
        %3339 = vdwg.mxu0
        %3340 = vmatprep.subr.mxu0 0.0
        %3341 = vmatpush1.msra.mxu0 %v2782
        %3342 = vmatprep.subr.mxu0 0.0
        %3343 = vmatpush1.msra.mxu0 %v2783
        %3344 = vmatprep.subr.mxu0 0.0
        %3345 = vmatpush1.msra.mxu0 %v2784
        %3346 = vmatprep.subr.mxu0 0.0
        %3347 = vmatpush1.msra.mxu0 %v2785
        %3348 = vmatprep.subr.mxu0 0.0
        %3349 = vmatpush1.msra.mxu0 %v2786
        %3350 = vmatprep.subr.mxu0 0.0
        %3351 = vmatpush1.msra.mxu0 %v2787
        %3352 = vmatprep.subr.mxu0 0.0
        %3353 = vmatpush1.msra.mxu0 %v2788
        %3354 = vmatprep.subr.mxu0 0.0
        %3355 = vmatpush1.msra.mxu0 %v2789
        %3356 = vmatprep.subr.mxu0 0.0
        %3357 = vmatpush1.msra.mxu0 %v2790
        %3358 = vmatprep.subr.mxu0 0.0
        %3359 = vmatpush1.msra.mxu0 %v2791
        %3360 = vmatprep.subr.mxu0 0.0
        %3361 = vmatpush1.msra.mxu0 %v2792
        %3362 = vmatprep.subr.mxu0 0.0
        %3363 = vmatpush1.msra.mxu0 %v2793
        %3364 = vmatprep.subr.mxu0 0.0
        %3365 = vmatpush1.msra.mxu0 %v2794
        %3366 = vmatprep.subr.mxu0 0.0
        %3367 = vmatpush1.msra.mxu0 %v2795
        %3368 = vmatprep.subr.mxu0 0.0
        %3369 = vmatpush1.msra.mxu0 %v2796
        %3370 = vmatprep.subr.mxu0 0.0
        %3371 = vmatpush1.msra.mxu0 %v2797
        %3372 = vmatprep.subr.mxu0 0.0
        %3373 = vmatpush1.msra.mxu0 %v2798
        %3374 = vmatprep.subr.mxu0 0.0
        %3375 = vmatpush1.msra.mxu0 %v2799
        %3376 = vmatprep.subr.mxu0 0.0
        %3377 = vmatpush1.msra.mxu0 %v2800
        %3378 = vmatprep.subr.mxu0 0.0
        %3379 = vmatpush1.msra.mxu0 %v2801
        %3380 = vmatprep.subr.mxu0 0.0
        %3381 = vmatpush1.msra.mxu0 %v2802
        %3382 = vmatprep.subr.mxu0 0.0
        %3383 = vmatpush1.msra.mxu0 %v2803
        %3384 = vmatprep.subr.mxu0 0.0
        %3385 = vmatpush1.msra.mxu0 %v2804
        %3386 = vmatprep.subr.mxu0 0.0
        %3387 = vmatpush1.msra.mxu0 %v2805
        %3388 = vmatprep.subr.mxu0 0.0
        %3389 = vmatpush1.msra.mxu0 %v2806
        %3390 = vmatprep.subr.mxu0 0.0
        %3391 = vmatpush1.msra.mxu0 %v2807
        %3392 = vmatprep.subr.mxu0 0.0
        %3393 = vmatpush1.msra.mxu0 %v2808
        %3394 = vmatprep.subr.mxu0 0.0
        %3395 = vmatpush1.msra.mxu0 %v2809
        %3396 = vmatprep.subr.mxu0 0.0
        %3397 = vmatpush1.msra.mxu0 %v2810
        %3398 = vmatprep.subr.mxu0 0.0
        %3399 = vmatpush1.msra.mxu0 %v2811
        %3400 = vmatprep.subr.mxu0 0.0
        %3401 = vmatpush1.msra.mxu0 %v2812
        %3402 = vmatprep.subr.mxu0 0.0
        %3403 = vmatpush1.msra.mxu0 %v2813
        %3404 = vmatprep.mubr.f32.mxu0 %v2733
        %3405 = vmatmul.mubr.f32.gmra.mrb[0].mxu0 %v2732
        %v3406 = vpop.f32.mrb[0].mxu0
        %v3407 = vadd.f32 %v3322, %v3406
        %v3408 = vpop.f32.mrb[0].mxu0
        %3409 = vmatprep.mubr.f32.mxu0 %v2738
        %3410 = vmatmul.mubr.f32.gmra.mrb[0].mxu0 %v2737
        %v3411 = vpop.f32.mrb[0].mxu0
        %v3412 = vadd.f32 %v3327, %v3411
        %v3413 = vpop.f32.mrb[0].mxu0
        %3414 = vmatprep.mubr.f32.mxu0 %v2743
        %3415 = vmatmul.mubr.f32.gmra.mrb[0].mxu0 %v2742
        %v3416 = vpop.f32.mrb[0].mxu0
        %v3417 = vadd.f32 %v3332, %v3416
        %v3418 = vpop.f32.mrb[0].mxu0
        %3419 = vmatprep.mubr.f32.mxu0 %v2748
        %3420 = vmatmul.mubr.f32.gmra.mrb[0].mxu0 %v2747
        %v3421 = vpop.f32.mrb[0].mxu0
        %v3422 = vadd.f32 %v3337, %v3421
        %v3423 = vpop.f32.mrb[0].mxu0
        %3424 = vdwg.mxu0
        %3425 = vmatprep.subr.mxu0 0.0
        %3426 = vmatpush1.msra.mxu0 %v2814
        %3427 = vmatprep.subr.mxu0 0.0
        %3428 = vmatpush1.msra.mxu0 %v2815
        %3429 = vmatprep.subr.mxu0 0.0
        %3430 = vmatpush1.msra.mxu0 %v2816
        %3431 = vmatprep.subr.mxu0 0.0
        %3432 = vmatpush1.msra.mxu0 %v2817
        %3433 = vmatprep.subr.mxu0 0.0
        %3434 = vmatpush1.msra.mxu0 0.0
        %3435 = vmatprep.subr.mxu0 0.0
        %3436 = vmatpush1.msra.mxu0 0.0
        %3437 = vmatprep.subr.mxu0 0.0
        %3438 = vmatpush1.msra.mxu0 0.0
        %3439 = vmatprep.subr.mxu0 0.0
        %3440 = vmatpush1.msra.mxu0 0.0
        %3441 = vmatprep.subr.mxu0 0.0
        %3442 = vmatpush1.msra.mxu0 0.0
        %3443 = vmatprep.subr.mxu0 0.0
        %3444 = vmatpush1.msra.mxu0 0.0
        %3445 = vmatprep.subr.mxu0 0.0
        %3446 = vmatpush1.msra.mxu0 0.0
        %3447 = vmatprep.subr.mxu0 0.0
        %3448 = vmatpush1.msra.mxu0 0.0
        %3449 = vmatprep.subr.mxu0 0.0
        %3450 = vmatpush1.msra.mxu0 0.0
        %3451 = vmatprep.subr.mxu0 0.0
        %3452 = vmatpush1.msra.mxu0 0.0
        %3453 = vmatprep.subr.mxu0 0.0
        %3454 = vmatpush1.msra.mxu0 0.0
        %3455 = vmatprep.subr.mxu0 0.0
        %3456 = vmatpush1.msra.mxu0 0.0
        %3457 = vmatprep.subr.mxu0 0.0
        %3458 = vmatpush1.msra.mxu0 0.0
        %3459 = vmatprep.subr.mxu0 0.0
        %3460 = vmatpush1.msra.mxu0 0.0
        %3461 = vmatprep.subr.mxu0 0.0
        %3462 = vmatpush1.msra.mxu0 0.0
        %3463 = vmatprep.subr.mxu0 0.0
        %3464 = vmatpush1.msra.mxu0 0.0
        %3465 = vmatprep.subr.mxu0 0.0
        %3466 = vmatpush1.msra.mxu0 0.0
        %3467 = vmatprep.subr.mxu0 0.0
        %3468 = vmatpush1.msra.mxu0 0.0
        %3469 = vmatprep.subr.mxu0 0.0
        %3470 = vmatpush1.msra.mxu0 0.0
        %3471 = vmatprep.subr.mxu0 0.0
        %3472 = vmatpush1.msra.mxu0 0.0
        %3473 = vmatprep.subr.mxu0 0.0
        %3474 = vmatpush1.msra.mxu0 0.0
        %3475 = vmatprep.subr.mxu0 0.0
        %3476 = vmatpush1.msra.mxu0 0.0
        %3477 = vmatprep.subr.mxu0 0.0
        %3478 = vmatpush1.msra.mxu0 0.0
        %3479 = vmatprep.subr.mxu0 0.0
        %3480 = vmatpush1.msra.mxu0 0.0
        %3481 = vmatprep.subr.mxu0 0.0
        %3482 = vmatpush1.msra.mxu0 0.0
        %3483 = vmatprep.subr.mxu0 0.0
        %3484 = vmatpush1.msra.mxu0 0.0
        %3485 = vmatprep.subr.mxu0 0.0
        %3486 = vmatpush1.msra.mxu0 0.0
        %3487 = vmatprep.subr.mxu0 0.0
        %3488 = vmatpush1.msra.mxu0 0.0
        %3489 = vmatprep.mubr.f32.mxu0 0.0
        %3490 = vmatmul.mubr.f32.gmra.mrb[0].mxu0 %v3247
        %v3491 = vpop.f32.mrb[0].mxu0
        %v3492 = vadd.f32 %v3407, %v3491
        %v3493 = vpop.f32.mrb[0].mxu0
        %3494 = vmatprep.mubr.f32.mxu0 0.0
        %3495 = vmatmul.mubr.f32.gmra.mrb[0].mxu0 %v3249
        %v3496 = vpop.f32.mrb[0].mxu0
        %v3497 = vadd.f32 %v3412, %v3496
        %v3498 = vpop.f32.mrb[0].mxu0
        %3499 = vmatprep.mubr.f32.mxu0 0.0
        %3500 = vmatmul.mubr.f32.gmra.mrb[0].mxu0 %v3251
        %v3501 = vpop.f32.mrb[0].mxu0
        %v3502 = vadd.f32 %v3417, %v3501
        %v3503 = vpop.f32.mrb[0].mxu0
        %3504 = vmatprep.mubr.f32.mxu0 0.0
        %3505 = vmatmul.mubr.f32.gmra.mrb[0].mxu0 %v3253
        %v3506 = vpop.f32.mrb[0].mxu0
        %v3507 = vadd.f32 %v3422, %v3506
        %v3508 = vpop.f32.mrb[0].mxu0
        %3509 = vdwg.mxu0
        %v3510 = vld [vmem:[#allocation4] sm:$0xfc]
        %v3511 = vld [vmem:[#allocation4 + $0x8] sm:$0xfc]
        %v3512 = vld [vmem:[#allocation4 + $0x10] sm:$0xfc]
        %v3513 = vld [vmem:[#allocation4 + $0x18] sm:$0xfc]
        %v3514 = vld [vmem:[#allocation4 + $0x20] sm:$0xfc]
        %v3515 = vld [vmem:[#allocation4 + $0xa0] sm:$0x3]
        %v3516 = vld [vmem:[#allocation4 + $0xa8] sm:$0x3]
        %v3517 = vld [vmem:[#allocation4 + $0xb0] sm:$0x3]
        %v3518 = vld [vmem:[#allocation4 + $0xb8] sm:$0x3]
        %v3519 = vld [vmem:[#allocation4 + $0xc0] sm:$0x3]
        %s3520 = scalar_lea.vmem %s5, 1088
        %v3521 = vld [vmem:[%s3520] sm:$0xff]
        %v3522 = vld [vmem:[%s3520 + $0x8] sm:$0xff]
        %v3523 = vld [vmem:[%s3520 + $0x10] sm:$0xff]
        %v3524 = vld [vmem:[%s3520 + $0x18] sm:$0xff]
        %v3525 = vld [vmem:[%s3520 + $0x20] sm:$0xff]
        %v3526 = vld [vmem:[%s3520 + $0x28] sm:$0xff]
        %v3527 = vld [vmem:[%s3520 + $0x30] sm:$0xff]
        %v3528 = vld [vmem:[%s3520 + $0x38] sm:$0xff]
        %v3529 = vld [vmem:[%s3520 + $0x40] sm:$0xff]
        %v3530 = vld [vmem:[%s3520 + $0x48] sm:$0xff]
        %v3531 = vld [vmem:[%s3520 + $0x50] sm:$0xff]
        %v3532 = vld [vmem:[%s3520 + $0x58] sm:$0xff]
        %v3533 = vld [vmem:[%s3520 + $0x60] sm:$0xff]
        %v3534 = vld [vmem:[%s3520 + $0x68] sm:$0xff]
        %v3535 = vld [vmem:[%s3520 + $0x70] sm:$0xff]
        %v3536 = vld [vmem:[%s3520 + $0x78] sm:$0xff]
        %v3537 = vld [vmem:[%s3520 + $0x80] sm:$0xff]
        %v3538 = vld [vmem:[%s3520 + $0x88] sm:$0xff]
        %v3539 = vld [vmem:[%s3520 + $0x90] sm:$0xff]
        %v3540 = vld [vmem:[%s3520 + $0x98] sm:$0xff]
        %v3541 = vld [vmem:[%s3520 + $0xa0] sm:$0xff]
        %v3542 = vld [vmem:[%s3520 + $0xa8] sm:$0xff]
        %v3543 = vld [vmem:[%s3520 + $0xb0] sm:$0xff]
        %v3544 = vld [vmem:[%s3520 + $0xb8] sm:$0xff]
        %v3545 = vld [vmem:[%s3520 + $0xc0] sm:$0xff]
        %v3546 = vld [vmem:[%s3520 + $0xc8] sm:$0xff]
        %v3547 = vld [vmem:[%s3520 + $0xd0] sm:$0xff]
        %v3548 = vld [vmem:[%s3520 + $0xd8] sm:$0xff]
        %v3549 = vld [vmem:[%s3520 + $0xe0] sm:$0xff]
        %v3550 = vld [vmem:[%s3520 + $0xe8] sm:$0xff]
        %v3551 = vld [vmem:[%s3520 + $0xf0] sm:$0xff]
        %v3552 = vld [vmem:[%s3520 + $0xf8] sm:$0xff]
        %v3553 = vld [vmem:[%s3520 + $0x100] sm:$0xff]
        %v3554 = vld [vmem:[%s3520 + $0x108] sm:$0xff]
        %v3555 = vld [vmem:[%s3520 + $0x110] sm:$0xff]
        %v3556 = vld [vmem:[%s3520 + $0x118] sm:$0xff]
        %v3557 = vld [vmem:[%s3520 + $0x120] sm:$0xff]
        %v3558 = vld [vmem:[%s3520 + $0x128] sm:$0xff]
        %v3559 = vld [vmem:[%s3520 + $0x130] sm:$0xff]
        %v3560 = vld [vmem:[%s3520 + $0x138] sm:$0xff]
        %v3561 = vld [vmem:[%s3520 + $0x140] sm:$0xff]
        %v3562 = vld [vmem:[%s3520 + $0x148] sm:$0xff]
        %v3563 = vld [vmem:[%s3520 + $0x150] sm:$0xff]
        %v3564 = vld [vmem:[%s3520 + $0x158] sm:$0xff]
        %v3565 = vld [vmem:[%s3520 + $0x160] sm:$0xff]
        %v3566 = vld [vmem:[%s3520 + $0x168] sm:$0xff]
        %v3567 = vld [vmem:[%s3520 + $0x170] sm:$0xff]
        %v3568 = vld [vmem:[%s3520 + $0x178] sm:$0xff]
        %v3569 = vld [vmem:[%s3520 + $0x180] sm:$0xff]
        %v3570 = vld [vmem:[%s3520 + $0x188] sm:$0xff]
        %v3571 = vld [vmem:[%s3520 + $0x190] sm:$0xff]
        %v3572 = vld [vmem:[%s3520 + $0x198] sm:$0xff]
        %v3573 = vld [vmem:[%s3520 + $0x1a0] sm:$0xff]
        %v3574 = vld [vmem:[%s3520 + $0x1a8] sm:$0xff]
        %v3575 = vld [vmem:[%s3520 + $0x1b0] sm:$0xff]
        %v3576 = vld [vmem:[%s3520 + $0x1b8] sm:$0xff]
        %v3577 = vld [vmem:[%s3520 + $0x1c0] sm:$0xff]
        %v3578 = vld [vmem:[%s3520 + $0x1c8] sm:$0xff]
        %v3579 = vld [vmem:[%s3520 + $0x1d0] sm:$0xff]
        %v3580 = vld [vmem:[%s3520 + $0x1d8] sm:$0xff]
        %v3581 = vld [vmem:[%s3520 + $0x1e0] sm:$0xff]
        %v3582 = vld [vmem:[%s3520 + $0x1e8] sm:$0xff]
        %v3583 = vld [vmem:[%s3520 + $0x1f0] sm:$0xff]
        %v3584 = vld [vmem:[%s3520 + $0x1f8] sm:$0xff]
        %v3585 = vld [vmem:[%s3520 + $0x200] sm:$0xff]
        %v3586 = vld [vmem:[%s3520 + $0x208] sm:$0xff]
        %v3587 = vld [vmem:[%s3520 + $0x210] sm:$0xff]
        %v3588 = vld [vmem:[%s3520 + $0x218] sm:$0xff]
        %v3599 = vrot.slane %v3510, 2
        %v3600 = vrot.slane %v2735, 2
        %v3601 = vsel %vm2005, %v3599, %v3600
        %v3602 = vrot.slane %v3511, 2
        %v3603 = vrot.slane %v2736, 2
        %v3604 = vsel %vm2005, %v3602, %v3603
        %v3605 = vrot.slane %v3512, 2
        %v3606 = vrot.slane %v2737, 2
        %v3607 = vsel %vm2005, %v3605, %v3606
        %v3608 = vrot.slane %v3513, 2
        %v3609 = vrot.slane %v2738, 2
        %v3610 = vsel %vm2005, %v3608, %v3609
        %v3611 = vrot.slane %v3514, 2
        %v3612 = vrot.slane %v2739, 2
        %v3613 = vsel %vm2005, %v3611, %v3612
        %v3614 = vrot.slane %v2740, 2
        %v3615 = vsel %vm2005, %v3600, %v3614
        %v3616 = vrot.slane %v2741, 2
        %v3617 = vsel %vm2005, %v3603, %v3616
        %v3618 = vrot.slane %v2742, 2
        %v3619 = vsel %vm2005, %v3606, %v3618
        %v3620 = vrot.slane %v2743, 2
        %v3621 = vsel %vm2005, %v3609, %v3620
        %v3622 = vrot.slane %v2744, 2
        %v3623 = vsel %vm2005, %v3612, %v3622
        %v3624 = vrot.slane %v2745, 2
        %v3625 = vsel %vm2005, %v3614, %v3624
        %v3626 = vrot.slane %v2746, 2
        %v3627 = vsel %vm2005, %v3616, %v3626
        %v3628 = vrot.slane %v2747, 2
        %v3629 = vsel %vm2005, %v3618, %v3628
        %v3630 = vrot.slane %v2748, 2
        %v3631 = vsel %vm2005, %v3620, %v3630
        %v3632 = vrot.slane %v2749, 2
        %v3633 = vsel %vm2005, %v3622, %v3632
        %v3634 = vrot.slane %v3515, 2
        %v3635 = vsel %vm2005, %v3624, %v3634
        %v3636 = vrot.slane %v3516, 2
        %v3637 = vsel %vm2005, %v3626, %v3636
        %v3638 = vrot.slane %v3517, 2
        %v3639 = vsel %vm2005, %v3628, %v3638
        %v3640 = vrot.slane %v3518, 2
        %v3641 = vsel %vm2005, %v3630, %v3640
        %v3642 = vrot.slane %v3519, 2
        %v3643 = vsel %vm2005, %v3632, %v3642
        %v3660 = vsel %vm739, %v3613, 0
        %v3662 = vsel %vm739, %v3623, 0
        %v3664 = vsel %vm739, %v3633, 0
        %v3666 = vsel %vm739, %v3643, 0
        %3668 = vmatprep.subr.mxu0 0.0
        %3669 = vmatpush1.msra.mxu0 %v3521
        %3670 = vmatprep.subr.mxu0 0.0
        %3671 = vmatpush1.msra.mxu0 %v3522
        %3672 = vmatprep.subr.mxu0 0.0
        %3673 = vmatpush1.msra.mxu0 %v3523
        %3674 = vmatprep.subr.mxu0 0.0
        %3675 = vmatpush1.msra.mxu0 %v3524
        %3676 = vmatprep.subr.mxu0 0.0
        %3677 = vmatpush1.msra.mxu0 %v3525
        %3678 = vmatprep.subr.mxu0 0.0
        %3679 = vmatpush1.msra.mxu0 %v3526
        %3680 = vmatprep.subr.mxu0 0.0
        %3681 = vmatpush1.msra.mxu0 %v3527
        %3682 = vmatprep.subr.mxu0 0.0
        %3683 = vmatpush1.msra.mxu0 %v3528
        %3684 = vmatprep.subr.mxu0 0.0
        %3685 = vmatpush1.msra.mxu0 %v3529
        %3686 = vmatprep.subr.mxu0 0.0
        %3687 = vmatpush1.msra.mxu0 %v3530
        %3688 = vmatprep.subr.mxu0 0.0
        %3689 = vmatpush1.msra.mxu0 %v3531
        %3690 = vmatprep.subr.mxu0 0.0
        %3691 = vmatpush1.msra.mxu0 %v3532
        %3692 = vmatprep.subr.mxu0 0.0
        %3693 = vmatpush1.msra.mxu0 %v3533
        %3694 = vmatprep.subr.mxu0 0.0
        %3695 = vmatpush1.msra.mxu0 %v3534
        %3696 = vmatprep.subr.mxu0 0.0
        %3697 = vmatpush1.msra.mxu0 %v3535
        %3698 = vmatprep.subr.mxu0 0.0
        %3699 = vmatpush1.msra.mxu0 %v3536
        %3700 = vmatprep.subr.mxu0 0.0
        %3701 = vmatpush1.msra.mxu0 %v3537
        %3702 = vmatprep.subr.mxu0 0.0
        %3703 = vmatpush1.msra.mxu0 %v3538
        %3704 = vmatprep.subr.mxu0 0.0
        %3705 = vmatpush1.msra.mxu0 %v3539
        %3706 = vmatprep.subr.mxu0 0.0
        %3707 = vmatpush1.msra.mxu0 %v3540
        %3708 = vmatprep.subr.mxu0 0.0
        %3709 = vmatpush1.msra.mxu0 %v3541
        %3710 = vmatprep.subr.mxu0 0.0
        %3711 = vmatpush1.msra.mxu0 %v3542
        %3712 = vmatprep.subr.mxu0 0.0
        %3713 = vmatpush1.msra.mxu0 %v3543
        %3714 = vmatprep.subr.mxu0 0.0
        %3715 = vmatpush1.msra.mxu0 %v3544
        %3716 = vmatprep.subr.mxu0 0.0
        %3717 = vmatpush1.msra.mxu0 %v3545
        %3718 = vmatprep.subr.mxu0 0.0
        %3719 = vmatpush1.msra.mxu0 %v3546
        %3720 = vmatprep.subr.mxu0 0.0
        %3721 = vmatpush1.msra.mxu0 %v3547
        %3722 = vmatprep.subr.mxu0 0.0
        %3723 = vmatpush1.msra.mxu0 %v3548
        %3724 = vmatprep.subr.mxu0 0.0
        %3725 = vmatpush1.msra.mxu0 %v3549
        %3726 = vmatprep.subr.mxu0 0.0
        %3727 = vmatpush1.msra.mxu0 %v3550
        %3728 = vmatprep.subr.mxu0 0.0
        %3729 = vmatpush1.msra.mxu0 %v3551
        %3730 = vmatprep.subr.mxu0 0.0
        %3731 = vmatpush1.msra.mxu0 %v3552
        %3732 = vmatprep.mubr.f32.mxu0 %v3604
        %3733 = vmatmul.mubr.f32.gmra.mrb[0].mxu0 %v3601
        %v3734 = vpop.f32.mrb[0].mxu0
        %v3735 = vadd.f32 0.0, %v3734
        %v3736 = vpop.f32.mrb[0].mxu0
        %3737 = vmatprep.mubr.f32.mxu0 %v3617
        %3738 = vmatmul.mubr.f32.gmra.mrb[0].mxu0 %v3615
        %v3739 = vpop.f32.mrb[0].mxu0
        %v3740 = vadd.f32 0.0, %v3739
        %v3741 = vpop.f32.mrb[0].mxu0
        %3742 = vmatprep.mubr.f32.mxu0 %v3627
        %3743 = vmatmul.mubr.f32.gmra.mrb[0].mxu0 %v3625
        %v3744 = vpop.f32.mrb[0].mxu0
        %v3745 = vadd.f32 0.0, %v3744
        %v3746 = vpop.f32.mrb[0].mxu0
        %3747 = vmatprep.mubr.f32.mxu0 %v3637
        %3748 = vmatmul.mubr.f32.gmra.mrb[0].mxu0 %v3635
        %v3749 = vpop.f32.mrb[0].mxu0
        %v3750 = vadd.f32 0.0, %v3749
        %v3751 = vpop.f32.mrb[0].mxu0
        %3752 = vdwg.mxu0
        %3753 = vmatprep.subr.mxu0 0.0
        %3754 = vmatpush1.msra.mxu0 %v3553
        %3755 = vmatprep.subr.mxu0 0.0
        %3756 = vmatpush1.msra.mxu0 %v3554
        %3757 = vmatprep.subr.mxu0 0.0
        %3758 = vmatpush1.msra.mxu0 %v3555
        %3759 = vmatprep.subr.mxu0 0.0
        %3760 = vmatpush1.msra.mxu0 %v3556
        %3761 = vmatprep.subr.mxu0 0.0
        %3762 = vmatpush1.msra.mxu0 %v3557
        %3763 = vmatprep.subr.mxu0 0.0
        %3764 = vmatpush1.msra.mxu0 %v3558
        %3765 = vmatprep.subr.mxu0 0.0
        %3766 = vmatpush1.msra.mxu0 %v3559
        %3767 = vmatprep.subr.mxu0 0.0
        %3768 = vmatpush1.msra.mxu0 %v3560
        %3769 = vmatprep.subr.mxu0 0.0
        %3770 = vmatpush1.msra.mxu0 %v3561
        %3771 = vmatprep.subr.mxu0 0.0
        %3772 = vmatpush1.msra.mxu0 %v3562
        %3773 = vmatprep.subr.mxu0 0.0
        %3774 = vmatpush1.msra.mxu0 %v3563
        %3775 = vmatprep.subr.mxu0 0.0
        %3776 = vmatpush1.msra.mxu0 %v3564
        %3777 = vmatprep.subr.mxu0 0.0
        %3778 = vmatpush1.msra.mxu0 %v3565
        %3779 = vmatprep.subr.mxu0 0.0
        %3780 = vmatpush1.msra.mxu0 %v3566
        %3781 = vmatprep.subr.mxu0 0.0
        %3782 = vmatpush1.msra.mxu0 %v3567
        %3783 = vmatprep.subr.mxu0 0.0
        %3784 = vmatpush1.msra.mxu0 %v3568
        %3785 = vmatprep.subr.mxu0 0.0
        %3786 = vmatpush1.msra.mxu0 %v3569
        %3787 = vmatprep.subr.mxu0 0.0
        %3788 = vmatpush1.msra.mxu0 %v3570
        %3789 = vmatprep.subr.mxu0 0.0
        %3790 = vmatpush1.msra.mxu0 %v3571
        %3791 = vmatprep.subr.mxu0 0.0
        %3792 = vmatpush1.msra.mxu0 %v3572
        %3793 = vmatprep.subr.mxu0 0.0
        %3794 = vmatpush1.msra.mxu0 %v3573
        %3795 = vmatprep.subr.mxu0 0.0
        %3796 = vmatpush1.msra.mxu0 %v3574
        %3797 = vmatprep.subr.mxu0 0.0
        %3798 = vmatpush1.msra.mxu0 %v3575
        %3799 = vmatprep.subr.mxu0 0.0
        %3800 = vmatpush1.msra.mxu0 %v3576
        %3801 = vmatprep.subr.mxu0 0.0
        %3802 = vmatpush1.msra.mxu0 %v3577
        %3803 = vmatprep.subr.mxu0 0.0
        %3804 = vmatpush1.msra.mxu0 %v3578
        %3805 = vmatprep.subr.mxu0 0.0
        %3806 = vmatpush1.msra.mxu0 %v3579
        %3807 = vmatprep.subr.mxu0 0.0
        %3808 = vmatpush1.msra.mxu0 %v3580
        %3809 = vmatprep.subr.mxu0 0.0
        %3810 = vmatpush1.msra.mxu0 %v3581
        %3811 = vmatprep.subr.mxu0 0.0
        %3812 = vmatpush1.msra.mxu0 %v3582
        %3813 = vmatprep.subr.mxu0 0.0
        %3814 = vmatpush1.msra.mxu0 %v3583
        %3815 = vmatprep.subr.mxu0 0.0
        %3816 = vmatpush1.msra.mxu0 %v3584
        %3817 = vmatprep.mubr.f32.mxu0 %v3610
        %3818 = vmatmul.mubr.f32.gmra.mrb[0].mxu0 %v3607
        %v3819 = vpop.f32.mrb[0].mxu0
        %v3820 = vadd.f32 %v3735, %v3819
        %v3821 = vpop.f32.mrb[0].mxu0
        %3822 = vmatprep.mubr.f32.mxu0 %v3621
        %3823 = vmatmul.mubr.f32.gmra.mrb[0].mxu0 %v3619
        %v3824 = vpop.f32.mrb[0].mxu0
        %v3825 = vadd.f32 %v3740, %v3824
        %v3826 = vpop.f32.mrb[0].mxu0
        %3827 = vmatprep.mubr.f32.mxu0 %v3631
        %3828 = vmatmul.mubr.f32.gmra.mrb[0].mxu0 %v3629
        %v3829 = vpop.f32.mrb[0].mxu0
        %v3830 = vadd.f32 %v3745, %v3829
        %v3831 = vpop.f32.mrb[0].mxu0
        %3832 = vmatprep.mubr.f32.mxu0 %v3641
        %3833 = vmatmul.mubr.f32.gmra.mrb[0].mxu0 %v3639
        %v3834 = vpop.f32.mrb[0].mxu0
        %v3835 = vadd.f32 %v3750, %v3834
        %v3836 = vpop.f32.mrb[0].mxu0
        %3837 = vdwg.mxu0
        %3838 = vmatprep.subr.mxu0 0.0
        %3839 = vmatpush1.msra.mxu0 %v3585
        %3840 = vmatprep.subr.mxu0 0.0
        %3841 = vmatpush1.msra.mxu0 %v3586
        %3842 = vmatprep.subr.mxu0 0.0
        %3843 = vmatpush1.msra.mxu0 %v3587
        %3844 = vmatprep.subr.mxu0 0.0
        %3845 = vmatpush1.msra.mxu0 %v3588
        %3846 = vmatprep.subr.mxu0 0.0
        %3847 = vmatpush1.msra.mxu0 0.0
        %3848 = vmatprep.subr.mxu0 0.0
        %3849 = vmatpush1.msra.mxu0 0.0
        %3850 = vmatprep.subr.mxu0 0.0
        %3851 = vmatpush1.msra.mxu0 0.0
        %3852 = vmatprep.subr.mxu0 0.0
        %3853 = vmatpush1.msra.mxu0 0.0
        %3854 = vmatprep.subr.mxu0 0.0
        %3855 = vmatpush1.msra.mxu0 0.0
        %3856 = vmatprep.subr.mxu0 0.0
        %3857 = vmatpush1.msra.mxu0 0.0
        %3858 = vmatprep.subr.mxu0 0.0
        %3859 = vmatpush1.msra.mxu0 0.0
        %3860 = vmatprep.subr.mxu0 0.0
        %3861 = vmatpush1.msra.mxu0 0.0
        %3862 = vmatprep.subr.mxu0 0.0
        %3863 = vmatpush1.msra.mxu0 0.0
        %3864 = vmatprep.subr.mxu0 0.0
        %3865 = vmatpush1.msra.mxu0 0.0
        %3866 = vmatprep.subr.mxu0 0.0
        %3867 = vmatpush1.msra.mxu0 0.0
        %3868 = vmatprep.subr.mxu0 0.0
        %3869 = vmatpush1.msra.mxu0 0.0
        %3870 = vmatprep.subr.mxu0 0.0
        %3871 = vmatpush1.msra.mxu0 0.0
        %3872 = vmatprep.subr.mxu0 0.0
        %3873 = vmatpush1.msra.mxu0 0.0
        %3874 = vmatprep.subr.mxu0 0.0
        %3875 = vmatpush1.msra.mxu0 0.0
        %3876 = vmatprep.subr.mxu0 0.0
        %3877 = vmatpush1.msra.mxu0 0.0
        %3878 = vmatprep.subr.mxu0 0.0
        %3879 = vmatpush1.msra.mxu0 0.0
        %3880 = vmatprep.subr.mxu0 0.0
        %3881 = vmatpush1.msra.mxu0 0.0
        %3882 = vmatprep.subr.mxu0 0.0
        %3883 = vmatpush1.msra.mxu0 0.0
        %3884 = vmatprep.subr.mxu0 0.0
        %3885 = vmatpush1.msra.mxu0 0.0
        %3886 = vmatprep.subr.mxu0 0.0
        %3887 = vmatpush1.msra.mxu0 0.0
        %3888 = vmatprep.subr.mxu0 0.0
        %3889 = vmatpush1.msra.mxu0 0.0
        %3890 = vmatprep.subr.mxu0 0.0
        %3891 = vmatpush1.msra.mxu0 0.0
        %3892 = vmatprep.subr.mxu0 0.0
        %3893 = vmatpush1.msra.mxu0 0.0
        %3894 = vmatprep.subr.mxu0 0.0
        %3895 = vmatpush1.msra.mxu0 0.0
        %3896 = vmatprep.subr.mxu0 0.0
        %3897 = vmatpush1.msra.mxu0 0.0
        %3898 = vmatprep.subr.mxu0 0.0
        %3899 = vmatpush1.msra.mxu0 0.0
        %3900 = vmatprep.subr.mxu0 0.0
        %3901 = vmatpush1.msra.mxu0 0.0
        %3902 = vmatprep.mubr.f32.mxu0 0.0
        %3903 = vmatmul.mubr.f32.gmra.mrb[0].mxu0 %v3660
        %v3904 = vpop.f32.mrb[0].mxu0
        %v3905 = vadd.f32 %v3820, %v3904
        %v3906 = vpop.f32.mrb[0].mxu0
        %3907 = vmatprep.mubr.f32.mxu0 0.0
        %3908 = vmatmul.mubr.f32.gmra.mrb[0].mxu0 %v3662
        %v3909 = vpop.f32.mrb[0].mxu0
        %v3910 = vadd.f32 %v3825, %v3909
        %v3911 = vpop.f32.mrb[0].mxu0
        %3912 = vmatprep.mubr.f32.mxu0 0.0
        %3913 = vmatmul.mubr.f32.gmra.mrb[0].mxu0 %v3664
        %v3914 = vpop.f32.mrb[0].mxu0
        %v3915 = vadd.f32 %v3830, %v3914
        %v3916 = vpop.f32.mrb[0].mxu0
        %3917 = vmatprep.mubr.f32.mxu0 0.0
        %3918 = vmatmul.mubr.f32.gmra.mrb[0].mxu0 %v3666
        %v3919 = vpop.f32.mrb[0].mxu0
        %v3920 = vadd.f32 %v3835, %v3919
        %v3921 = vpop.f32.mrb[0].mxu0
        %3922 = vdwg.mxu0
        %v3923 = vadd.f32 %v3492, %v3905
        %v3924 = vadd.f32 %v3497, %v3910
        %v3925 = vadd.f32 %v3502, %v3915
        %v3926 = vadd.f32 %v3507, %v3920
        %v3927 = vld [vmem:[%s6] sm:$0x1]
        %v3929 = vlaneseq
        %v3930 = vshrl.u32 %v3929, 7
        %v3931 = vsub.s32 0, %v3930
        %v3932 = vrot.slane %v3927, %v3931
        %v3934 = vadd.f32 %v3923, %v3932
        %v3935 = vadd.f32 %v3924, %v3932
        %v3936 = vadd.f32 %v3925, %v3932
        %v3937 = vadd.f32 %v3926, %v3932
        %v3938 = vmax.f32 %v3934, 0.0
        %v3939 = vmax.f32 %v3935, 0.0
        %v3940 = vmax.f32 %v3936, 0.0
        %v3941 = vmax.f32 %v3937, 0.0
        %3942 = vst.msk [vmem:[%s269] sm:$0xff] %vm739, %v3938
        %3943 = vst.msk [vmem:[%s269 + $0x8] sm:$0xff] %vm739, %v3939
        %3944 = vst.msk [vmem:[%s269 + $0x10] sm:$0xff] %vm739, %v3940
        %3945 = vst.msk [vmem:[%s269 + $0x18] sm:$0xff] %vm739, %v3941
        %3950 = vrot.lane.b32.xlu0 %v3938, 96
        %v3951 = vpop.permute.xlu0 %3950
        %3952 = vrot.lane.b32.xlu0 %v3939, 96
        %v3953 = vpop.permute.xlu0 %3952
        %3954 = vrot.lane.b32.xlu0 %v3940, 96
        %v3955 = vpop.permute.xlu0 %3954
        %3956 = vrot.lane.b32.xlu0 %v3941, 96
        %v3957 = vpop.permute.xlu0 %3956
        %s3962 = scalar_lea.vmem %s269, 32 [#allocation5]
        %3963 = vst.msk [vmem:[%s3962] sm:$0xff] %vm739, %v3951
        %3964 = vst.msk [vmem:[%s3962 + $0x8] sm:$0xff] %vm739, %v3953
        %3965 = vst.msk [vmem:[%s3962 + $0x10] sm:$0xff] %vm739, %v3955
        %3966 = vst.msk [vmem:[%s3962 + $0x18] sm:$0xff] %vm739, %v3957
        %3967 = vrot.lane.b32.xlu0 %v3938, 64
        %v3968 = vpop.permute.xlu0 %3967
        %3969 = vrot.lane.b32.xlu0 %v3939, 64
        %v3970 = vpop.permute.xlu0 %3969
        %3971 = vrot.lane.b32.xlu0 %v3940, 64
        %v3972 = vpop.permute.xlu0 %3971
        %3973 = vrot.lane.b32.xlu0 %v3941, 64
        %v3974 = vpop.permute.xlu0 %3973
        %s3979 = scalar_lea.vmem %s269, 64 [#allocation5]
        %3980 = vst.msk [vmem:[%s3979] sm:$0xff] %vm739, %v3968
        %3981 = vst.msk [vmem:[%s3979 + $0x8] sm:$0xff] %vm739, %v3970
        %3982 = vst.msk [vmem:[%s3979 + $0x10] sm:$0xff] %vm739, %v3972
        %3983 = vst.msk [vmem:[%s3979 + $0x18] sm:$0xff] %vm739, %v3974
        %s3984 = sand.u32 %s181, 1
        %s3985 = scalar_lea.sflag [#allocation6], %s3984
        %s3986 = sand.u32 %s181, 1
        %s3987 = smul.addr %s3986, 96
        %s3988 = scalar_lea.vmem [#allocation5], %s3987
        // Predicated region
        $region49: #{decoder_forward.1} parent=47 // pred_check
          %p3989 = pneg %p191
        $region50: #{decoder_forward.1} parent=47 // pred_check_branch
          %3991 = sbr.rel (%p3989) target = $region52
        $region51: #{decoder_forward.1} parent=47 // pred_region
          %s3993 = ssub.s32 1536, 1536
          %3994 = vsyncadd %s3985, %s3993
          %s3995 = smul.addr %s21, 12
          %s3996 = smul.addr %s3995, 128
          %s3997 = scalar_lea.hbm %s7, %s3996
          %s3998 = sshll.u32 %s3988, 4
          %s3999 = int_to_ptr.vmem [resolvable:$true] %s3998
          %4004 = dma.vmem_to_hbm [thread:$0]  %s3999, 1536, %s3997, %s3985, 128, 128, 8
        $region52: #{decoder_forward.1} parent=47 // pred_fallthru
          _
      $region48: #{decoder_forward.1} parent=5 // pred_fallthru
        _
      %p4005 = scmp.le.s32.totalorder 2, %s16
      // Predicated region
      $region53: #{decoder_forward.1} parent=5 // pred_check
        %p4006 = pneg %p4005
      $region54: #{decoder_forward.1} parent=5 // pred_check_branch
        %4008 = sbr.rel (%p4006) target = $region56
      $region55: #{decoder_forward.1} parent=5 // pred_region
        %s4009 = ssub.s32 %s16, 2
        // Predicated region
        $region57: #{decoder_forward.1} parent=55 // pred_check
          %p4010 = pneg %p197
        $region58: #{decoder_forward.1} parent=55 // pred_check_branch
          %4012 = sbr.rel (%p4010) target = $region60
        $region59: #{decoder_forward.1} parent=55 // pred_region
          %s4013 = sand.u32 %s182, 1
          %s4014 = scalar_lea.sflag [#allocation6], %s4013
          %s4015 = sand.u32 %s182, 1
          %s4016 = smul.addr %s4015, 96
          %s4017 = scalar_lea.vmem [#allocation5], %s4016
          %4018 = dma.done %s4014, 1536
        $region60: #{decoder_forward.1} parent=55 // pred_fallthru
          _
      $region56: #{decoder_forward.1} parent=5 // pred_fallthru
        _
    $region6: #{decoder_forward.1} parent=1 // loop_footer
      %s20 = sadd.s32 1, %s16
    $region7: #{decoder_forward.1} parent=1 // loop_footer_branch
      %15 = sbr.rel target = $region3
    $region8: #{decoder_forward.1} parent=1 // loop_exit
      _
    %4019 = vsyncpa [#allocation6], 1
    %s4020 = scalar_lea.sflag [#allocation6], 1
    %4021 = vsyncpa %s4020, 1

</llo_original>
